<compile_context>
chip_gen: v5e
topology: v5e:2x2
jax: 0.10.0
libtpu: 0.0.40
codegen_flags: <defaults>
</compile_context>

<pallas_src>
import functools
import math

import jax
import jax.numpy as jnp
from jax.experimental import pallas as pl
from jax.experimental.pallas import tpu as pltpu

_ROW_PAD = 2   # zero rows above/below: covers conv pad=1 plus the clamped offset
_FLAT_PAD = 2  # extra flat zeros so column shifts of -2 stay in bounds


def _fused_kernel(W, xp_ref, wdw_ref, woff_ref, wdcn_ref, wpw_ref, o_ref, y_ref):
    """Offset-gen + deformable depthwise conv + pointwise conv + Hardswish.

    xp_ref  : (Bt, C, L)     VMEM  row-padded, flattened input; L = (H+4)*W + 4.
    wdw_ref : (C*9,)         SMEM  offset-gen depthwise 3x3 weights (c, kh, kw).
    woff_ref: (18*C,)        SMEM  offset-gen 1x1 weights, row-major (18, C).
    wdcn_ref: (C*9,)         SMEM  deformable depthwise 3x3 weights (c, kh, kw).
    wpw_ref : (E_t, C)       VMEM  pointwise conv weights for this embed tile.
    o_ref   : (Bt, E_t, HW)  VMEM  output tile.
    y_ref   : (Bt, C, HW)    VMEM  scratch: deform output, persists across e tiles.
    """
    Bt, C, _ = xp_ref.shape
    HW = o_ref.shape[2]

    def shifted(c, sr, sc):
        # Plane of channel c shifted by (sr, sc): a static lane-offset slice of
        # the row-padded flat image.  Columns that would cross a row boundary
        # carry neighbouring-row garbage and are zeroed by the column mask that
        # is folded into the hat weights below (row validity is real zero rows).
        start = _FLAT_PAD + (_ROW_PAD + sr) * W + sc
        return xp_ref[:, c, start:start + HW]

    # ---- deformable depthwise part: only on the first embed tile ------------
    @pl.when(pl.program_id(1) == 0)
    def _():
        # 0/1 column-validity masks for shifts -2..2.
        colj = jax.lax.broadcasted_iota(jnp.int32, (1, HW), 1) % W
        cmask = {}
        for sc in (-2, -1, 0, 1, 2):
            jj = colj + sc
            cmask[sc] = jnp.where((jj >= 0) & (jj < W), 1.0, 0.0).astype(jnp.float32)

        # Offset generator: depthwise 3x3 conv (zero pad 1).
        od = []
        for c in range(C):
            acc = None
            for kw in range(3):
                col = None
                for kh in range(3):
                    t = wdw_ref[c * 9 + kh * 3 + kw] * shifted(c, kh - 1, kw - 1)
                    col = t if col is None else col + t
                col = col * cmask[kw - 1]
                acc = col if acc is None else acc + col
            od.append(acc)

        # Deformable depthwise 3x3 conv (torchvision DCNv1, offsets in [-1,1]).
        y_acc = [None] * C
        for k in range(9):
            kh, kw = divmod(k, 3)
            a, b = kh - 1, kw - 1
            dy = woff_ref[(2 * k) * C] * od[0]        # offset channel 2k   (y)
            dx = woff_ref[(2 * k + 1) * C] * od[0]    # offset channel 2k+1 (x)
            for c in range(1, C):
                dy = dy + woff_ref[(2 * k) * C + c] * od[c]
                dx = dx + woff_ref[(2 * k + 1) * C + c] * od[c]
            dy = jnp.clip(dy, -1.0, 1.0)
            dx = jnp.clip(dx, -1.0, 1.0)
            # 3-tap hat weights (tap +2 is identically zero under the clamp);
            # the column mask is folded into hx.
            hy = (jnp.maximum(-dy, 0.0), 1.0 - jnp.abs(dy), jnp.maximum(dy, 0.0))
            hx = (jnp.maximum(-dx, 0.0) * cmask[b - 1],
                  (1.0 - jnp.abs(dx)) * cmask[b],
                  jnp.maximum(dx, 0.0) * cmask[b + 1])
            for c in range(C):
                wk = wdcn_ref[c * 9 + k]
                samp = None
                for ri, r in enumerate((-1, 0, 1)):
                    row = (hx[0] * shifted(c, a + r, b - 1)
                           + hx[1] * shifted(c, a + r, b)
                           + hx[2] * shifted(c, a + r, b + 1))
                    term = hy[ri] * row
                    samp = term if samp is None else samp + term
                contrib = wk * samp
                y_acc[c] = contrib if y_acc[c] is None else y_acc[c] + contrib
        for c in range(C):
            y_ref[:, c, :] = y_acc[c]

    # ---- pointwise conv (C -> E_t) + Hardswish on the lane-dense tile -------
    for ib in range(Bt):
        if C >= 16:
            # Large in_chans: contract on the MXU instead.
            acc = jnp.dot(wpw_ref[...], y_ref[ib],
                          preferred_element_type=jnp.float32)
        else:
            # Tiny contraction (default in_chans = 3): unrolled VPU
            # broadcast-FMA; a K=3 MXU matmul would run nearly empty.
            acc = wpw_ref[:, 0:1] * y_ref[ib, 0:1, :]
            for c in range(1, C):
                acc = acc + wpw_ref[:, c:c + 1] * y_ref[ib, c:c + 1, :]
        # Hardswish: x * relu6(x + 3) / 6
        o_ref[ib] = (acc * jnp.clip(acc + 3.0, 0.0, 6.0) * (1.0 / 6.0)
                     ).astype(o_ref.dtype)


def _batch_tile(n):
    """Images per grid step: amortize per-step overhead for larger N while
    keeping >=2 parallel grid steps (v7x has 2 TensorCores)."""
    if n <= 2:
        return 1
    for bt in (8, 4, 2):
        if n % bt == 0 and n // bt >= 2:
            return bt
    return 1


def _embed_tile(e, bt, hw):
    """Largest embed-dim tile whose double-buffered f32 output block stays well
    inside even v5e's 16 MiB default scoped VMEM."""
    budget = 4 << 20  # bytes per output buffer
    for et in (512, 256, 128, 64, 32, 16, 8, 4, 2, 1):
        if e % et == 0 and bt * et * hw * 4 <= budget:
            return et
    return 1


def dwc_patch_embed_forward(x, w_dw, w_off, w_dcn, w_pw):
    """DWCPatchEmbed forward. x: (N, C, H, W) -> (N, E, H, W) float32."""
    N, C, H, W = x.shape
    E = w_pw.shape[0]
    HW = H * W
    L = (H + 2 * _ROW_PAD) * W + 2 * _FLAT_PAD

    # Row-padded, flattened input: the only host-side prep, one tiny copy of the
    # small C-channel input (all E-channel intermediates stay in VMEM).
    xp = jnp.zeros((N, C, L), jnp.float32)
    start = _FLAT_PAD + _ROW_PAD * W
    xp = xp.at[:, :, start:start + HW].set(x.astype(jnp.float32).reshape(N, C, HW))

    bt = _batch_tile(N)
    et = _embed_tile(E, bt, HW)

    kernel = functools.partial(_fused_kernel, W)
    out = pl.pallas_call(
        kernel,
        out_shape=jax.ShapeDtypeStruct((N, E, HW), jnp.float32),
        grid=(N // bt, E // et),
        in_specs=[
            pl.BlockSpec((bt, C, L), lambda b, e: (b, 0, 0)),
            pl.BlockSpec(memory_space=pltpu.MemorySpace.SMEM),
            pl.BlockSpec(memory_space=pltpu.MemorySpace.SMEM),
            pl.BlockSpec(memory_space=pltpu.MemorySpace.SMEM),
            pl.BlockSpec((et, C), lambda b, e: (e, 0)),
        ],
        out_specs=pl.BlockSpec((bt, et, HW), lambda b, e: (b, e, 0)),
        scratch_shapes=[pltpu.VMEM((bt, C, HW), jnp.float32)],
        compiler_params=pltpu.CompilerParams(
            dimension_semantics=("parallel", "arbitrary")),
    )(xp,
      w_dw.astype(jnp.float32).reshape(-1),
      w_off.astype(jnp.float32).reshape(-1),
      w_dcn.astype(jnp.float32).reshape(-1),
      w_pw.astype(jnp.float32))
    return out.reshape(N, E, H, W)


def _reference_forward(x, w_dw, w_off, w_dcn, w_pw):
    """Pure-JAX reference (torchvision deform_conv2d semantics) for validation."""
    N, C, H, W = x.shape
    hi = jax.lax.Precision.HIGHEST
    od = jax.lax.conv_general_dilated(
        x, w_dw.reshape(C, 1, 3, 3), window_strides=(1, 1),
        padding=((1, 1), (1, 1)), dimension_numbers=("NCHW", "OIHW", "NCHW"),
        feature_group_count=C, precision=hi)
    off = jax.lax.conv_general_dilated(
        od, w_off.reshape(18, C, 1, 1), window_strides=(1, 1), padding="VALID",
        dimension_numbers=("NCHW", "OIHW", "NCHW"), precision=hi)
    off = jnp.clip(off, -1.0, 1.0)

    hh = jnp.arange(H, dtype=jnp.float32)[None, :, None]
    ww = jnp.arange(W, dtype=jnp.float32)[None, None, :]
    n_idx = jnp.arange(N)[:, None, None, None]
    c_idx = jnp.arange(C)[None, :, None, None]
    y = jnp.zeros((N, C, H, W), jnp.float32)
    for k in range(9):
        kh, kw = divmod(k, 3)
        py = hh + (kh - 1) + off[:, 2 * k]
        px = ww + (kw - 1) + off[:, 2 * k + 1]
        y0, x0 = jnp.floor(py), jnp.floor(px)
        ly, lx = py - y0, px - x0

        def corner(yi, xi):
            valid = (yi >= 0) & (yi <= H - 1) & (xi >= 0) & (xi <= W - 1)
            yc = jnp.clip(yi, 0, H - 1).astype(jnp.int32)[:, None]
            xc = jnp.clip(xi, 0, W - 1).astype(jnp.int32)[:, None]
            return jnp.where(valid[:, None], x[n_idx, c_idx, yc, xc], 0.0)

        v = (((1 - ly) * (1 - lx))[:, None] * corner(y0, x0)
             + ((1 - ly) * lx)[:, None] * corner(y0, x0 + 1)
             + (ly * (1 - lx))[:, None] * corner(y0 + 1, x0)
             + (ly * lx)[:, None] * corner(y0 + 1, x0 + 1))
        y = y + w_dcn[None, :, kh, kw, None, None] * v

    out = jnp.einsum("ec,nchw->nehw", w_pw, y, precision=hi)
    return out * jnp.clip(out + 3.0, 0.0, 6.0) / 6.0


if __name__ == "__main__":
    key = jax.random.PRNGKey(0)
    kx, k1, k2, k3, k4 = jax.random.split(key, 5)

    N, C, H, W = 2, 3, 16, 16       # in_chans = 3 (module default), small spatial
    E = 64                          # embed_dim kept small for the demo

    x = jax.random.normal(kx, (N, C, H, W), jnp.float32)
    # DWConv2d_BN init: Conv2d weights ~ N(0, sqrt(2/(k*k*out_ch))); DeformConv2d
    # keeps its default (uniform) init — deterministic values here.
    w_dw = jax.random.normal(k1, (C, 3, 3), jnp.float32) * math.sqrt(2.0 / (9 * C))
    w_off = jax.random.normal(k2, (18, C), jnp.float32) * math.sqrt(2.0 / 18.0)
    w_dcn = jax.random.uniform(k3, (C, 3, 3), jnp.float32, -1.0 / 3.0, 1.0 / 3.0)
    w_pw = jax.random.normal(k4, (E, C), jnp.float32) * math.sqrt(2.0 / E)

    out = jax.jit(dwc_patch_embed_forward)(x, w_dw, w_off, w_dcn, w_pw)
    jax.block_until_ready(out)

    ref = jax.jit(_reference_forward)(x, w_dw, w_off, w_dcn, w_pw)
    assert out.shape == (N, E, H, W)
    assert bool(jnp.all(jnp.isfinite(out)))
    max_err = float(jnp.max(jnp.abs(out - ref)))
    assert max_err < 5e-4, f"mismatch vs pure-JAX reference: max|diff|={max_err}"
    print("KERNEL_OK")
</pallas_src>

<mosaic_0001>
module attributes {stable_mosaic.version = 11 : i64} {
  func.func @_fused_kernel(%arg0: i32, %arg1: i32, %arg2: memref<1x3x324xf32, #tpu.memory_space<vmem>>, %arg3: memref<27xf32, #tpu.memory_space<smem>>, %arg4: memref<54xf32, #tpu.memory_space<smem>>, %arg5: memref<27xf32, #tpu.memory_space<smem>>, %arg6: memref<64x3xf32, #tpu.memory_space<vmem>>, %arg7: memref<1x64x256xf32, #tpu.memory_space<vmem>>, %arg8: memref<1x3x256xf32, #tpu.memory_space<vmem>>) attributes {dimension_semantics = [#tpu.dimension_semantics<parallel>, #tpu.dimension_semantics<arbitrary>], iteration_bounds = array<i64: 2, 1>, scalar_prefetch = 0 : i64, scratch_operands = 1 : i64, tpu.core_type = #tpu.core_type<tc>, window_params = [{transform_indices = @transform_0, window_bounds = array<i64: 1, 3, 324>}, {transform_indices = @transform_1, window_bounds = array<i64: 27>}, {transform_indices = @transform_2, window_bounds = array<i64: 54>}, {transform_indices = @transform_3, window_bounds = array<i64: 27>}, {transform_indices = @transform_4, window_bounds = array<i64: 64, 3>}, {transform_indices = @transform_5, window_bounds = array<i64: 1, 64, 256>}]} {
    %c0_i32 = arith.constant 0 : i32
    %0 = arith.cmpi eq, %arg1, %c0_i32 : i32
    %1 = arith.extui %0 : i1 to i32
    %c0_i32_0 = arith.constant 0 : i32
    %2 = arith.cmpi ne, %1, %c0_i32_0 : i32
    scf.if %2 {
      %35 = tpu.iota {dimensions = array<i32: 1>} : vector<1x256xi32>
      %c16_i32 = arith.constant 16 : i32
      %c0_i32_19 = arith.constant 0 : i32
      %36 = arith.cmpi eq, %c16_i32, %c0_i32_19 : i32
      %c1_i32 = arith.constant 1 : i32
      %37 = arith.select %36, %c1_i32, %c16_i32 : i32
      %38 = vector.broadcast %37 : i32 to vector<1x256xi32>
      %39 = arith.remsi %35, %38 : vector<1x256xi32>
      %c0_i32_20 = arith.constant 0 : i32
      %40 = vector.broadcast %c0_i32_20 : i32 to vector<1x256xi32>
      %41 = arith.cmpi ne, %39, %40 : vector<1x256xi32>
      %c0_i32_21 = arith.constant 0 : i32
      %42 = vector.broadcast %c0_i32_21 : i32 to vector<1x256xi32>
      %43 = arith.cmpi slt, %39, %42 : vector<1x256xi32>
      %c0_i32_22 = arith.constant 0 : i32
      %44 = arith.cmpi slt, %37, %c0_i32_22 : i32
      %45 = vector.broadcast %44 : i1 to vector<1x256xi1>
      %46 = vector.broadcast %45 : vector<1x256xi1> to vector<1x256xi1>
      %47 = arith.xori %43, %46 : vector<1x256xi1>
      %48 = arith.andi %47, %41 : vector<1x256xi1>
      %49 = vector.broadcast %37 : i32 to vector<1x256xi32>
      %50 = arith.addi %39, %49 : vector<1x256xi32>
      %51 = arith.select %48, %50, %39 : vector<1x256xi1>, vector<1x256xi32>
      %c-2_i32 = arith.constant -2 : i32
      %52 = vector.broadcast %c-2_i32 : i32 to vector<1x256xi32>
      %53 = arith.addi %51, %52 : vector<1x256xi32>
      %c0_i32_23 = arith.constant 0 : i32
      %54 = vector.broadcast %c0_i32_23 : i32 to vector<1x256xi32>
      %55 = arith.cmpi sge, %53, %54 : vector<1x256xi32>
      %c16_i32_24 = arith.constant 16 : i32
      %56 = vector.broadcast %c16_i32_24 : i32 to vector<1x256xi32>
      %57 = arith.cmpi slt, %53, %56 : vector<1x256xi32>
      %58 = arith.andi %55, %57 : vector<1x256xi1>
      %cst_25 = arith.constant 1.000000e+00 : f32
      %cst_26 = arith.constant 0.000000e+00 : f32
      %59 = vector.broadcast %cst_25 : f32 to vector<1x256xf32>
      %60 = vector.broadcast %cst_26 : f32 to vector<1x256xf32>
      %61 = arith.select %58, %59, %60 : vector<1x256xi1>, vector<1x256xf32>
      %c-1_i32 = arith.constant -1 : i32
      %62 = vector.broadcast %c-1_i32 : i32 to vector<1x256xi32>
      %63 = arith.addi %51, %62 : vector<1x256xi32>
      %c0_i32_27 = arith.constant 0 : i32
      %64 = vector.broadcast %c0_i32_27 : i32 to vector<1x256xi32>
      %65 = arith.cmpi sge, %63, %64 : vector<1x256xi32>
      %c16_i32_28 = arith.constant 16 : i32
      %66 = vector.broadcast %c16_i32_28 : i32 to vector<1x256xi32>
      %67 = arith.cmpi slt, %63, %66 : vector<1x256xi32>
      %68 = arith.andi %65, %67 : vector<1x256xi1>
      %cst_29 = arith.constant 1.000000e+00 : f32
      %cst_30 = arith.constant 0.000000e+00 : f32
      %69 = vector.broadcast %cst_29 : f32 to vector<1x256xf32>
      %70 = vector.broadcast %cst_30 : f32 to vector<1x256xf32>
      %71 = arith.select %68, %69, %70 : vector<1x256xi1>, vector<1x256xf32>
      %c0_i32_31 = arith.constant 0 : i32
      %72 = vector.broadcast %c0_i32_31 : i32 to vector<1x256xi32>
      %73 = arith.addi %51, %72 : vector<1x256xi32>
      %c0_i32_32 = arith.constant 0 : i32
      %74 = vector.broadcast %c0_i32_32 : i32 to vector<1x256xi32>
      %75 = arith.cmpi sge, %73, %74 : vector<1x256xi32>
      %c16_i32_33 = arith.constant 16 : i32
      %76 = vector.broadcast %c16_i32_33 : i32 to vector<1x256xi32>
      %77 = arith.cmpi slt, %73, %76 : vector<1x256xi32>
      %78 = arith.andi %75, %77 : vector<1x256xi1>
      %cst_34 = arith.constant 1.000000e+00 : f32
      %cst_35 = arith.constant 0.000000e+00 : f32
      %79 = vector.broadcast %cst_34 : f32 to vector<1x256xf32>
      %80 = vector.broadcast %cst_35 : f32 to vector<1x256xf32>
      %81 = arith.select %78, %79, %80 : vector<1x256xi1>, vector<1x256xf32>
      %c1_i32_36 = arith.constant 1 : i32
      %82 = vector.broadcast %c1_i32_36 : i32 to vector<1x256xi32>
      %83 = arith.addi %51, %82 : vector<1x256xi32>
      %c0_i32_37 = arith.constant 0 : i32
      %84 = vector.broadcast %c0_i32_37 : i32 to vector<1x256xi32>
      %85 = arith.cmpi sge, %83, %84 : vector<1x256xi32>
      %c16_i32_38 = arith.constant 16 : i32
      %86 = vector.broadcast %c16_i32_38 : i32 to vector<1x256xi32>
      %87 = arith.cmpi slt, %83, %86 : vector<1x256xi32>
      %88 = arith.andi %85, %87 : vector<1x256xi1>
      %cst_39 = arith.constant 1.000000e+00 : f32
      %cst_40 = arith.constant 0.000000e+00 : f32
      %89 = vector.broadcast %cst_39 : f32 to vector<1x256xf32>
      %90 = vector.broadcast %cst_40 : f32 to vector<1x256xf32>
      %91 = arith.select %88, %89, %90 : vector<1x256xi1>, vector<1x256xf32>
      %c2_i32 = arith.constant 2 : i32
      %92 = vector.broadcast %c2_i32 : i32 to vector<1x256xi32>
      %93 = arith.addi %51, %92 : vector<1x256xi32>
      %c0_i32_41 = arith.constant 0 : i32
      %94 = vector.broadcast %c0_i32_41 : i32 to vector<1x256xi32>
      %95 = arith.cmpi sge, %93, %94 : vector<1x256xi32>
      %c16_i32_42 = arith.constant 16 : i32
      %96 = vector.broadcast %c16_i32_42 : i32 to vector<1x256xi32>
      %97 = arith.cmpi slt, %93, %96 : vector<1x256xi32>
      %98 = arith.andi %95, %97 : vector<1x256xi1>
      %cst_43 = arith.constant 1.000000e+00 : f32
      %cst_44 = arith.constant 0.000000e+00 : f32
      %99 = vector.broadcast %cst_43 : f32 to vector<1x256xf32>
      %100 = vector.broadcast %cst_44 : f32 to vector<1x256xf32>
      %101 = arith.select %98, %99, %100 : vector<1x256xi1>, vector<1x256xf32>
      %c0_45 = arith.constant 0 : index
      %102 = memref.load %arg3[%c0_45] : memref<27xf32, #tpu.memory_space<smem>>
      %c0_46 = arith.constant 0 : index
      %c0_47 = arith.constant 0 : index
      %c17 = arith.constant 17 : index
      %103 = vector.load %arg2[%c0_46, %c0_47, %c17] : memref<1x3x324xf32, #tpu.memory_space<vmem>>, vector<1x1x256xf32>
      %104 = vector.shape_cast %103 : vector<1x1x256xf32> to vector<1x256xf32>
      %105 = vector.broadcast %102 : f32 to vector<1x256xf32>
      %106 = arith.mulf %105, %104 : vector<1x256xf32>
      %c3 = arith.constant 3 : index
      %107 = memref.load %arg3[%c3] : memref<27xf32, #tpu.memory_space<smem>>
      %c0_48 = arith.constant 0 : index
      %c0_49 = arith.constant 0 : index
      %c33 = arith.constant 33 : index
      %108 = vector.load %arg2[%c0_48, %c0_49, %c33] : memref<1x3x324xf32, #tpu.memory_space<vmem>>, vector<1x1x256xf32>
      %109 = vector.shape_cast %108 : vector<1x1x256xf32> to vector<1x256xf32>
      %110 = vector.broadcast %107 : f32 to vector<1x256xf32>
      %111 = arith.mulf %110, %109 : vector<1x256xf32>
      %112 = arith.addf %106, %111 : vector<1x256xf32>
      %c6 = arith.constant 6 : index
      %113 = memref.load %arg3[%c6] : memref<27xf32, #tpu.memory_space<smem>>
      %c0_50 = arith.constant 0 : index
      %c0_51 = arith.constant 0 : index
      %c49 = arith.constant 49 : index
      %114 = vector.load %arg2[%c0_50, %c0_51, %c49] : memref<1x3x324xf32, #tpu.memory_space<vmem>>, vector<1x1x256xf32>
      %115 = vector.shape_cast %114 : vector<1x1x256xf32> to vector<1x256xf32>
      %116 = vector.broadcast %113 : f32 to vector<1x256xf32>
      %117 = arith.mulf %116, %115 : vector<1x256xf32>
      %118 = arith.addf %112, %117 : vector<1x256xf32>
      %119 = arith.mulf %118, %71 : vector<1x256xf32>
      %c1_52 = arith.constant 1 : index
      %120 = memref.load %arg3[%c1_52] : memref<27xf32, #tpu.memory_space<smem>>
      %c0_53 = arith.constant 0 : index
      %c0_54 = arith.constant 0 : index
      %c18 = arith.constant 18 : index
      %121 = vector.load %arg2[%c0_53, %c0_54, %c18] : memref<1x3x324xf32, #tpu.memory_space<vmem>>, vector<1x1x256xf32>
      %122 = vector.shape_cast %121 : vector<1x1x256xf32> to vector<1x256xf32>
      %123 = vector.broadcast %120 : f32 to vector<1x256xf32>
      %124 = arith.mulf %123, %122 : vector<1x256xf32>
      %c4 = arith.constant 4 : index
      %125 = memref.load %arg3[%c4] : memref<27xf32, #tpu.memory_space<smem>>
      %c0_55 = arith.constant 0 : index
      %c0_56 = arith.constant 0 : index
      %c34 = arith.constant 34 : index
      %126 = vector.load %arg2[%c0_55, %c0_56, %c34] : memref<1x3x324xf32, #tpu.memory_space<vmem>>, vector<1x1x256xf32>
      %127 = vector.shape_cast %126 : vector<1x1x256xf32> to vector<1x256xf32>
      %128 = vector.broadcast %125 : f32 to vector<1x256xf32>
      %129 = arith.mulf %128, %127 : vector<1x256xf32>
      %130 = arith.addf %124, %129 : vector<1x256xf32>
      %c7 = arith.constant 7 : index
      %131 = memref.load %arg3[%c7] : memref<27xf32, #tpu.memory_space<smem>>
      %c0_57 = arith.constant 0 : index
      %c0_58 = arith.constant 0 : index
      %c50 = arith.constant 50 : index
      %132 = vector.load %arg2[%c0_57, %c0_58, %c50] : memref<1x3x324xf32, #tpu.memory_space<vmem>>, vector<1x1x256xf32>
      %133 = vector.shape_cast %132 : vector<1x1x256xf32> to vector<1x256xf32>
      %134 = vector.broadcast %131 : f32 to vector<1x256xf32>
      %135 = arith.mulf %134, %133 : vector<1x256xf32>
      %136 = arith.addf %130, %135 : vector<1x256xf32>
      %137 = arith.mulf %136, %81 : vector<1x256xf32>
      %138 = arith.addf %119, %137 : vector<1x256xf32>
      %c2_59 = arith.constant 2 : index
      %139 = memref.load %arg3[%c2_59] : memref<27xf32, #tpu.memory_space<smem>>
      %c0_60 = arith.constant 0 : index
      %c0_61 = arith.constant 0 : index
      %c19 = arith.constant 19 : index
      %140 = vector.load %arg2[%c0_60, %c0_61, %c19] : memref<1x3x324xf32, #tpu.memory_space<vmem>>, vector<1x1x256xf32>
      %141 = vector.shape_cast %140 : vector<1x1x256xf32> to vector<1x256xf32>
      %142 = vector.broadcast %139 : f32 to vector<1x256xf32>
      %143 = arith.mulf %142, %141 : vector<1x256xf32>
      %c5 = arith.constant 5 : index
      %144 = memref.load %arg3[%c5] : memref<27xf32, #tpu.memory_space<smem>>
      %c0_62 = arith.constant 0 : index
      %c0_63 = arith.constant 0 : index
      %c35 = arith.constant 35 : index
      %145 = vector.load %arg2[%c0_62, %c0_63, %c35] : memref<1x3x324xf32, #tpu.memory_space<vmem>>, vector<1x1x256xf32>
      %146 = vector.shape_cast %145 : vector<1x1x256xf32> to vector<1x256xf32>
      %147 = vector.broadcast %144 : f32 to vector<1x256xf32>
      %148 = arith.mulf %147, %146 : vector<1x256xf32>
      %149 = arith.addf %143, %148 : vector<1x256xf32>
      %c8 = arith.constant 8 : index
      %150 = memref.load %arg3[%c8] : memref<27xf32, #tpu.memory_space<smem>>
      %c0_64 = arith.constant 0 : index
      %c0_65 = arith.constant 0 : index
      %c51 = arith.constant 51 : index
      %151 = vector.load %arg2[%c0_64, %c0_65, %c51] : memref<1x3x324xf32, #tpu.memory_space<vmem>>, vector<1x1x256xf32>
      %152 = vector.shape_cast %151 : vector<1x1x256xf32> to vector<1x256xf32>
      %153 = vector.broadcast %150 : f32 to vector<1x256xf32>
      %154 = arith.mulf %153, %152 : vector<1x256xf32>
      %155 = arith.addf %149, %154 : vector<1x256xf32>
      %156 = arith.mulf %155, %91 : vector<1x256xf32>
      %157 = arith.addf %138, %156 : vector<1x256xf32>
      %c9 = arith.constant 9 : index
      %158 = memref.load %arg3[%c9] : memref<27xf32, #tpu.memory_space<smem>>
      %c0_66 = arith.constant 0 : index
      %c1_67 = arith.constant 1 : index
      %c17_68 = arith.constant 17 : index
      %159 = vector.load %arg2[%c0_66, %c1_67, %c17_68] : memref<1x3x324xf32, #tpu.memory_space<vmem>>, vector<1x1x256xf32>
      %160 = vector.shape_cast %159 : vector<1x1x256xf32> to vector<1x256xf32>
      %161 = vector.broadcast %158 : f32 to vector<1x256xf32>
      %162 = arith.mulf %161, %160 : vector<1x256xf32>
      %c12 = arith.constant 12 : index
      %163 = memref.load %arg3[%c12] : memref<27xf32, #tpu.memory_space<smem>>
      %c0_69 = arith.constant 0 : index
      %c1_70 = arith.constant 1 : index
      %c33_71 = arith.constant 33 : index
      %164 = vector.load %arg2[%c0_69, %c1_70, %c33_71] : memref<1x3x324xf32, #tpu.memory_space<vmem>>, vector<1x1x256xf32>
      %165 = vector.shape_cast %164 : vector<1x1x256xf32> to vector<1x256xf32>
      %166 = vector.broadcast %163 : f32 to vector<1x256xf32>
      %167 = arith.mulf %166, %165 : vector<1x256xf32>
      %168 = arith.addf %162, %167 : vector<1x256xf32>
      %c15 = arith.constant 15 : index
      %169 = memref.load %arg3[%c15] : memref<27xf32, #tpu.memory_space<smem>>
      %c0_72 = arith.constant 0 : index
      %c1_73 = arith.constant 1 : index
      %c49_74 = arith.constant 49 : index
      %170 = vector.load %arg2[%c0_72, %c1_73, %c49_74] : memref<1x3x324xf32, #tpu.memory_space<vmem>>, vector<1x1x256xf32>
      %171 = vector.shape_cast %170 : vector<1x1x256xf32> to vector<1x256xf32>
      %172 = vector.broadcast %169 : f32 to vector<1x256xf32>
      %173 = arith.mulf %172, %171 : vector<1x256xf32>
      %174 = arith.addf %168, %173 : vector<1x256xf32>
      %175 = arith.mulf %174, %71 : vector<1x256xf32>
      %c10 = arith.constant 10 : index
      %176 = memref.load %arg3[%c10] : memref<27xf32, #tpu.memory_space<smem>>
      %c0_75 = arith.constant 0 : index
      %c1_76 = arith.constant 1 : index
      %c18_77 = arith.constant 18 : index
      %177 = vector.load %arg2[%c0_75, %c1_76, %c18_77] : memref<1x3x324xf32, #tpu.memory_space<vmem>>, vector<1x1x256xf32>
      %178 = vector.shape_cast %177 : vector<1x1x256xf32> to vector<1x256xf32>
      %179 = vector.broadcast %176 : f32 to vector<1x256xf32>
      %180 = arith.mulf %179, %178 : vector<1x256xf32>
      %c13 = arith.constant 13 : index
      %181 = memref.load %arg3[%c13] : memref<27xf32, #tpu.memory_space<smem>>
      %c0_78 = arith.constant 0 : index
      %c1_79 = arith.constant 1 : index
      %c34_80 = arith.constant 34 : index
      %182 = vector.load %arg2[%c0_78, %c1_79, %c34_80] : memref<1x3x324xf32, #tpu.memory_space<vmem>>, vector<1x1x256xf32>
      %183 = vector.shape_cast %182 : vector<1x1x256xf32> to vector<1x256xf32>
      %184 = vector.broadcast %181 : f32 to vector<1x256xf32>
      %185 = arith.mulf %184, %183 : vector<1x256xf32>
      %186 = arith.addf %180, %185 : vector<1x256xf32>
      %c16 = arith.constant 16 : index
      %187 = memref.load %arg3[%c16] : memref<27xf32, #tpu.memory_space<smem>>
      %c0_81 = arith.constant 0 : index
      %c1_82 = arith.constant 1 : index
      %c50_83 = arith.constant 50 : index
      %188 = vector.load %arg2[%c0_81, %c1_82, %c50_83] : memref<1x3x324xf32, #tpu.memory_space<vmem>>, vector<1x1x256xf32>
      %189 = vector.shape_cast %188 : vector<1x1x256xf32> to vector<1x256xf32>
      %190 = vector.broadcast %187 : f32 to vector<1x256xf32>
      %191 = arith.mulf %190, %189 : vector<1x256xf32>
      %192 = arith.addf %186, %191 : vector<1x256xf32>
      %193 = arith.mulf %192, %81 : vector<1x256xf32>
      %194 = arith.addf %175, %193 : vector<1x256xf32>
      %c11 = arith.constant 11 : index
      %195 = memref.load %arg3[%c11] : memref<27xf32, #tpu.memory_space<smem>>
      %c0_84 = arith.constant 0 : index
      %c1_85 = arith.constant 1 : index
      %c19_86 = arith.constant 19 : index
      %196 = vector.load %arg2[%c0_84, %c1_85, %c19_86] : memref<1x3x324xf32, #tpu.memory_space<vmem>>, vector<1x1x256xf32>
      %197 = vector.shape_cast %196 : vector<1x1x256xf32> to vector<1x256xf32>
      %198 = vector.broadcast %195 : f32 to vector<1x256xf32>
      %199 = arith.mulf %198, %197 : vector<1x256xf32>
      %c14 = arith.constant 14 : index
      %200 = memref.load %arg3[%c14] : memref<27xf32, #tpu.memory_space<smem>>
      %c0_87 = arith.constant 0 : index
      %c1_88 = arith.constant 1 : index
      %c35_89 = arith.constant 35 : index
      %201 = vector.load %arg2[%c0_87, %c1_88, %c35_89] : memref<1x3x324xf32, #tpu.memory_space<vmem>>, vector<1x1x256xf32>
      %202 = vector.shape_cast %201 : vector<1x1x256xf32> to vector<1x256xf32>
      %203 = vector.broadcast %200 : f32 to vector<1x256xf32>
      %204 = arith.mulf %203, %202 : vector<1x256xf32>
      %205 = arith.addf %199, %204 : vector<1x256xf32>
      %c17_90 = arith.constant 17 : index
      %206 = memref.load %arg3[%c17_90] : memref<27xf32, #tpu.memory_space<smem>>
      %c0_91 = arith.constant 0 : index
      %c1_92 = arith.constant 1 : index
      %c51_93 = arith.constant 51 : index
      %207 = vector.load %arg2[%c0_91, %c1_92, %c51_93] : memref<1x3x324xf32, #tpu.memory_space<vmem>>, vector<1x1x256xf32>
      %208 = vector.shape_cast %207 : vector<1x1x256xf32> to vector<1x256xf32>
      %209 = vector.broadcast %206 : f32 to vector<1x256xf32>
      %210 = arith.mulf %209, %208 : vector<1x256xf32>
      %211 = arith.addf %205, %210 : vector<1x256xf32>
      %212 = arith.mulf %211, %91 : vector<1x256xf32>
      %213 = arith.addf %194, %212 : vector<1x256xf32>
      %c18_94 = arith.constant 18 : index
      %214 = memref.load %arg3[%c18_94] : memref<27xf32, #tpu.memory_space<smem>>
      %c0_95 = arith.constant 0 : index
      %c2_96 = arith.constant 2 : index
      %c17_97 = arith.constant 17 : index
      %215 = vector.load %arg2[%c0_95, %c2_96, %c17_97] : memref<1x3x324xf32, #tpu.memory_space<vmem>>, vector<1x1x256xf32>
      %216 = vector.shape_cast %215 : vector<1x1x256xf32> to vector<1x256xf32>
      %217 = vector.broadcast %214 : f32 to vector<1x256xf32>
      %218 = arith.mulf %217, %216 : vector<1x256xf32>
      %c21 = arith.constant 21 : index
      %219 = memref.load %arg3[%c21] : memref<27xf32, #tpu.memory_space<smem>>
      %c0_98 = arith.constant 0 : index
      %c2_99 = arith.constant 2 : index
      %c33_100 = arith.constant 33 : index
      %220 = vector.load %arg2[%c0_98, %c2_99, %c33_100] : memref<1x3x324xf32, #tpu.memory_space<vmem>>, vector<1x1x256xf32>
      %221 = vector.shape_cast %220 : vector<1x1x256xf32> to vector<1x256xf32>
      %222 = vector.broadcast %219 : f32 to vector<1x256xf32>
      %223 = arith.mulf %222, %221 : vector<1x256xf32>
      %224 = arith.addf %218, %223 : vector<1x256xf32>
      %c24 = arith.constant 24 : index
      %225 = memref.load %arg3[%c24] : memref<27xf32, #tpu.memory_space<smem>>
      %c0_101 = arith.constant 0 : index
      %c2_102 = arith.constant 2 : index
      %c49_103 = arith.constant 49 : index
      %226 = vector.load %arg2[%c0_101, %c2_102, %c49_103] : memref<1x3x324xf32, #tpu.memory_space<vmem>>, vector<1x1x256xf32>
      %227 = vector.shape_cast %226 : vector<1x1x256xf32> to vector<1x256xf32>
      %228 = vector.broadcast %225 : f32 to vector<1x256xf32>
      %229 = arith.mulf %228, %227 : vector<1x256xf32>
      %230 = arith.addf %224, %229 : vector<1x256xf32>
      %231 = arith.mulf %230, %71 : vector<1x256xf32>
      %c19_104 = arith.constant 19 : index
      %232 = memref.load %arg3[%c19_104] : memref<27xf32, #tpu.memory_space<smem>>
      %c0_105 = arith.constant 0 : index
      %c2_106 = arith.constant 2 : index
      %c18_107 = arith.constant 18 : index
      %233 = vector.load %arg2[%c0_105, %c2_106, %c18_107] : memref<1x3x324xf32, #tpu.memory_space<vmem>>, vector<1x1x256xf32>
      %234 = vector.shape_cast %233 : vector<1x1x256xf32> to vector<1x256xf32>
      %235 = vector.broadcast %232 : f32 to vector<1x256xf32>
      %236 = arith.mulf %235, %234 : vector<1x256xf32>
      %c22 = arith.constant 22 : index
      %237 = memref.load %arg3[%c22] : memref<27xf32, #tpu.memory_space<smem>>
      %c0_108 = arith.constant 0 : index
      %c2_109 = arith.constant 2 : index
      %c34_110 = arith.constant 34 : index
      %238 = vector.load %arg2[%c0_108, %c2_109, %c34_110] : memref<1x3x324xf32, #tpu.memory_space<vmem>>, vector<1x1x256xf32>
      %239 = vector.shape_cast %238 : vector<1x1x256xf32> to vector<1x256xf32>
      %240 = vector.broadcast %237 : f32 to vector<1x256xf32>
      %241 = arith.mulf %240, %239 : vector<1x256xf32>
      %242 = arith.addf %236, %241 : vector<1x256xf32>
      %c25 = arith.constant 25 : index
      %243 = memref.load %arg3[%c25] : memref<27xf32, #tpu.memory_space<smem>>
      %c0_111 = arith.constant 0 : index
      %c2_112 = arith.constant 2 : index
      %c50_113 = arith.constant 50 : index
      %244 = vector.load %arg2[%c0_111, %c2_112, %c50_113] : memref<1x3x324xf32, #tpu.memory_space<vmem>>, vector<1x1x256xf32>
      %245 = vector.shape_cast %244 : vector<1x1x256xf32> to vector<1x256xf32>
      %246 = vector.broadcast %243 : f32 to vector<1x256xf32>
      %247 = arith.mulf %246, %245 : vector<1x256xf32>
      %248 = arith.addf %242, %247 : vector<1x256xf32>
      %249 = arith.mulf %248, %81 : vector<1x256xf32>
      %250 = arith.addf %231, %249 : vector<1x256xf32>
      %c20 = arith.constant 20 : index
      %251 = memref.load %arg3[%c20] : memref<27xf32, #tpu.memory_space<smem>>
      %c0_114 = arith.constant 0 : index
      %c2_115 = arith.constant 2 : index
      %c19_116 = arith.constant 19 : index
      %252 = vector.load %arg2[%c0_114, %c2_115, %c19_116] : memref<1x3x324xf32, #tpu.memory_space<vmem>>, vector<1x1x256xf32>
      %253 = vector.shape_cast %252 : vector<1x1x256xf32> to vector<1x256xf32>
      %254 = vector.broadcast %251 : f32 to vector<1x256xf32>
      %255 = arith.mulf %254, %253 : vector<1x256xf32>
      %c23 = arith.constant 23 : index
      %256 = memref.load %arg3[%c23] : memref<27xf32, #tpu.memory_space<smem>>
      %c0_117 = arith.constant 0 : index
      %c2_118 = arith.constant 2 : index
      %c35_119 = arith.constant 35 : index
      %257 = vector.load %arg2[%c0_117, %c2_118, %c35_119] : memref<1x3x324xf32, #tpu.memory_space<vmem>>, vector<1x1x256xf32>
      %258 = vector.shape_cast %257 : vector<1x1x256xf32> to vector<1x256xf32>
      %259 = vector.broadcast %256 : f32 to vector<1x256xf32>
      %260 = arith.mulf %259, %258 : vector<1x256xf32>
      %261 = arith.addf %255, %260 : vector<1x256xf32>
      %c26 = arith.constant 26 : index
      %262 = memref.load %arg3[%c26] : memref<27xf32, #tpu.memory_space<smem>>
      %c0_120 = arith.constant 0 : index
      %c2_121 = arith.constant 2 : index
      %c51_122 = arith.constant 51 : index
      %263 = vector.load %arg2[%c0_120, %c2_121, %c51_122] : memref<1x3x324xf32, #tpu.memory_space<vmem>>, vector<1x1x256xf32>
      %264 = vector.shape_cast %263 : vector<1x1x256xf32> to vector<1x256xf32>
      %265 = vector.broadcast %262 : f32 to vector<1x256xf32>
      %266 = arith.mulf %265, %264 : vector<1x256xf32>
      %267 = arith.addf %261, %266 : vector<1x256xf32>
      %268 = arith.mulf %267, %91 : vector<1x256xf32>
      %269 = arith.addf %250, %268 : vector<1x256xf32>
      %c0_123 = arith.constant 0 : index
      %270 = memref.load %arg4[%c0_123] : memref<54xf32, #tpu.memory_space<smem>>
      %271 = vector.broadcast %270 : f32 to vector<1x256xf32>
      %272 = arith.mulf %271, %157 : vector<1x256xf32>
      %c3_124 = arith.constant 3 : index
      %273 = memref.load %arg4[%c3_124] : memref<54xf32, #tpu.memory_space<smem>>
      %274 = vector.broadcast %273 : f32 to vector<1x256xf32>
      %275 = arith.mulf %274, %157 : vector<1x256xf32>
      %c1_125 = arith.constant 1 : index
      %276 = memref.load %arg4[%c1_125] : memref<54xf32, #tpu.memory_space<smem>>
      %277 = vector.broadcast %276 : f32 to vector<1x256xf32>
      %278 = arith.mulf %277, %213 : vector<1x256xf32>
      %279 = arith.addf %272, %278 : vector<1x256xf32>
      %c4_126 = arith.constant 4 : index
      %280 = memref.load %arg4[%c4_126] : memref<54xf32, #tpu.memory_space<smem>>
      %281 = vector.broadcast %280 : f32 to vector<1x256xf32>
      %282 = arith.mulf %281, %213 : vector<1x256xf32>
      %283 = arith.addf %275, %282 : vector<1x256xf32>
      %c2_127 = arith.constant 2 : index
      %284 = memref.load %arg4[%c2_127] : memref<54xf32, #tpu.memory_space<smem>>
      %285 = vector.broadcast %284 : f32 to vector<1x256xf32>
      %286 = arith.mulf %285, %269 : vector<1x256xf32>
      %287 = arith.addf %279, %286 : vector<1x256xf32>
      %c5_128 = arith.constant 5 : index
      %288 = memref.load %arg4[%c5_128] : memref<54xf32, #tpu.memory_space<smem>>
      %289 = vector.broadcast %288 : f32 to vector<1x256xf32>
      %290 = arith.mulf %289, %269 : vector<1x256xf32>
      %291 = arith.addf %283, %290 : vector<1x256xf32>
      %cst_129 = arith.constant -1.000000e+00 : f32
      %cst_130 = arith.constant 1.000000e+00 : f32
      %292 = vector.broadcast %cst_129 : f32 to vector<1x256xf32>
      %293 = arith.maximumf %292, %287 : vector<1x256xf32>
      %294 = vector.broadcast %cst_130 : f32 to vector<1x256xf32>
      %295 = arith.minimumf %294, %293 : vector<1x256xf32>
      %cst_131 = arith.constant -1.000000e+00 : f32
      %cst_132 = arith.constant 1.000000e+00 : f32
      %296 = vector.broadcast %cst_131 : f32 to vector<1x256xf32>
      %297 = arith.maximumf %296, %291 : vector<1x256xf32>
      %298 = vector.broadcast %cst_132 : f32 to vector<1x256xf32>
      %299 = arith.minimumf %298, %297 : vector<1x256xf32>
      %cst_133 = arith.constant 0.000000e+00 : f32
      %300 = vector.broadcast %cst_133 : f32 to vector<1x256xf32>
      %301 = arith.subf %300, %295 : vector<1x256xf32>
      %cst_134 = arith.constant 0.000000e+00 : f32
      %302 = vector.broadcast %cst_134 : f32 to vector<1x256xf32>
      %303 = arith.maximumf %301, %302 : vector<1x256xf32>
      %304 = math.absf %295 : vector<1x256xf32>
      %cst_135 = arith.constant 1.000000e+00 : f32
      %305 = vector.broadcast %cst_135 : f32 to vector<1x256xf32>
      %306 = arith.subf %305, %304 : vector<1x256xf32>
      %cst_136 = arith.constant 0.000000e+00 : f32
      %307 = vector.broadcast %cst_136 : f32 to vector<1x256xf32>
      %308 = arith.maximumf %295, %307 : vector<1x256xf32>
      %cst_137 = arith.constant 0.000000e+00 : f32
      %309 = vector.broadcast %cst_137 : f32 to vector<1x256xf32>
      %310 = arith.subf %309, %299 : vector<1x256xf32>
      %cst_138 = arith.constant 0.000000e+00 : f32
      %311 = vector.broadcast %cst_138 : f32 to vector<1x256xf32>
      %312 = arith.maximumf %310, %311 : vector<1x256xf32>
      %313 = arith.mulf %312, %61 : vector<1x256xf32>
      %314 = math.absf %299 : vector<1x256xf32>
      %cst_139 = arith.constant 1.000000e+00 : f32
      %315 = vector.broadcast %cst_139 : f32 to vector<1x256xf32>
      %316 = arith.subf %315, %314 : vector<1x256xf32>
      %317 = arith.mulf %316, %71 : vector<1x256xf32>
      %cst_140 = arith.constant 0.000000e+00 : f32
      %318 = vector.broadcast %cst_140 : f32 to vector<1x256xf32>
      %319 = arith.maximumf %299, %318 : vector<1x256xf32>
      %320 = arith.mulf %319, %81 : vector<1x256xf32>
      %c0_141 = arith.constant 0 : index
      %321 = memref.load %arg5[%c0_141] : memref<27xf32, #tpu.memory_space<smem>>
      %c0_142 = arith.constant 0 : index
      %c0_143 = arith.constant 0 : index
      %c0_144 = arith.constant 0 : index
      %322 = vector.load %arg2[%c0_142, %c0_143, %c0_144] : memref<1x3x324xf32, #tpu.memory_space<vmem>>, vector<1x1x256xf32>
      %323 = vector.shape_cast %322 : vector<1x1x256xf32> to vector<1x256xf32>
      %324 = arith.mulf %313, %323 : vector<1x256xf32>
      %c0_145 = arith.constant 0 : index
      %c0_146 = arith.constant 0 : index
      %c1_147 = arith.constant 1 : index
      %325 = vector.load %arg2[%c0_145, %c0_146, %c1_147] : memref<1x3x324xf32, #tpu.memory_space<vmem>>, vector<1x1x256xf32>
      %326 = vector.shape_cast %325 : vector<1x1x256xf32> to vector<1x256xf32>
      %327 = arith.mulf %317, %326 : vector<1x256xf32>
      %328 = arith.addf %324, %327 : vector<1x256xf32>
      %c0_148 = arith.constant 0 : index
      %c0_149 = arith.constant 0 : index
      %c2_150 = arith.constant 2 : index
      %329 = vector.load %arg2[%c0_148, %c0_149, %c2_150] : memref<1x3x324xf32, #tpu.memory_space<vmem>>, vector<1x1x256xf32>
      %330 = vector.shape_cast %329 : vector<1x1x256xf32> to vector<1x256xf32>
      %331 = arith.mulf %320, %330 : vector<1x256xf32>
      %332 = arith.addf %328, %331 : vector<1x256xf32>
      %333 = arith.mulf %303, %332 : vector<1x256xf32>
      %c0_151 = arith.constant 0 : index
      %c0_152 = arith.constant 0 : index
      %c16_153 = arith.constant 16 : index
      %334 = vector.load %arg2[%c0_151, %c0_152, %c16_153] : memref<1x3x324xf32, #tpu.memory_space<vmem>>, vector<1x1x256xf32>
      %335 = vector.shape_cast %334 : vector<1x1x256xf32> to vector<1x256xf32>
      %336 = arith.mulf %313, %335 : vector<1x256xf32>
      %c0_154 = arith.constant 0 : index
      %c0_155 = arith.constant 0 : index
      %c17_156 = arith.constant 17 : index
      %337 = vector.load %arg2[%c0_154, %c0_155, %c17_156] : memref<1x3x324xf32, #tpu.memory_space<vmem>>, vector<1x1x256xf32>
      %338 = vector.shape_cast %337 : vector<1x1x256xf32> to vector<1x256xf32>
      %339 = arith.mulf %317, %338 : vector<1x256xf32>
      %340 = arith.addf %336, %339 : vector<1x256xf32>
      %c0_157 = arith.constant 0 : index
      %c0_158 = arith.constant 0 : index
      %c18_159 = arith.constant 18 : index
      %341 = vector.load %arg2[%c0_157, %c0_158, %c18_159] : memref<1x3x324xf32, #tpu.memory_space<vmem>>, vector<1x1x256xf32>
      %342 = vector.shape_cast %341 : vector<1x1x256xf32> to vector<1x256xf32>
      %343 = arith.mulf %320, %342 : vector<1x256xf32>
      %344 = arith.addf %340, %343 : vector<1x256xf32>
      %345 = arith.mulf %306, %344 : vector<1x256xf32>
      %346 = arith.addf %333, %345 : vector<1x256xf32>
      %c0_160 = arith.constant 0 : index
      %c0_161 = arith.constant 0 : index
      %c32 = arith.constant 32 : index
      %347 = vector.load %arg2[%c0_160, %c0_161, %c32] : memref<1x3x324xf32, #tpu.memory_space<vmem>>, vector<1x1x256xf32>
      %348 = vector.shape_cast %347 : vector<1x1x256xf32> to vector<1x256xf32>
      %349 = arith.mulf %313, %348 : vector<1x256xf32>
      %c0_162 = arith.constant 0 : index
      %c0_163 = arith.constant 0 : index
      %c33_164 = arith.constant 33 : index
      %350 = vector.load %arg2[%c0_162, %c0_163, %c33_164] : memref<1x3x324xf32, #tpu.memory_space<vmem>>, vector<1x1x256xf32>
      %351 = vector.shape_cast %350 : vector<1x1x256xf32> to vector<1x256xf32>
      %352 = arith.mulf %317, %351 : vector<1x256xf32>
      %353 = arith.addf %349, %352 : vector<1x256xf32>
      %c0_165 = arith.constant 0 : index
      %c0_166 = arith.constant 0 : index
      %c34_167 = arith.constant 34 : index
      %354 = vector.load %arg2[%c0_165, %c0_166, %c34_167] : memref<1x3x324xf32, #tpu.memory_space<vmem>>, vector<1x1x256xf32>
      %355 = vector.shape_cast %354 : vector<1x1x256xf32> to vector<1x256xf32>
      %356 = arith.mulf %320, %355 : vector<1x256xf32>
      %357 = arith.addf %353, %356 : vector<1x256xf32>
      %358 = arith.mulf %308, %357 : vector<1x256xf32>
      %359 = arith.addf %346, %358 : vector<1x256xf32>
      %360 = vector.broadcast %321 : f32 to vector<1x256xf32>
      %361 = arith.mulf %360, %359 : vector<1x256xf32>
      %c9_168 = arith.constant 9 : index
      %362 = memref.load %arg5[%c9_168] : memref<27xf32, #tpu.memory_space<smem>>
      %c0_169 = arith.constant 0 : index
      %c1_170 = arith.constant 1 : index
      %c0_171 = arith.constant 0 : index
      %363 = vector.load %arg2[%c0_169, %c1_170, %c0_171] : memref<1x3x324xf32, #tpu.memory_space<vmem>>, vector<1x1x256xf32>
      %364 = vector.shape_cast %363 : vector<1x1x256xf32> to vector<1x256xf32>
      %365 = arith.mulf %313, %364 : vector<1x256xf32>
      %c0_172 = arith.constant 0 : index
      %c1_173 = arith.constant 1 : index
      %c1_174 = arith.constant 1 : index
      %366 = vector.load %arg2[%c0_172, %c1_173, %c1_174] : memref<1x3x324xf32, #tpu.memory_space<vmem>>, vector<1x1x256xf32>
      %367 = vector.shape_cast %366 : vector<1x1x256xf32> to vector<1x256xf32>
      %368 = arith.mulf %317, %367 : vector<1x256xf32>
      %369 = arith.addf %365, %368 : vector<1x256xf32>
      %c0_175 = arith.constant 0 : index
      %c1_176 = arith.constant 1 : index
      %c2_177 = arith.constant 2 : index
      %370 = vector.load %arg2[%c0_175, %c1_176, %c2_177] : memref<1x3x324xf32, #tpu.memory_space<vmem>>, vector<1x1x256xf32>
      %371 = vector.shape_cast %370 : vector<1x1x256xf32> to vector<1x256xf32>
      %372 = arith.mulf %320, %371 : vector<1x256xf32>
      %373 = arith.addf %369, %372 : vector<1x256xf32>
      %374 = arith.mulf %303, %373 : vector<1x256xf32>
      %c0_178 = arith.constant 0 : index
      %c1_179 = arith.constant 1 : index
      %c16_180 = arith.constant 16 : index
      %375 = vector.load %arg2[%c0_178, %c1_179, %c16_180] : memref<1x3x324xf32, #tpu.memory_space<vmem>>, vector<1x1x256xf32>
      %376 = vector.shape_cast %375 : vector<1x1x256xf32> to vector<1x256xf32>
      %377 = arith.mulf %313, %376 : vector<1x256xf32>
      %c0_181 = arith.constant 0 : index
      %c1_182 = arith.constant 1 : index
      %c17_183 = arith.constant 17 : index
      %378 = vector.load %arg2[%c0_181, %c1_182, %c17_183] : memref<1x3x324xf32, #tpu.memory_space<vmem>>, vector<1x1x256xf32>
      %379 = vector.shape_cast %378 : vector<1x1x256xf32> to vector<1x256xf32>
      %380 = arith.mulf %317, %379 : vector<1x256xf32>
      %381 = arith.addf %377, %380 : vector<1x256xf32>
      %c0_184 = arith.constant 0 : index
      %c1_185 = arith.constant 1 : index
      %c18_186 = arith.constant 18 : index
      %382 = vector.load %arg2[%c0_184, %c1_185, %c18_186] : memref<1x3x324xf32, #tpu.memory_space<vmem>>, vector<1x1x256xf32>
      %383 = vector.shape_cast %382 : vector<1x1x256xf32> to vector<1x256xf32>
      %384 = arith.mulf %320, %383 : vector<1x256xf32>
      %385 = arith.addf %381, %384 : vector<1x256xf32>
      %386 = arith.mulf %306, %385 : vector<1x256xf32>
      %387 = arith.addf %374, %386 : vector<1x256xf32>
      %c0_187 = arith.constant 0 : index
      %c1_188 = arith.constant 1 : index
      %c32_189 = arith.constant 32 : index
      %388 = vector.load %arg2[%c0_187, %c1_188, %c32_189] : memref<1x3x324xf32, #tpu.memory_space<vmem>>, vector<1x1x256xf32>
      %389 = vector.shape_cast %388 : vector<1x1x256xf32> to vector<1x256xf32>
      %390 = arith.mulf %313, %389 : vector<1x256xf32>
      %c0_190 = arith.constant 0 : index
      %c1_191 = arith.constant 1 : index
      %c33_192 = arith.constant 33 : index
      %391 = vector.load %arg2[%c0_190, %c1_191, %c33_192] : memref<1x3x324xf32, #tpu.memory_space<vmem>>, vector<1x1x256xf32>
      %392 = vector.shape_cast %391 : vector<1x1x256xf32> to vector<1x256xf32>
      %393 = arith.mulf %317, %392 : vector<1x256xf32>
      %394 = arith.addf %390, %393 : vector<1x256xf32>
      %c0_193 = arith.constant 0 : index
      %c1_194 = arith.constant 1 : index
      %c34_195 = arith.constant 34 : index
      %395 = vector.load %arg2[%c0_193, %c1_194, %c34_195] : memref<1x3x324xf32, #tpu.memory_space<vmem>>, vector<1x1x256xf32>
      %396 = vector.shape_cast %395 : vector<1x1x256xf32> to vector<1x256xf32>
      %397 = arith.mulf %320, %396 : vector<1x256xf32>
      %398 = arith.addf %394, %397 : vector<1x256xf32>
      %399 = arith.mulf %308, %398 : vector<1x256xf32>
      %400 = arith.addf %387, %399 : vector<1x256xf32>
      %401 = vector.broadcast %362 : f32 to vector<1x256xf32>
      %402 = arith.mulf %401, %400 : vector<1x256xf32>
      %c18_196 = arith.constant 18 : index
      %403 = memref.load %arg5[%c18_196] : memref<27xf32, #tpu.memory_space<smem>>
      %c0_197 = arith.constant 0 : index
      %c2_198 = arith.constant 2 : index
      %c0_199 = arith.constant 0 : index
      %404 = vector.load %arg2[%c0_197, %c2_198, %c0_199] : memref<1x3x324xf32, #tpu.memory_space<vmem>>, vector<1x1x256xf32>
      %405 = vector.shape_cast %404 : vector<1x1x256xf32> to vector<1x256xf32>
      %406 = arith.mulf %313, %405 : vector<1x256xf32>
      %c0_200 = arith.constant 0 : index
      %c2_201 = arith.constant 2 : index
      %c1_202 = arith.constant 1 : index
      %407 = vector.load %arg2[%c0_200, %c2_201, %c1_202] : memref<1x3x324xf32, #tpu.memory_space<vmem>>, vector<1x1x256xf32>
      %408 = vector.shape_cast %407 : vector<1x1x256xf32> to vector<1x256xf32>
      %409 = arith.mulf %317, %408 : vector<1x256xf32>
      %410 = arith.addf %406, %409 : vector<1x256xf32>
      %c0_203 = arith.constant 0 : index
      %c2_204 = arith.constant 2 : index
      %c2_205 = arith.constant 2 : index
      %411 = vector.load %arg2[%c0_203, %c2_204, %c2_205] : memref<1x3x324xf32, #tpu.memory_space<vmem>>, vector<1x1x256xf32>
      %412 = vector.shape_cast %411 : vector<1x1x256xf32> to vector<1x256xf32>
      %413 = arith.mulf %320, %412 : vector<1x256xf32>
      %414 = arith.addf %410, %413 : vector<1x256xf32>
      %415 = arith.mulf %303, %414 : vector<1x256xf32>
      %c0_206 = arith.constant 0 : index
      %c2_207 = arith.constant 2 : index
      %c16_208 = arith.constant 16 : index
      %416 = vector.load %arg2[%c0_206, %c2_207, %c16_208] : memref<1x3x324xf32, #tpu.memory_space<vmem>>, vector<1x1x256xf32>
      %417 = vector.shape_cast %416 : vector<1x1x256xf32> to vector<1x256xf32>
      %418 = arith.mulf %313, %417 : vector<1x256xf32>
      %c0_209 = arith.constant 0 : index
      %c2_210 = arith.constant 2 : index
      %c17_211 = arith.constant 17 : index
      %419 = vector.load %arg2[%c0_209, %c2_210, %c17_211] : memref<1x3x324xf32, #tpu.memory_space<vmem>>, vector<1x1x256xf32>
      %420 = vector.shape_cast %419 : vector<1x1x256xf32> to vector<1x256xf32>
      %421 = arith.mulf %317, %420 : vector<1x256xf32>
      %422 = arith.addf %418, %421 : vector<1x256xf32>
      %c0_212 = arith.constant 0 : index
      %c2_213 = arith.constant 2 : index
      %c18_214 = arith.constant 18 : index
      %423 = vector.load %arg2[%c0_212, %c2_213, %c18_214] : memref<1x3x324xf32, #tpu.memory_space<vmem>>, vector<1x1x256xf32>
      %424 = vector.shape_cast %423 : vector<1x1x256xf32> to vector<1x256xf32>
      %425 = arith.mulf %320, %424 : vector<1x256xf32>
      %426 = arith.addf %422, %425 : vector<1x256xf32>
      %427 = arith.mulf %306, %426 : vector<1x256xf32>
      %428 = arith.addf %415, %427 : vector<1x256xf32>
      %c0_215 = arith.constant 0 : index
      %c2_216 = arith.constant 2 : index
      %c32_217 = arith.constant 32 : index
      %429 = vector.load %arg2[%c0_215, %c2_216, %c32_217] : memref<1x3x324xf32, #tpu.memory_space<vmem>>, vector<1x1x256xf32>
      %430 = vector.shape_cast %429 : vector<1x1x256xf32> to vector<1x256xf32>
      %431 = arith.mulf %313, %430 : vector<1x256xf32>
      %c0_218 = arith.constant 0 : index
      %c2_219 = arith.constant 2 : index
      %c33_220 = arith.constant 33 : index
      %432 = vector.load %arg2[%c0_218, %c2_219, %c33_220] : memref<1x3x324xf32, #tpu.memory_space<vmem>>, vector<1x1x256xf32>
      %433 = vector.shape_cast %432 : vector<1x1x256xf32> to vector<1x256xf32>
      %434 = arith.mulf %317, %433 : vector<1x256xf32>
      %435 = arith.addf %431, %434 : vector<1x256xf32>
      %c0_221 = arith.constant 0 : index
      %c2_222 = arith.constant 2 : index
      %c34_223 = arith.constant 34 : index
      %436 = vector.load %arg2[%c0_221, %c2_222, %c34_223] : memref<1x3x324xf32, #tpu.memory_space<vmem>>, vector<1x1x256xf32>
      %437 = vector.shape_cast %436 : vector<1x1x256xf32> to vector<1x256xf32>
      %438 = arith.mulf %320, %437 : vector<1x256xf32>
      %439 = arith.addf %435, %438 : vector<1x256xf32>
      %440 = arith.mulf %308, %439 : vector<1x256xf32>
      %441 = arith.addf %428, %440 : vector<1x256xf32>
      %442 = vector.broadcast %403 : f32 to vector<1x256xf32>
      %443 = arith.mulf %442, %441 : vector<1x256xf32>
      %c6_224 = arith.constant 6 : index
      %444 = memref.load %arg4[%c6_224] : memref<54xf32, #tpu.memory_space<smem>>
      %445 = vector.broadcast %444 : f32 to vector<1x256xf32>
      %446 = arith.mulf %445, %157 : vector<1x256xf32>
      %c9_225 = arith.constant 9 : index
      %447 = memref.load %arg4[%c9_225] : memref<54xf32, #tpu.memory_space<smem>>
      %448 = vector.broadcast %447 : f32 to vector<1x256xf32>
      %449 = arith.mulf %448, %157 : vector<1x256xf32>
      %c7_226 = arith.constant 7 : index
      %450 = memref.load %arg4[%c7_226] : memref<54xf32, #tpu.memory_space<smem>>
      %451 = vector.broadcast %450 : f32 to vector<1x256xf32>
      %452 = arith.mulf %451, %213 : vector<1x256xf32>
      %453 = arith.addf %446, %452 : vector<1x256xf32>
      %c10_227 = arith.constant 10 : index
      %454 = memref.load %arg4[%c10_227] : memref<54xf32, #tpu.memory_space<smem>>
      %455 = vector.broadcast %454 : f32 to vector<1x256xf32>
      %456 = arith.mulf %455, %213 : vector<1x256xf32>
      %457 = arith.addf %449, %456 : vector<1x256xf32>
      %c8_228 = arith.constant 8 : index
      %458 = memref.load %arg4[%c8_228] : memref<54xf32, #tpu.memory_space<smem>>
      %459 = vector.broadcast %458 : f32 to vector<1x256xf32>
      %460 = arith.mulf %459, %269 : vector<1x256xf32>
      %461 = arith.addf %453, %460 : vector<1x256xf32>
      %c11_229 = arith.constant 11 : index
      %462 = memref.load %arg4[%c11_229] : memref<54xf32, #tpu.memory_space<smem>>
      %463 = vector.broadcast %462 : f32 to vector<1x256xf32>
      %464 = arith.mulf %463, %269 : vector<1x256xf32>
      %465 = arith.addf %457, %464 : vector<1x256xf32>
      %cst_230 = arith.constant -1.000000e+00 : f32
      %cst_231 = arith.constant 1.000000e+00 : f32
      %466 = vector.broadcast %cst_230 : f32 to vector<1x256xf32>
      %467 = arith.maximumf %466, %461 : vector<1x256xf32>
      %468 = vector.broadcast %cst_231 : f32 to vector<1x256xf32>
      %469 = arith.minimumf %468, %467 : vector<1x256xf32>
      %cst_232 = arith.constant -1.000000e+00 : f32
      %cst_233 = arith.constant 1.000000e+00 : f32
      %470 = vector.broadcast %cst_232 : f32 to vector<1x256xf32>
      %471 = arith.maximumf %470, %465 : vector<1x256xf32>
      %472 = vector.broadcast %cst_233 : f32 to vector<1x256xf32>
      %473 = arith.minimumf %472, %471 : vector<1x256xf32>
      %cst_234 = arith.constant 0.000000e+00 : f32
      %474 = vector.broadcast %cst_234 : f32 to vector<1x256xf32>
      %475 = arith.subf %474, %469 : vector<1x256xf32>
      %cst_235 = arith.constant 0.000000e+00 : f32
      %476 = vector.broadcast %cst_235 : f32 to vector<1x256xf32>
      %477 = arith.maximumf %475, %476 : vector<1x256xf32>
      %478 = math.absf %469 : vector<1x256xf32>
      %cst_236 = arith.constant 1.000000e+00 : f32
      %479 = vector.broadcast %cst_236 : f32 to vector<1x256xf32>
      %480 = arith.subf %479, %478 : vector<1x256xf32>
      %cst_237 = arith.constant 0.000000e+00 : f32
      %481 = vector.broadcast %cst_237 : f32 to vector<1x256xf32>
      %482 = arith.maximumf %469, %481 : vector<1x256xf32>
      %cst_238 = arith.constant 0.000000e+00 : f32
      %483 = vector.broadcast %cst_238 : f32 to vector<1x256xf32>
      %484 = arith.subf %483, %473 : vector<1x256xf32>
      %cst_239 = arith.constant 0.000000e+00 : f32
      %485 = vector.broadcast %cst_239 : f32 to vector<1x256xf32>
      %486 = arith.maximumf %484, %485 : vector<1x256xf32>
      %487 = arith.mulf %486, %71 : vector<1x256xf32>
      %488 = math.absf %473 : vector<1x256xf32>
      %cst_240 = arith.constant 1.000000e+00 : f32
      %489 = vector.broadcast %cst_240 : f32 to vector<1x256xf32>
      %490 = arith.subf %489, %488 : vector<1x256xf32>
      %491 = arith.mulf %490, %81 : vector<1x256xf32>
      %cst_241 = arith.constant 0.000000e+00 : f32
      %492 = vector.broadcast %cst_241 : f32 to vector<1x256xf32>
      %493 = arith.maximumf %473, %492 : vector<1x256xf32>
      %494 = arith.mulf %493, %91 : vector<1x256xf32>
      %c1_242 = arith.constant 1 : index
      %495 = memref.load %arg5[%c1_242] : memref<27xf32, #tpu.memory_space<smem>>
      %c0_243 = arith.constant 0 : index
      %c0_244 = arith.constant 0 : index
      %c1_245 = arith.constant 1 : index
      %496 = vector.load %arg2[%c0_243, %c0_244, %c1_245] : memref<1x3x324xf32, #tpu.memory_space<vmem>>, vector<1x1x256xf32>
      %497 = vector.shape_cast %496 : vector<1x1x256xf32> to vector<1x256xf32>
      %498 = arith.mulf %487, %497 : vector<1x256xf32>
      %c0_246 = arith.constant 0 : index
      %c0_247 = arith.constant 0 : index
      %c2_248 = arith.constant 2 : index
      %499 = vector.load %arg2[%c0_246, %c0_247, %c2_248] : memref<1x3x324xf32, #tpu.memory_space<vmem>>, vector<1x1x256xf32>
      %500 = vector.shape_cast %499 : vector<1x1x256xf32> to vector<1x256xf32>
      %501 = arith.mulf %491, %500 : vector<1x256xf32>
      %502 = arith.addf %498, %501 : vector<1x256xf32>
      %c0_249 = arith.constant 0 : index
      %c0_250 = arith.constant 0 : index
      %c3_251 = arith.constant 3 : index
      %503 = vector.load %arg2[%c0_249, %c0_250, %c3_251] : memref<1x3x324xf32, #tpu.memory_space<vmem>>, vector<1x1x256xf32>
      %504 = vector.shape_cast %503 : vector<1x1x256xf32> to vector<1x256xf32>
      %505 = arith.mulf %494, %504 : vector<1x256xf32>
      %506 = arith.addf %502, %505 : vector<1x256xf32>
      %507 = arith.mulf %477, %506 : vector<1x256xf32>
      %c0_252 = arith.constant 0 : index
      %c0_253 = arith.constant 0 : index
      %c17_254 = arith.constant 17 : index
      %508 = vector.load %arg2[%c0_252, %c0_253, %c17_254] : memref<1x3x324xf32, #tpu.memory_space<vmem>>, vector<1x1x256xf32>
      %509 = vector.shape_cast %508 : vector<1x1x256xf32> to vector<1x256xf32>
      %510 = arith.mulf %487, %509 : vector<1x256xf32>
      %c0_255 = arith.constant 0 : index
      %c0_256 = arith.constant 0 : index
      %c18_257 = arith.constant 18 : index
      %511 = vector.load %arg2[%c0_255, %c0_256, %c18_257] : memref<1x3x324xf32, #tpu.memory_space<vmem>>, vector<1x1x256xf32>
      %512 = vector.shape_cast %511 : vector<1x1x256xf32> to vector<1x256xf32>
      %513 = arith.mulf %491, %512 : vector<1x256xf32>
      %514 = arith.addf %510, %513 : vector<1x256xf32>
      %c0_258 = arith.constant 0 : index
      %c0_259 = arith.constant 0 : index
      %c19_260 = arith.constant 19 : index
      %515 = vector.load %arg2[%c0_258, %c0_259, %c19_260] : memref<1x3x324xf32, #tpu.memory_space<vmem>>, vector<1x1x256xf32>
      %516 = vector.shape_cast %515 : vector<1x1x256xf32> to vector<1x256xf32>
      %517 = arith.mulf %494, %516 : vector<1x256xf32>
      %518 = arith.addf %514, %517 : vector<1x256xf32>
      %519 = arith.mulf %480, %518 : vector<1x256xf32>
      %520 = arith.addf %507, %519 : vector<1x256xf32>
      %c0_261 = arith.constant 0 : index
      %c0_262 = arith.constant 0 : index
      %c33_263 = arith.constant 33 : index
      %521 = vector.load %arg2[%c0_261, %c0_262, %c33_263] : memref<1x3x324xf32, #tpu.memory_space<vmem>>, vector<1x1x256xf32>
      %522 = vector.shape_cast %521 : vector<1x1x256xf32> to vector<1x256xf32>
      %523 = arith.mulf %487, %522 : vector<1x256xf32>
      %c0_264 = arith.constant 0 : index
      %c0_265 = arith.constant 0 : index
      %c34_266 = arith.constant 34 : index
      %524 = vector.load %arg2[%c0_264, %c0_265, %c34_266] : memref<1x3x324xf32, #tpu.memory_space<vmem>>, vector<1x1x256xf32>
      %525 = vector.shape_cast %524 : vector<1x1x256xf32> to vector<1x256xf32>
      %526 = arith.mulf %491, %525 : vector<1x256xf32>
      %527 = arith.addf %523, %526 : vector<1x256xf32>
      %c0_267 = arith.constant 0 : index
      %c0_268 = arith.constant 0 : index
      %c35_269 = arith.constant 35 : index
      %528 = vector.load %arg2[%c0_267, %c0_268, %c35_269] : memref<1x3x324xf32, #tpu.memory_space<vmem>>, vector<1x1x256xf32>
      %529 = vector.shape_cast %528 : vector<1x1x256xf32> to vector<1x256xf32>
      %530 = arith.mulf %494, %529 : vector<1x256xf32>
      %531 = arith.addf %527, %530 : vector<1x256xf32>
      %532 = arith.mulf %482, %531 : vector<1x256xf32>
      %533 = arith.addf %520, %532 : vector<1x256xf32>
      %534 = vector.broadcast %495 : f32 to vector<1x256xf32>
      %535 = arith.mulf %534, %533 : vector<1x256xf32>
      %536 = arith.addf %361, %535 : vector<1x256xf32>
      %c10_270 = arith.constant 10 : index
      %537 = memref.load %arg5[%c10_270] : memref<27xf32, #tpu.memory_space<smem>>
      %c0_271 = arith.constant 0 : index
      %c1_272 = arith.constant 1 : index
      %c1_273 = arith.constant 1 : index
      %538 = vector.load %arg2[%c0_271, %c1_272, %c1_273] : memref<1x3x324xf32, #tpu.memory_space<vmem>>, vector<1x1x256xf32>
      %539 = vector.shape_cast %538 : vector<1x1x256xf32> to vector<1x256xf32>
      %540 = arith.mulf %487, %539 : vector<1x256xf32>
      %c0_274 = arith.constant 0 : index
      %c1_275 = arith.constant 1 : index
      %c2_276 = arith.constant 2 : index
      %541 = vector.load %arg2[%c0_274, %c1_275, %c2_276] : memref<1x3x324xf32, #tpu.memory_space<vmem>>, vector<1x1x256xf32>
      %542 = vector.shape_cast %541 : vector<1x1x256xf32> to vector<1x256xf32>
      %543 = arith.mulf %491, %542 : vector<1x256xf32>
      %544 = arith.addf %540, %543 : vector<1x256xf32>
      %c0_277 = arith.constant 0 : index
      %c1_278 = arith.constant 1 : index
      %c3_279 = arith.constant 3 : index
      %545 = vector.load %arg2[%c0_277, %c1_278, %c3_279] : memref<1x3x324xf32, #tpu.memory_space<vmem>>, vector<1x1x256xf32>
      %546 = vector.shape_cast %545 : vector<1x1x256xf32> to vector<1x256xf32>
      %547 = arith.mulf %494, %546 : vector<1x256xf32>
      %548 = arith.addf %544, %547 : vector<1x256xf32>
      %549 = arith.mulf %477, %548 : vector<1x256xf32>
      %c0_280 = arith.constant 0 : index
      %c1_281 = arith.constant 1 : index
      %c17_282 = arith.constant 17 : index
      %550 = vector.load %arg2[%c0_280, %c1_281, %c17_282] : memref<1x3x324xf32, #tpu.memory_space<vmem>>, vector<1x1x256xf32>
      %551 = vector.shape_cast %550 : vector<1x1x256xf32> to vector<1x256xf32>
      %552 = arith.mulf %487, %551 : vector<1x256xf32>
      %c0_283 = arith.constant 0 : index
      %c1_284 = arith.constant 1 : index
      %c18_285 = arith.constant 18 : index
      %553 = vector.load %arg2[%c0_283, %c1_284, %c18_285] : memref<1x3x324xf32, #tpu.memory_space<vmem>>, vector<1x1x256xf32>
      %554 = vector.shape_cast %553 : vector<1x1x256xf32> to vector<1x256xf32>
      %555 = arith.mulf %491, %554 : vector<1x256xf32>
      %556 = arith.addf %552, %555 : vector<1x256xf32>
      %c0_286 = arith.constant 0 : index
      %c1_287 = arith.constant 1 : index
      %c19_288 = arith.constant 19 : index
      %557 = vector.load %arg2[%c0_286, %c1_287, %c19_288] : memref<1x3x324xf32, #tpu.memory_space<vmem>>, vector<1x1x256xf32>
      %558 = vector.shape_cast %557 : vector<1x1x256xf32> to vector<1x256xf32>
      %559 = arith.mulf %494, %558 : vector<1x256xf32>
      %560 = arith.addf %556, %559 : vector<1x256xf32>
      %561 = arith.mulf %480, %560 : vector<1x256xf32>
      %562 = arith.addf %549, %561 : vector<1x256xf32>
      %c0_289 = arith.constant 0 : index
      %c1_290 = arith.constant 1 : index
      %c33_291 = arith.constant 33 : index
      %563 = vector.load %arg2[%c0_289, %c1_290, %c33_291] : memref<1x3x324xf32, #tpu.memory_space<vmem>>, vector<1x1x256xf32>
      %564 = vector.shape_cast %563 : vector<1x1x256xf32> to vector<1x256xf32>
      %565 = arith.mulf %487, %564 : vector<1x256xf32>
      %c0_292 = arith.constant 0 : index
      %c1_293 = arith.constant 1 : index
      %c34_294 = arith.constant 34 : index
      %566 = vector.load %arg2[%c0_292, %c1_293, %c34_294] : memref<1x3x324xf32, #tpu.memory_space<vmem>>, vector<1x1x256xf32>
      %567 = vector.shape_cast %566 : vector<1x1x256xf32> to vector<1x256xf32>
      %568 = arith.mulf %491, %567 : vector<1x256xf32>
      %569 = arith.addf %565, %568 : vector<1x256xf32>
      %c0_295 = arith.constant 0 : index
      %c1_296 = arith.constant 1 : index
      %c35_297 = arith.constant 35 : index
      %570 = vector.load %arg2[%c0_295, %c1_296, %c35_297] : memref<1x3x324xf32, #tpu.memory_space<vmem>>, vector<1x1x256xf32>
      %571 = vector.shape_cast %570 : vector<1x1x256xf32> to vector<1x256xf32>
      %572 = arith.mulf %494, %571 : vector<1x256xf32>
      %573 = arith.addf %569, %572 : vector<1x256xf32>
      %574 = arith.mulf %482, %573 : vector<1x256xf32>
      %575 = arith.addf %562, %574 : vector<1x256xf32>
      %576 = vector.broadcast %537 : f32 to vector<1x256xf32>
      %577 = arith.mulf %576, %575 : vector<1x256xf32>
      %578 = arith.addf %402, %577 : vector<1x256xf32>
      %c19_298 = arith.constant 19 : index
      %579 = memref.load %arg5[%c19_298] : memref<27xf32, #tpu.memory_space<smem>>
      %c0_299 = arith.constant 0 : index
      %c2_300 = arith.constant 2 : index
      %c1_301 = arith.constant 1 : index
      %580 = vector.load %arg2[%c0_299, %c2_300, %c1_301] : memref<1x3x324xf32, #tpu.memory_space<vmem>>, vector<1x1x256xf32>
      %581 = vector.shape_cast %580 : vector<1x1x256xf32> to vector<1x256xf32>
      %582 = arith.mulf %487, %581 : vector<1x256xf32>
      %c0_302 = arith.constant 0 : index
      %c2_303 = arith.constant 2 : index
      %c2_304 = arith.constant 2 : index
      %583 = vector.load %arg2[%c0_302, %c2_303, %c2_304] : memref<1x3x324xf32, #tpu.memory_space<vmem>>, vector<1x1x256xf32>
      %584 = vector.shape_cast %583 : vector<1x1x256xf32> to vector<1x256xf32>
      %585 = arith.mulf %491, %584 : vector<1x256xf32>
      %586 = arith.addf %582, %585 : vector<1x256xf32>
      %c0_305 = arith.constant 0 : index
      %c2_306 = arith.constant 2 : index
      %c3_307 = arith.constant 3 : index
      %587 = vector.load %arg2[%c0_305, %c2_306, %c3_307] : memref<1x3x324xf32, #tpu.memory_space<vmem>>, vector<1x1x256xf32>
      %588 = vector.shape_cast %587 : vector<1x1x256xf32> to vector<1x256xf32>
      %589 = arith.mulf %494, %588 : vector<1x256xf32>
      %590 = arith.addf %586, %589 : vector<1x256xf32>
      %591 = arith.mulf %477, %590 : vector<1x256xf32>
      %c0_308 = arith.constant 0 : index
      %c2_309 = arith.constant 2 : index
      %c17_310 = arith.constant 17 : index
      %592 = vector.load %arg2[%c0_308, %c2_309, %c17_310] : memref<1x3x324xf32, #tpu.memory_space<vmem>>, vector<1x1x256xf32>
      %593 = vector.shape_cast %592 : vector<1x1x256xf32> to vector<1x256xf32>
      %594 = arith.mulf %487, %593 : vector<1x256xf32>
      %c0_311 = arith.constant 0 : index
      %c2_312 = arith.constant 2 : index
      %c18_313 = arith.constant 18 : index
      %595 = vector.load %arg2[%c0_311, %c2_312, %c18_313] : memref<1x3x324xf32, #tpu.memory_space<vmem>>, vector<1x1x256xf32>
      %596 = vector.shape_cast %595 : vector<1x1x256xf32> to vector<1x256xf32>
      %597 = arith.mulf %491, %596 : vector<1x256xf32>
      %598 = arith.addf %594, %597 : vector<1x256xf32>
      %c0_314 = arith.constant 0 : index
      %c2_315 = arith.constant 2 : index
      %c19_316 = arith.constant 19 : index
      %599 = vector.load %arg2[%c0_314, %c2_315, %c19_316] : memref<1x3x324xf32, #tpu.memory_space<vmem>>, vector<1x1x256xf32>
      %600 = vector.shape_cast %599 : vector<1x1x256xf32> to vector<1x256xf32>
      %601 = arith.mulf %494, %600 : vector<1x256xf32>
      %602 = arith.addf %598, %601 : vector<1x256xf32>
      %603 = arith.mulf %480, %602 : vector<1x256xf32>
      %604 = arith.addf %591, %603 : vector<1x256xf32>
      %c0_317 = arith.constant 0 : index
      %c2_318 = arith.constant 2 : index
      %c33_319 = arith.constant 33 : index
      %605 = vector.load %arg2[%c0_317, %c2_318, %c33_319] : memref<1x3x324xf32, #tpu.memory_space<vmem>>, vector<1x1x256xf32>
      %606 = vector.shape_cast %605 : vector<1x1x256xf32> to vector<1x256xf32>
      %607 = arith.mulf %487, %606 : vector<1x256xf32>
      %c0_320 = arith.constant 0 : index
      %c2_321 = arith.constant 2 : index
      %c34_322 = arith.constant 34 : index
      %608 = vector.load %arg2[%c0_320, %c2_321, %c34_322] : memref<1x3x324xf32, #tpu.memory_space<vmem>>, vector<1x1x256xf32>
      %609 = vector.shape_cast %608 : vector<1x1x256xf32> to vector<1x256xf32>
      %610 = arith.mulf %491, %609 : vector<1x256xf32>
      %611 = arith.addf %607, %610 : vector<1x256xf32>
      %c0_323 = arith.constant 0 : index
      %c2_324 = arith.constant 2 : index
      %c35_325 = arith.constant 35 : index
      %612 = vector.load %arg2[%c0_323, %c2_324, %c35_325] : memref<1x3x324xf32, #tpu.memory_space<vmem>>, vector<1x1x256xf32>
      %613 = vector.shape_cast %612 : vector<1x1x256xf32> to vector<1x256xf32>
      %614 = arith.mulf %494, %613 : vector<1x256xf32>
      %615 = arith.addf %611, %614 : vector<1x256xf32>
      %616 = arith.mulf %482, %615 : vector<1x256xf32>
      %617 = arith.addf %604, %616 : vector<1x256xf32>
      %618 = vector.broadcast %579 : f32 to vector<1x256xf32>
      %619 = arith.mulf %618, %617 : vector<1x256xf32>
      %620 = arith.addf %443, %619 : vector<1x256xf32>
      %c12_326 = arith.constant 12 : index
      %621 = memref.load %arg4[%c12_326] : memref<54xf32, #tpu.memory_space<smem>>
      %622 = vector.broadcast %621 : f32 to vector<1x256xf32>
      %623 = arith.mulf %622, %157 : vector<1x256xf32>
      %c15_327 = arith.constant 15 : index
      %624 = memref.load %arg4[%c15_327] : memref<54xf32, #tpu.memory_space<smem>>
      %625 = vector.broadcast %624 : f32 to vector<1x256xf32>
      %626 = arith.mulf %625, %157 : vector<1x256xf32>
      %c13_328 = arith.constant 13 : index
      %627 = memref.load %arg4[%c13_328] : memref<54xf32, #tpu.memory_space<smem>>
      %628 = vector.broadcast %627 : f32 to vector<1x256xf32>
      %629 = arith.mulf %628, %213 : vector<1x256xf32>
      %630 = arith.addf %623, %629 : vector<1x256xf32>
      %c16_329 = arith.constant 16 : index
      %631 = memref.load %arg4[%c16_329] : memref<54xf32, #tpu.memory_space<smem>>
      %632 = vector.broadcast %631 : f32 to vector<1x256xf32>
      %633 = arith.mulf %632, %213 : vector<1x256xf32>
      %634 = arith.addf %626, %633 : vector<1x256xf32>
      %c14_330 = arith.constant 14 : index
      %635 = memref.load %arg4[%c14_330] : memref<54xf32, #tpu.memory_space<smem>>
      %636 = vector.broadcast %635 : f32 to vector<1x256xf32>
      %637 = arith.mulf %636, %269 : vector<1x256xf32>
      %638 = arith.addf %630, %637 : vector<1x256xf32>
      %c17_331 = arith.constant 17 : index
      %639 = memref.load %arg4[%c17_331] : memref<54xf32, #tpu.memory_space<smem>>
      %640 = vector.broadcast %639 : f32 to vector<1x256xf32>
      %641 = arith.mulf %640, %269 : vector<1x256xf32>
      %642 = arith.addf %634, %641 : vector<1x256xf32>
      %cst_332 = arith.constant -1.000000e+00 : f32
      %cst_333 = arith.constant 1.000000e+00 : f32
      %643 = vector.broadcast %cst_332 : f32 to vector<1x256xf32>
      %644 = arith.maximumf %643, %638 : vector<1x256xf32>
      %645 = vector.broadcast %cst_333 : f32 to vector<1x256xf32>
      %646 = arith.minimumf %645, %644 : vector<1x256xf32>
      %cst_334 = arith.constant -1.000000e+00 : f32
      %cst_335 = arith.constant 1.000000e+00 : f32
      %647 = vector.broadcast %cst_334 : f32 to vector<1x256xf32>
      %648 = arith.maximumf %647, %642 : vector<1x256xf32>
      %649 = vector.broadcast %cst_335 : f32 to vector<1x256xf32>
      %650 = arith.minimumf %649, %648 : vector<1x256xf32>
      %cst_336 = arith.constant 0.000000e+00 : f32
      %651 = vector.broadcast %cst_336 : f32 to vector<1x256xf32>
      %652 = arith.subf %651, %646 : vector<1x256xf32>
      %cst_337 = arith.constant 0.000000e+00 : f32
      %653 = vector.broadcast %cst_337 : f32 to vector<1x256xf32>
      %654 = arith.maximumf %652, %653 : vector<1x256xf32>
      %655 = math.absf %646 : vector<1x256xf32>
      %cst_338 = arith.constant 1.000000e+00 : f32
      %656 = vector.broadcast %cst_338 : f32 to vector<1x256xf32>
      %657 = arith.subf %656, %655 : vector<1x256xf32>
      %cst_339 = arith.constant 0.000000e+00 : f32
      %658 = vector.broadcast %cst_339 : f32 to vector<1x256xf32>
      %659 = arith.maximumf %646, %658 : vector<1x256xf32>
      %cst_340 = arith.constant 0.000000e+00 : f32
      %660 = vector.broadcast %cst_340 : f32 to vector<1x256xf32>
      %661 = arith.subf %660, %650 : vector<1x256xf32>
      %cst_341 = arith.constant 0.000000e+00 : f32
      %662 = vector.broadcast %cst_341 : f32 to vector<1x256xf32>
      %663 = arith.maximumf %661, %662 : vector<1x256xf32>
      %664 = arith.mulf %663, %81 : vector<1x256xf32>
      %665 = math.absf %650 : vector<1x256xf32>
      %cst_342 = arith.constant 1.000000e+00 : f32
      %666 = vector.broadcast %cst_342 : f32 to vector<1x256xf32>
      %667 = arith.subf %666, %665 : vector<1x256xf32>
      %668 = arith.mulf %667, %91 : vector<1x256xf32>
      %cst_343 = arith.constant 0.000000e+00 : f32
      %669 = vector.broadcast %cst_343 : f32 to vector<1x256xf32>
      %670 = arith.maximumf %650, %669 : vector<1x256xf32>
      %671 = arith.mulf %670, %101 : vector<1x256xf32>
      %c2_344 = arith.constant 2 : index
      %672 = memref.load %arg5[%c2_344] : memref<27xf32, #tpu.memory_space<smem>>
      %c0_345 = arith.constant 0 : index
      %c0_346 = arith.constant 0 : index
      %c2_347 = arith.constant 2 : index
      %673 = vector.load %arg2[%c0_345, %c0_346, %c2_347] : memref<1x3x324xf32, #tpu.memory_space<vmem>>, vector<1x1x256xf32>
      %674 = vector.shape_cast %673 : vector<1x1x256xf32> to vector<1x256xf32>
      %675 = arith.mulf %664, %674 : vector<1x256xf32>
      %c0_348 = arith.constant 0 : index
      %c0_349 = arith.constant 0 : index
      %c3_350 = arith.constant 3 : index
      %676 = vector.load %arg2[%c0_348, %c0_349, %c3_350] : memref<1x3x324xf32, #tpu.memory_space<vmem>>, vector<1x1x256xf32>
      %677 = vector.shape_cast %676 : vector<1x1x256xf32> to vector<1x256xf32>
      %678 = arith.mulf %668, %677 : vector<1x256xf32>
      %679 = arith.addf %675, %678 : vector<1x256xf32>
      %c0_351 = arith.constant 0 : index
      %c0_352 = arith.constant 0 : index
      %c4_353 = arith.constant 4 : index
      %680 = vector.load %arg2[%c0_351, %c0_352, %c4_353] : memref<1x3x324xf32, #tpu.memory_space<vmem>>, vector<1x1x256xf32>
      %681 = vector.shape_cast %680 : vector<1x1x256xf32> to vector<1x256xf32>
      %682 = arith.mulf %671, %681 : vector<1x256xf32>
      %683 = arith.addf %679, %682 : vector<1x256xf32>
      %684 = arith.mulf %654, %683 : vector<1x256xf32>
      %c0_354 = arith.constant 0 : index
      %c0_355 = arith.constant 0 : index
      %c18_356 = arith.constant 18 : index
      %685 = vector.load %arg2[%c0_354, %c0_355, %c18_356] : memref<1x3x324xf32, #tpu.memory_space<vmem>>, vector<1x1x256xf32>
      %686 = vector.shape_cast %685 : vector<1x1x256xf32> to vector<1x256xf32>
      %687 = arith.mulf %664, %686 : vector<1x256xf32>
      %c0_357 = arith.constant 0 : index
      %c0_358 = arith.constant 0 : index
      %c19_359 = arith.constant 19 : index
      %688 = vector.load %arg2[%c0_357, %c0_358, %c19_359] : memref<1x3x324xf32, #tpu.memory_space<vmem>>, vector<1x1x256xf32>
      %689 = vector.shape_cast %688 : vector<1x1x256xf32> to vector<1x256xf32>
      %690 = arith.mulf %668, %689 : vector<1x256xf32>
      %691 = arith.addf %687, %690 : vector<1x256xf32>
      %c0_360 = arith.constant 0 : index
      %c0_361 = arith.constant 0 : index
      %c20_362 = arith.constant 20 : index
      %692 = vector.load %arg2[%c0_360, %c0_361, %c20_362] : memref<1x3x324xf32, #tpu.memory_space<vmem>>, vector<1x1x256xf32>
      %693 = vector.shape_cast %692 : vector<1x1x256xf32> to vector<1x256xf32>
      %694 = arith.mulf %671, %693 : vector<1x256xf32>
      %695 = arith.addf %691, %694 : vector<1x256xf32>
      %696 = arith.mulf %657, %695 : vector<1x256xf32>
      %697 = arith.addf %684, %696 : vector<1x256xf32>
      %c0_363 = arith.constant 0 : index
      %c0_364 = arith.constant 0 : index
      %c34_365 = arith.constant 34 : index
      %698 = vector.load %arg2[%c0_363, %c0_364, %c34_365] : memref<1x3x324xf32, #tpu.memory_space<vmem>>, vector<1x1x256xf32>
      %699 = vector.shape_cast %698 : vector<1x1x256xf32> to vector<1x256xf32>
      %700 = arith.mulf %664, %699 : vector<1x256xf32>
      %c0_366 = arith.constant 0 : index
      %c0_367 = arith.constant 0 : index
      %c35_368 = arith.constant 35 : index
      %701 = vector.load %arg2[%c0_366, %c0_367, %c35_368] : memref<1x3x324xf32, #tpu.memory_space<vmem>>, vector<1x1x256xf32>
      %702 = vector.shape_cast %701 : vector<1x1x256xf32> to vector<1x256xf32>
      %703 = arith.mulf %668, %702 : vector<1x256xf32>
      %704 = arith.addf %700, %703 : vector<1x256xf32>
      %c0_369 = arith.constant 0 : index
      %c0_370 = arith.constant 0 : index
      %c36 = arith.constant 36 : index
      %705 = vector.load %arg2[%c0_369, %c0_370, %c36] : memref<1x3x324xf32, #tpu.memory_space<vmem>>, vector<1x1x256xf32>
      %706 = vector.shape_cast %705 : vector<1x1x256xf32> to vector<1x256xf32>
      %707 = arith.mulf %671, %706 : vector<1x256xf32>
      %708 = arith.addf %704, %707 : vector<1x256xf32>
      %709 = arith.mulf %659, %708 : vector<1x256xf32>
      %710 = arith.addf %697, %709 : vector<1x256xf32>
      %711 = vector.broadcast %672 : f32 to vector<1x256xf32>
      %712 = arith.mulf %711, %710 : vector<1x256xf32>
      %713 = arith.addf %536, %712 : vector<1x256xf32>
      %c11_371 = arith.constant 11 : index
      %714 = memref.load %arg5[%c11_371] : memref<27xf32, #tpu.memory_space<smem>>
      %c0_372 = arith.constant 0 : index
      %c1_373 = arith.constant 1 : index
      %c2_374 = arith.constant 2 : index
      %715 = vector.load %arg2[%c0_372, %c1_373, %c2_374] : memref<1x3x324xf32, #tpu.memory_space<vmem>>, vector<1x1x256xf32>
      %716 = vector.shape_cast %715 : vector<1x1x256xf32> to vector<1x256xf32>
      %717 = arith.mulf %664, %716 : vector<1x256xf32>
      %c0_375 = arith.constant 0 : index
      %c1_376 = arith.constant 1 : index
      %c3_377 = arith.constant 3 : index
      %718 = vector.load %arg2[%c0_375, %c1_376, %c3_377] : memref<1x3x324xf32, #tpu.memory_space<vmem>>, vector<1x1x256xf32>
      %719 = vector.shape_cast %718 : vector<1x1x256xf32> to vector<1x256xf32>
      %720 = arith.mulf %668, %719 : vector<1x256xf32>
      %721 = arith.addf %717, %720 : vector<1x256xf32>
      %c0_378 = arith.constant 0 : index
      %c1_379 = arith.constant 1 : index
      %c4_380 = arith.constant 4 : index
      %722 = vector.load %arg2[%c0_378, %c1_379, %c4_380] : memref<1x3x324xf32, #tpu.memory_space<vmem>>, vector<1x1x256xf32>
      %723 = vector.shape_cast %722 : vector<1x1x256xf32> to vector<1x256xf32>
      %724 = arith.mulf %671, %723 : vector<1x256xf32>
      %725 = arith.addf %721, %724 : vector<1x256xf32>
      %726 = arith.mulf %654, %725 : vector<1x256xf32>
      %c0_381 = arith.constant 0 : index
      %c1_382 = arith.constant 1 : index
      %c18_383 = arith.constant 18 : index
      %727 = vector.load %arg2[%c0_381, %c1_382, %c18_383] : memref<1x3x324xf32, #tpu.memory_space<vmem>>, vector<1x1x256xf32>
      %728 = vector.shape_cast %727 : vector<1x1x256xf32> to vector<1x256xf32>
      %729 = arith.mulf %664, %728 : vector<1x256xf32>
      %c0_384 = arith.constant 0 : index
      %c1_385 = arith.constant 1 : index
      %c19_386 = arith.constant 19 : index
      %730 = vector.load %arg2[%c0_384, %c1_385, %c19_386] : memref<1x3x324xf32, #tpu.memory_space<vmem>>, vector<1x1x256xf32>
      %731 = vector.shape_cast %730 : vector<1x1x256xf32> to vector<1x256xf32>
      %732 = arith.mulf %668, %731 : vector<1x256xf32>
      %733 = arith.addf %729, %732 : vector<1x256xf32>
      %c0_387 = arith.constant 0 : index
      %c1_388 = arith.constant 1 : index
      %c20_389 = arith.constant 20 : index
      %734 = vector.load %arg2[%c0_387, %c1_388, %c20_389] : memref<1x3x324xf32, #tpu.memory_space<vmem>>, vector<1x1x256xf32>
      %735 = vector.shape_cast %734 : vector<1x1x256xf32> to vector<1x256xf32>
      %736 = arith.mulf %671, %735 : vector<1x256xf32>
      %737 = arith.addf %733, %736 : vector<1x256xf32>
      %738 = arith.mulf %657, %737 : vector<1x256xf32>
      %739 = arith.addf %726, %738 : vector<1x256xf32>
      %c0_390 = arith.constant 0 : index
      %c1_391 = arith.constant 1 : index
      %c34_392 = arith.constant 34 : index
      %740 = vector.load %arg2[%c0_390, %c1_391, %c34_392] : memref<1x3x324xf32, #tpu.memory_space<vmem>>, vector<1x1x256xf32>
      %741 = vector.shape_cast %740 : vector<1x1x256xf32> to vector<1x256xf32>
      %742 = arith.mulf %664, %741 : vector<1x256xf32>
      %c0_393 = arith.constant 0 : index
      %c1_394 = arith.constant 1 : index
      %c35_395 = arith.constant 35 : index
      %743 = vector.load %arg2[%c0_393, %c1_394, %c35_395] : memref<1x3x324xf32, #tpu.memory_space<vmem>>, vector<1x1x256xf32>
      %744 = vector.shape_cast %743 : vector<1x1x256xf32> to vector<1x256xf32>
      %745 = arith.mulf %668, %744 : vector<1x256xf32>
      %746 = arith.addf %742, %745 : vector<1x256xf32>
      %c0_396 = arith.constant 0 : index
      %c1_397 = arith.constant 1 : index
      %c36_398 = arith.constant 36 : index
      %747 = vector.load %arg2[%c0_396, %c1_397, %c36_398] : memref<1x3x324xf32, #tpu.memory_space<vmem>>, vector<1x1x256xf32>
      %748 = vector.shape_cast %747 : vector<1x1x256xf32> to vector<1x256xf32>
      %749 = arith.mulf %671, %748 : vector<1x256xf32>
      %750 = arith.addf %746, %749 : vector<1x256xf32>
      %751 = arith.mulf %659, %750 : vector<1x256xf32>
      %752 = arith.addf %739, %751 : vector<1x256xf32>
      %753 = vector.broadcast %714 : f32 to vector<1x256xf32>
      %754 = arith.mulf %753, %752 : vector<1x256xf32>
      %755 = arith.addf %578, %754 : vector<1x256xf32>
      %c20_399 = arith.constant 20 : index
      %756 = memref.load %arg5[%c20_399] : memref<27xf32, #tpu.memory_space<smem>>
      %c0_400 = arith.constant 0 : index
      %c2_401 = arith.constant 2 : index
      %c2_402 = arith.constant 2 : index
      %757 = vector.load %arg2[%c0_400, %c2_401, %c2_402] : memref<1x3x324xf32, #tpu.memory_space<vmem>>, vector<1x1x256xf32>
      %758 = vector.shape_cast %757 : vector<1x1x256xf32> to vector<1x256xf32>
      %759 = arith.mulf %664, %758 : vector<1x256xf32>
      %c0_403 = arith.constant 0 : index
      %c2_404 = arith.constant 2 : index
      %c3_405 = arith.constant 3 : index
      %760 = vector.load %arg2[%c0_403, %c2_404, %c3_405] : memref<1x3x324xf32, #tpu.memory_space<vmem>>, vector<1x1x256xf32>
      %761 = vector.shape_cast %760 : vector<1x1x256xf32> to vector<1x256xf32>
      %762 = arith.mulf %668, %761 : vector<1x256xf32>
      %763 = arith.addf %759, %762 : vector<1x256xf32>
      %c0_406 = arith.constant 0 : index
      %c2_407 = arith.constant 2 : index
      %c4_408 = arith.constant 4 : index
      %764 = vector.load %arg2[%c0_406, %c2_407, %c4_408] : memref<1x3x324xf32, #tpu.memory_space<vmem>>, vector<1x1x256xf32>
      %765 = vector.shape_cast %764 : vector<1x1x256xf32> to vector<1x256xf32>
      %766 = arith.mulf %671, %765 : vector<1x256xf32>
      %767 = arith.addf %763, %766 : vector<1x256xf32>
      %768 = arith.mulf %654, %767 : vector<1x256xf32>
      %c0_409 = arith.constant 0 : index
      %c2_410 = arith.constant 2 : index
      %c18_411 = arith.constant 18 : index
      %769 = vector.load %arg2[%c0_409, %c2_410, %c18_411] : memref<1x3x324xf32, #tpu.memory_space<vmem>>, vector<1x1x256xf32>
      %770 = vector.shape_cast %769 : vector<1x1x256xf32> to vector<1x256xf32>
      %771 = arith.mulf %664, %770 : vector<1x256xf32>
      %c0_412 = arith.constant 0 : index
      %c2_413 = arith.constant 2 : index
      %c19_414 = arith.constant 19 : index
      %772 = vector.load %arg2[%c0_412, %c2_413, %c19_414] : memref<1x3x324xf32, #tpu.memory_space<vmem>>, vector<1x1x256xf32>
      %773 = vector.shape_cast %772 : vector<1x1x256xf32> to vector<1x256xf32>
      %774 = arith.mulf %668, %773 : vector<1x256xf32>
      %775 = arith.addf %771, %774 : vector<1x256xf32>
      %c0_415 = arith.constant 0 : index
      %c2_416 = arith.constant 2 : index
      %c20_417 = arith.constant 20 : index
      %776 = vector.load %arg2[%c0_415, %c2_416, %c20_417] : memref<1x3x324xf32, #tpu.memory_space<vmem>>, vector<1x1x256xf32>
      %777 = vector.shape_cast %776 : vector<1x1x256xf32> to vector<1x256xf32>
      %778 = arith.mulf %671, %777 : vector<1x256xf32>
      %779 = arith.addf %775, %778 : vector<1x256xf32>
      %780 = arith.mulf %657, %779 : vector<1x256xf32>
      %781 = arith.addf %768, %780 : vector<1x256xf32>
      %c0_418 = arith.constant 0 : index
      %c2_419 = arith.constant 2 : index
      %c34_420 = arith.constant 34 : index
      %782 = vector.load %arg2[%c0_418, %c2_419, %c34_420] : memref<1x3x324xf32, #tpu.memory_space<vmem>>, vector<1x1x256xf32>
      %783 = vector.shape_cast %782 : vector<1x1x256xf32> to vector<1x256xf32>
      %784 = arith.mulf %664, %783 : vector<1x256xf32>
      %c0_421 = arith.constant 0 : index
      %c2_422 = arith.constant 2 : index
      %c35_423 = arith.constant 35 : index
      %785 = vector.load %arg2[%c0_421, %c2_422, %c35_423] : memref<1x3x324xf32, #tpu.memory_space<vmem>>, vector<1x1x256xf32>
      %786 = vector.shape_cast %785 : vector<1x1x256xf32> to vector<1x256xf32>
      %787 = arith.mulf %668, %786 : vector<1x256xf32>
      %788 = arith.addf %784, %787 : vector<1x256xf32>
      %c0_424 = arith.constant 0 : index
      %c2_425 = arith.constant 2 : index
      %c36_426 = arith.constant 36 : index
      %789 = vector.load %arg2[%c0_424, %c2_425, %c36_426] : memref<1x3x324xf32, #tpu.memory_space<vmem>>, vector<1x1x256xf32>
      %790 = vector.shape_cast %789 : vector<1x1x256xf32> to vector<1x256xf32>
      %791 = arith.mulf %671, %790 : vector<1x256xf32>
      %792 = arith.addf %788, %791 : vector<1x256xf32>
      %793 = arith.mulf %659, %792 : vector<1x256xf32>
      %794 = arith.addf %781, %793 : vector<1x256xf32>
      %795 = vector.broadcast %756 : f32 to vector<1x256xf32>
      %796 = arith.mulf %795, %794 : vector<1x256xf32>
      %797 = arith.addf %620, %796 : vector<1x256xf32>
      %c18_427 = arith.constant 18 : index
      %798 = memref.load %arg4[%c18_427] : memref<54xf32, #tpu.memory_space<smem>>
      %799 = vector.broadcast %798 : f32 to vector<1x256xf32>
      %800 = arith.mulf %799, %157 : vector<1x256xf32>
      %c21_428 = arith.constant 21 : index
      %801 = memref.load %arg4[%c21_428] : memref<54xf32, #tpu.memory_space<smem>>
      %802 = vector.broadcast %801 : f32 to vector<1x256xf32>
      %803 = arith.mulf %802, %157 : vector<1x256xf32>
      %c19_429 = arith.constant 19 : index
      %804 = memref.load %arg4[%c19_429] : memref<54xf32, #tpu.memory_space<smem>>
      %805 = vector.broadcast %804 : f32 to vector<1x256xf32>
      %806 = arith.mulf %805, %213 : vector<1x256xf32>
      %807 = arith.addf %800, %806 : vector<1x256xf32>
      %c22_430 = arith.constant 22 : index
      %808 = memref.load %arg4[%c22_430] : memref<54xf32, #tpu.memory_space<smem>>
      %809 = vector.broadcast %808 : f32 to vector<1x256xf32>
      %810 = arith.mulf %809, %213 : vector<1x256xf32>
      %811 = arith.addf %803, %810 : vector<1x256xf32>
      %c20_431 = arith.constant 20 : index
      %812 = memref.load %arg4[%c20_431] : memref<54xf32, #tpu.memory_space<smem>>
      %813 = vector.broadcast %812 : f32 to vector<1x256xf32>
      %814 = arith.mulf %813, %269 : vector<1x256xf32>
      %815 = arith.addf %807, %814 : vector<1x256xf32>
      %c23_432 = arith.constant 23 : index
      %816 = memref.load %arg4[%c23_432] : memref<54xf32, #tpu.memory_space<smem>>
      %817 = vector.broadcast %816 : f32 to vector<1x256xf32>
      %818 = arith.mulf %817, %269 : vector<1x256xf32>
      %819 = arith.addf %811, %818 : vector<1x256xf32>
      %cst_433 = arith.constant -1.000000e+00 : f32
      %cst_434 = arith.constant 1.000000e+00 : f32
      %820 = vector.broadcast %cst_433 : f32 to vector<1x256xf32>
      %821 = arith.maximumf %820, %815 : vector<1x256xf32>
      %822 = vector.broadcast %cst_434 : f32 to vector<1x256xf32>
      %823 = arith.minimumf %822, %821 : vector<1x256xf32>
      %cst_435 = arith.constant -1.000000e+00 : f32
      %cst_436 = arith.constant 1.000000e+00 : f32
      %824 = vector.broadcast %cst_435 : f32 to vector<1x256xf32>
      %825 = arith.maximumf %824, %819 : vector<1x256xf32>
      %826 = vector.broadcast %cst_436 : f32 to vector<1x256xf32>
      %827 = arith.minimumf %826, %825 : vector<1x256xf32>
      %cst_437 = arith.constant 0.000000e+00 : f32
      %828 = vector.broadcast %cst_437 : f32 to vector<1x256xf32>
      %829 = arith.subf %828, %823 : vector<1x256xf32>
      %cst_438 = arith.constant 0.000000e+00 : f32
      %830 = vector.broadcast %cst_438 : f32 to vector<1x256xf32>
      %831 = arith.maximumf %829, %830 : vector<1x256xf32>
      %832 = math.absf %823 : vector<1x256xf32>
      %cst_439 = arith.constant 1.000000e+00 : f32
      %833 = vector.broadcast %cst_439 : f32 to vector<1x256xf32>
      %834 = arith.subf %833, %832 : vector<1x256xf32>
      %cst_440 = arith.constant 0.000000e+00 : f32
      %835 = vector.broadcast %cst_440 : f32 to vector<1x256xf32>
      %836 = arith.maximumf %823, %835 : vector<1x256xf32>
      %cst_441 = arith.constant 0.000000e+00 : f32
      %837 = vector.broadcast %cst_441 : f32 to vector<1x256xf32>
      %838 = arith.subf %837, %827 : vector<1x256xf32>
      %cst_442 = arith.constant 0.000000e+00 : f32
      %839 = vector.broadcast %cst_442 : f32 to vector<1x256xf32>
      %840 = arith.maximumf %838, %839 : vector<1x256xf32>
      %841 = arith.mulf %840, %61 : vector<1x256xf32>
      %842 = math.absf %827 : vector<1x256xf32>
      %cst_443 = arith.constant 1.000000e+00 : f32
      %843 = vector.broadcast %cst_443 : f32 to vector<1x256xf32>
      %844 = arith.subf %843, %842 : vector<1x256xf32>
      %845 = arith.mulf %844, %71 : vector<1x256xf32>
      %cst_444 = arith.constant 0.000000e+00 : f32
      %846 = vector.broadcast %cst_444 : f32 to vector<1x256xf32>
      %847 = arith.maximumf %827, %846 : vector<1x256xf32>
      %848 = arith.mulf %847, %81 : vector<1x256xf32>
      %c3_445 = arith.constant 3 : index
      %849 = memref.load %arg5[%c3_445] : memref<27xf32, #tpu.memory_space<smem>>
      %c0_446 = arith.constant 0 : index
      %c0_447 = arith.constant 0 : index
      %c16_448 = arith.constant 16 : index
      %850 = vector.load %arg2[%c0_446, %c0_447, %c16_448] : memref<1x3x324xf32, #tpu.memory_space<vmem>>, vector<1x1x256xf32>
      %851 = vector.shape_cast %850 : vector<1x1x256xf32> to vector<1x256xf32>
      %852 = arith.mulf %841, %851 : vector<1x256xf32>
      %c0_449 = arith.constant 0 : index
      %c0_450 = arith.constant 0 : index
      %c17_451 = arith.constant 17 : index
      %853 = vector.load %arg2[%c0_449, %c0_450, %c17_451] : memref<1x3x324xf32, #tpu.memory_space<vmem>>, vector<1x1x256xf32>
      %854 = vector.shape_cast %853 : vector<1x1x256xf32> to vector<1x256xf32>
      %855 = arith.mulf %845, %854 : vector<1x256xf32>
      %856 = arith.addf %852, %855 : vector<1x256xf32>
      %c0_452 = arith.constant 0 : index
      %c0_453 = arith.constant 0 : index
      %c18_454 = arith.constant 18 : index
      %857 = vector.load %arg2[%c0_452, %c0_453, %c18_454] : memref<1x3x324xf32, #tpu.memory_space<vmem>>, vector<1x1x256xf32>
      %858 = vector.shape_cast %857 : vector<1x1x256xf32> to vector<1x256xf32>
      %859 = arith.mulf %848, %858 : vector<1x256xf32>
      %860 = arith.addf %856, %859 : vector<1x256xf32>
      %861 = arith.mulf %831, %860 : vector<1x256xf32>
      %c0_455 = arith.constant 0 : index
      %c0_456 = arith.constant 0 : index
      %c32_457 = arith.constant 32 : index
      %862 = vector.load %arg2[%c0_455, %c0_456, %c32_457] : memref<1x3x324xf32, #tpu.memory_space<vmem>>, vector<1x1x256xf32>
      %863 = vector.shape_cast %862 : vector<1x1x256xf32> to vector<1x256xf32>
      %864 = arith.mulf %841, %863 : vector<1x256xf32>
      %c0_458 = arith.constant 0 : index
      %c0_459 = arith.constant 0 : index
      %c33_460 = arith.constant 33 : index
      %865 = vector.load %arg2[%c0_458, %c0_459, %c33_460] : memref<1x3x324xf32, #tpu.memory_space<vmem>>, vector<1x1x256xf32>
      %866 = vector.shape_cast %865 : vector<1x1x256xf32> to vector<1x256xf32>
      %867 = arith.mulf %845, %866 : vector<1x256xf32>
      %868 = arith.addf %864, %867 : vector<1x256xf32>
      %c0_461 = arith.constant 0 : index
      %c0_462 = arith.constant 0 : index
      %c34_463 = arith.constant 34 : index
      %869 = vector.load %arg2[%c0_461, %c0_462, %c34_463] : memref<1x3x324xf32, #tpu.memory_space<vmem>>, vector<1x1x256xf32>
      %870 = vector.shape_cast %869 : vector<1x1x256xf32> to vector<1x256xf32>
      %871 = arith.mulf %848, %870 : vector<1x256xf32>
      %872 = arith.addf %868, %871 : vector<1x256xf32>
      %873 = arith.mulf %834, %872 : vector<1x256xf32>
      %874 = arith.addf %861, %873 : vector<1x256xf32>
      %c0_464 = arith.constant 0 : index
      %c0_465 = arith.constant 0 : index
      %c48 = arith.constant 48 : index
      %875 = vector.load %arg2[%c0_464, %c0_465, %c48] : memref<1x3x324xf32, #tpu.memory_space<vmem>>, vector<1x1x256xf32>
      %876 = vector.shape_cast %875 : vector<1x1x256xf32> to vector<1x256xf32>
      %877 = arith.mulf %841, %876 : vector<1x256xf32>
      %c0_466 = arith.constant 0 : index
      %c0_467 = arith.constant 0 : index
      %c49_468 = arith.constant 49 : index
      %878 = vector.load %arg2[%c0_466, %c0_467, %c49_468] : memref<1x3x324xf32, #tpu.memory_space<vmem>>, vector<1x1x256xf32>
      %879 = vector.shape_cast %878 : vector<1x1x256xf32> to vector<1x256xf32>
      %880 = arith.mulf %845, %879 : vector<1x256xf32>
      %881 = arith.addf %877, %880 : vector<1x256xf32>
      %c0_469 = arith.constant 0 : index
      %c0_470 = arith.constant 0 : index
      %c50_471 = arith.constant 50 : index
      %882 = vector.load %arg2[%c0_469, %c0_470, %c50_471] : memref<1x3x324xf32, #tpu.memory_space<vmem>>, vector<1x1x256xf32>
      %883 = vector.shape_cast %882 : vector<1x1x256xf32> to vector<1x256xf32>
      %884 = arith.mulf %848, %883 : vector<1x256xf32>
      %885 = arith.addf %881, %884 : vector<1x256xf32>
      %886 = arith.mulf %836, %885 : vector<1x256xf32>
      %887 = arith.addf %874, %886 : vector<1x256xf32>
      %888 = vector.broadcast %849 : f32 to vector<1x256xf32>
      %889 = arith.mulf %888, %887 : vector<1x256xf32>
      %890 = arith.addf %713, %889 : vector<1x256xf32>
      %c12_472 = arith.constant 12 : index
      %891 = memref.load %arg5[%c12_472] : memref<27xf32, #tpu.memory_space<smem>>
      %c0_473 = arith.constant 0 : index
      %c1_474 = arith.constant 1 : index
      %c16_475 = arith.constant 16 : index
      %892 = vector.load %arg2[%c0_473, %c1_474, %c16_475] : memref<1x3x324xf32, #tpu.memory_space<vmem>>, vector<1x1x256xf32>
      %893 = vector.shape_cast %892 : vector<1x1x256xf32> to vector<1x256xf32>
      %894 = arith.mulf %841, %893 : vector<1x256xf32>
      %c0_476 = arith.constant 0 : index
      %c1_477 = arith.constant 1 : index
      %c17_478 = arith.constant 17 : index
      %895 = vector.load %arg2[%c0_476, %c1_477, %c17_478] : memref<1x3x324xf32, #tpu.memory_space<vmem>>, vector<1x1x256xf32>
      %896 = vector.shape_cast %895 : vector<1x1x256xf32> to vector<1x256xf32>
      %897 = arith.mulf %845, %896 : vector<1x256xf32>
      %898 = arith.addf %894, %897 : vector<1x256xf32>
      %c0_479 = arith.constant 0 : index
      %c1_480 = arith.constant 1 : index
      %c18_481 = arith.constant 18 : index
      %899 = vector.load %arg2[%c0_479, %c1_480, %c18_481] : memref<1x3x324xf32, #tpu.memory_space<vmem>>, vector<1x1x256xf32>
      %900 = vector.shape_cast %899 : vector<1x1x256xf32> to vector<1x256xf32>
      %901 = arith.mulf %848, %900 : vector<1x256xf32>
      %902 = arith.addf %898, %901 : vector<1x256xf32>
      %903 = arith.mulf %831, %902 : vector<1x256xf32>
      %c0_482 = arith.constant 0 : index
      %c1_483 = arith.constant 1 : index
      %c32_484 = arith.constant 32 : index
      %904 = vector.load %arg2[%c0_482, %c1_483, %c32_484] : memref<1x3x324xf32, #tpu.memory_space<vmem>>, vector<1x1x256xf32>
      %905 = vector.shape_cast %904 : vector<1x1x256xf32> to vector<1x256xf32>
      %906 = arith.mulf %841, %905 : vector<1x256xf32>
      %c0_485 = arith.constant 0 : index
      %c1_486 = arith.constant 1 : index
      %c33_487 = arith.constant 33 : index
      %907 = vector.load %arg2[%c0_485, %c1_486, %c33_487] : memref<1x3x324xf32, #tpu.memory_space<vmem>>, vector<1x1x256xf32>
      %908 = vector.shape_cast %907 : vector<1x1x256xf32> to vector<1x256xf32>
      %909 = arith.mulf %845, %908 : vector<1x256xf32>
      %910 = arith.addf %906, %909 : vector<1x256xf32>
      %c0_488 = arith.constant 0 : index
      %c1_489 = arith.constant 1 : index
      %c34_490 = arith.constant 34 : index
      %911 = vector.load %arg2[%c0_488, %c1_489, %c34_490] : memref<1x3x324xf32, #tpu.memory_space<vmem>>, vector<1x1x256xf32>
      %912 = vector.shape_cast %911 : vector<1x1x256xf32> to vector<1x256xf32>
      %913 = arith.mulf %848, %912 : vector<1x256xf32>
      %914 = arith.addf %910, %913 : vector<1x256xf32>
      %915 = arith.mulf %834, %914 : vector<1x256xf32>
      %916 = arith.addf %903, %915 : vector<1x256xf32>
      %c0_491 = arith.constant 0 : index
      %c1_492 = arith.constant 1 : index
      %c48_493 = arith.constant 48 : index
      %917 = vector.load %arg2[%c0_491, %c1_492, %c48_493] : memref<1x3x324xf32, #tpu.memory_space<vmem>>, vector<1x1x256xf32>
      %918 = vector.shape_cast %917 : vector<1x1x256xf32> to vector<1x256xf32>
      %919 = arith.mulf %841, %918 : vector<1x256xf32>
      %c0_494 = arith.constant 0 : index
      %c1_495 = arith.constant 1 : index
      %c49_496 = arith.constant 49 : index
      %920 = vector.load %arg2[%c0_494, %c1_495, %c49_496] : memref<1x3x324xf32, #tpu.memory_space<vmem>>, vector<1x1x256xf32>
      %921 = vector.shape_cast %920 : vector<1x1x256xf32> to vector<1x256xf32>
      %922 = arith.mulf %845, %921 : vector<1x256xf32>
      %923 = arith.addf %919, %922 : vector<1x256xf32>
      %c0_497 = arith.constant 0 : index
      %c1_498 = arith.constant 1 : index
      %c50_499 = arith.constant 50 : index
      %924 = vector.load %arg2[%c0_497, %c1_498, %c50_499] : memref<1x3x324xf32, #tpu.memory_space<vmem>>, vector<1x1x256xf32>
      %925 = vector.shape_cast %924 : vector<1x1x256xf32> to vector<1x256xf32>
      %926 = arith.mulf %848, %925 : vector<1x256xf32>
      %927 = arith.addf %923, %926 : vector<1x256xf32>
      %928 = arith.mulf %836, %927 : vector<1x256xf32>
      %929 = arith.addf %916, %928 : vector<1x256xf32>
      %930 = vector.broadcast %891 : f32 to vector<1x256xf32>
      %931 = arith.mulf %930, %929 : vector<1x256xf32>
      %932 = arith.addf %755, %931 : vector<1x256xf32>
      %c21_500 = arith.constant 21 : index
      %933 = memref.load %arg5[%c21_500] : memref<27xf32, #tpu.memory_space<smem>>
      %c0_501 = arith.constant 0 : index
      %c2_502 = arith.constant 2 : index
      %c16_503 = arith.constant 16 : index
      %934 = vector.load %arg2[%c0_501, %c2_502, %c16_503] : memref<1x3x324xf32, #tpu.memory_space<vmem>>, vector<1x1x256xf32>
      %935 = vector.shape_cast %934 : vector<1x1x256xf32> to vector<1x256xf32>
      %936 = arith.mulf %841, %935 : vector<1x256xf32>
      %c0_504 = arith.constant 0 : index
      %c2_505 = arith.constant 2 : index
      %c17_506 = arith.constant 17 : index
      %937 = vector.load %arg2[%c0_504, %c2_505, %c17_506] : memref<1x3x324xf32, #tpu.memory_space<vmem>>, vector<1x1x256xf32>
      %938 = vector.shape_cast %937 : vector<1x1x256xf32> to vector<1x256xf32>
      %939 = arith.mulf %845, %938 : vector<1x256xf32>
      %940 = arith.addf %936, %939 : vector<1x256xf32>
      %c0_507 = arith.constant 0 : index
      %c2_508 = arith.constant 2 : index
      %c18_509 = arith.constant 18 : index
      %941 = vector.load %arg2[%c0_507, %c2_508, %c18_509] : memref<1x3x324xf32, #tpu.memory_space<vmem>>, vector<1x1x256xf32>
      %942 = vector.shape_cast %941 : vector<1x1x256xf32> to vector<1x256xf32>
      %943 = arith.mulf %848, %942 : vector<1x256xf32>
      %944 = arith.addf %940, %943 : vector<1x256xf32>
      %945 = arith.mulf %831, %944 : vector<1x256xf32>
      %c0_510 = arith.constant 0 : index
      %c2_511 = arith.constant 2 : index
      %c32_512 = arith.constant 32 : index
      %946 = vector.load %arg2[%c0_510, %c2_511, %c32_512] : memref<1x3x324xf32, #tpu.memory_space<vmem>>, vector<1x1x256xf32>
      %947 = vector.shape_cast %946 : vector<1x1x256xf32> to vector<1x256xf32>
      %948 = arith.mulf %841, %947 : vector<1x256xf32>
      %c0_513 = arith.constant 0 : index
      %c2_514 = arith.constant 2 : index
      %c33_515 = arith.constant 33 : index
      %949 = vector.load %arg2[%c0_513, %c2_514, %c33_515] : memref<1x3x324xf32, #tpu.memory_space<vmem>>, vector<1x1x256xf32>
      %950 = vector.shape_cast %949 : vector<1x1x256xf32> to vector<1x256xf32>
      %951 = arith.mulf %845, %950 : vector<1x256xf32>
      %952 = arith.addf %948, %951 : vector<1x256xf32>
      %c0_516 = arith.constant 0 : index
      %c2_517 = arith.constant 2 : index
      %c34_518 = arith.constant 34 : index
      %953 = vector.load %arg2[%c0_516, %c2_517, %c34_518] : memref<1x3x324xf32, #tpu.memory_space<vmem>>, vector<1x1x256xf32>
      %954 = vector.shape_cast %953 : vector<1x1x256xf32> to vector<1x256xf32>
      %955 = arith.mulf %848, %954 : vector<1x256xf32>
      %956 = arith.addf %952, %955 : vector<1x256xf32>
      %957 = arith.mulf %834, %956 : vector<1x256xf32>
      %958 = arith.addf %945, %957 : vector<1x256xf32>
      %c0_519 = arith.constant 0 : index
      %c2_520 = arith.constant 2 : index
      %c48_521 = arith.constant 48 : index
      %959 = vector.load %arg2[%c0_519, %c2_520, %c48_521] : memref<1x3x324xf32, #tpu.memory_space<vmem>>, vector<1x1x256xf32>
      %960 = vector.shape_cast %959 : vector<1x1x256xf32> to vector<1x256xf32>
      %961 = arith.mulf %841, %960 : vector<1x256xf32>
      %c0_522 = arith.constant 0 : index
      %c2_523 = arith.constant 2 : index
      %c49_524 = arith.constant 49 : index
      %962 = vector.load %arg2[%c0_522, %c2_523, %c49_524] : memref<1x3x324xf32, #tpu.memory_space<vmem>>, vector<1x1x256xf32>
      %963 = vector.shape_cast %962 : vector<1x1x256xf32> to vector<1x256xf32>
      %964 = arith.mulf %845, %963 : vector<1x256xf32>
      %965 = arith.addf %961, %964 : vector<1x256xf32>
      %c0_525 = arith.constant 0 : index
      %c2_526 = arith.constant 2 : index
      %c50_527 = arith.constant 50 : index
      %966 = vector.load %arg2[%c0_525, %c2_526, %c50_527] : memref<1x3x324xf32, #tpu.memory_space<vmem>>, vector<1x1x256xf32>
      %967 = vector.shape_cast %966 : vector<1x1x256xf32> to vector<1x256xf32>
      %968 = arith.mulf %848, %967 : vector<1x256xf32>
      %969 = arith.addf %965, %968 : vector<1x256xf32>
      %970 = arith.mulf %836, %969 : vector<1x256xf32>
      %971 = arith.addf %958, %970 : vector<1x256xf32>
      %972 = vector.broadcast %933 : f32 to vector<1x256xf32>
      %973 = arith.mulf %972, %971 : vector<1x256xf32>
      %974 = arith.addf %797, %973 : vector<1x256xf32>
      %c24_528 = arith.constant 24 : index
      %975 = memref.load %arg4[%c24_528] : memref<54xf32, #tpu.memory_space<smem>>
      %976 = vector.broadcast %975 : f32 to vector<1x256xf32>
      %977 = arith.mulf %976, %157 : vector<1x256xf32>
      %c27 = arith.constant 27 : index
      %978 = memref.load %arg4[%c27] : memref<54xf32, #tpu.memory_space<smem>>
      %979 = vector.broadcast %978 : f32 to vector<1x256xf32>
      %980 = arith.mulf %979, %157 : vector<1x256xf32>
      %c25_529 = arith.constant 25 : index
      %981 = memref.load %arg4[%c25_529] : memref<54xf32, #tpu.memory_space<smem>>
      %982 = vector.broadcast %981 : f32 to vector<1x256xf32>
      %983 = arith.mulf %982, %213 : vector<1x256xf32>
      %984 = arith.addf %977, %983 : vector<1x256xf32>
      %c28 = arith.constant 28 : index
      %985 = memref.load %arg4[%c28] : memref<54xf32, #tpu.memory_space<smem>>
      %986 = vector.broadcast %985 : f32 to vector<1x256xf32>
      %987 = arith.mulf %986, %213 : vector<1x256xf32>
      %988 = arith.addf %980, %987 : vector<1x256xf32>
      %c26_530 = arith.constant 26 : index
      %989 = memref.load %arg4[%c26_530] : memref<54xf32, #tpu.memory_space<smem>>
      %990 = vector.broadcast %989 : f32 to vector<1x256xf32>
      %991 = arith.mulf %990, %269 : vector<1x256xf32>
      %992 = arith.addf %984, %991 : vector<1x256xf32>
      %c29 = arith.constant 29 : index
      %993 = memref.load %arg4[%c29] : memref<54xf32, #tpu.memory_space<smem>>
      %994 = vector.broadcast %993 : f32 to vector<1x256xf32>
      %995 = arith.mulf %994, %269 : vector<1x256xf32>
      %996 = arith.addf %988, %995 : vector<1x256xf32>
      %cst_531 = arith.constant -1.000000e+00 : f32
      %cst_532 = arith.constant 1.000000e+00 : f32
      %997 = vector.broadcast %cst_531 : f32 to vector<1x256xf32>
      %998 = arith.maximumf %997, %992 : vector<1x256xf32>
      %999 = vector.broadcast %cst_532 : f32 to vector<1x256xf32>
      %1000 = arith.minimumf %999, %998 : vector<1x256xf32>
      %cst_533 = arith.constant -1.000000e+00 : f32
      %cst_534 = arith.constant 1.000000e+00 : f32
      %1001 = vector.broadcast %cst_533 : f32 to vector<1x256xf32>
      %1002 = arith.maximumf %1001, %996 : vector<1x256xf32>
      %1003 = vector.broadcast %cst_534 : f32 to vector<1x256xf32>
      %1004 = arith.minimumf %1003, %1002 : vector<1x256xf32>
      %cst_535 = arith.constant 0.000000e+00 : f32
      %1005 = vector.broadcast %cst_535 : f32 to vector<1x256xf32>
      %1006 = arith.subf %1005, %1000 : vector<1x256xf32>
      %cst_536 = arith.constant 0.000000e+00 : f32
      %1007 = vector.broadcast %cst_536 : f32 to vector<1x256xf32>
      %1008 = arith.maximumf %1006, %1007 : vector<1x256xf32>
      %1009 = math.absf %1000 : vector<1x256xf32>
      %cst_537 = arith.constant 1.000000e+00 : f32
      %1010 = vector.broadcast %cst_537 : f32 to vector<1x256xf32>
      %1011 = arith.subf %1010, %1009 : vector<1x256xf32>
      %cst_538 = arith.constant 0.000000e+00 : f32
      %1012 = vector.broadcast %cst_538 : f32 to vector<1x256xf32>
      %1013 = arith.maximumf %1000, %1012 : vector<1x256xf32>
      %cst_539 = arith.constant 0.000000e+00 : f32
      %1014 = vector.broadcast %cst_539 : f32 to vector<1x256xf32>
      %1015 = arith.subf %1014, %1004 : vector<1x256xf32>
      %cst_540 = arith.constant 0.000000e+00 : f32
      %1016 = vector.broadcast %cst_540 : f32 to vector<1x256xf32>
      %1017 = arith.maximumf %1015, %1016 : vector<1x256xf32>
      %1018 = arith.mulf %1017, %71 : vector<1x256xf32>
      %1019 = math.absf %1004 : vector<1x256xf32>
      %cst_541 = arith.constant 1.000000e+00 : f32
      %1020 = vector.broadcast %cst_541 : f32 to vector<1x256xf32>
      %1021 = arith.subf %1020, %1019 : vector<1x256xf32>
      %1022 = arith.mulf %1021, %81 : vector<1x256xf32>
      %cst_542 = arith.constant 0.000000e+00 : f32
      %1023 = vector.broadcast %cst_542 : f32 to vector<1x256xf32>
      %1024 = arith.maximumf %1004, %1023 : vector<1x256xf32>
      %1025 = arith.mulf %1024, %91 : vector<1x256xf32>
      %c4_543 = arith.constant 4 : index
      %1026 = memref.load %arg5[%c4_543] : memref<27xf32, #tpu.memory_space<smem>>
      %c0_544 = arith.constant 0 : index
      %c0_545 = arith.constant 0 : index
      %c17_546 = arith.constant 17 : index
      %1027 = vector.load %arg2[%c0_544, %c0_545, %c17_546] : memref<1x3x324xf32, #tpu.memory_space<vmem>>, vector<1x1x256xf32>
      %1028 = vector.shape_cast %1027 : vector<1x1x256xf32> to vector<1x256xf32>
      %1029 = arith.mulf %1018, %1028 : vector<1x256xf32>
      %c0_547 = arith.constant 0 : index
      %c0_548 = arith.constant 0 : index
      %c18_549 = arith.constant 18 : index
      %1030 = vector.load %arg2[%c0_547, %c0_548, %c18_549] : memref<1x3x324xf32, #tpu.memory_space<vmem>>, vector<1x1x256xf32>
      %1031 = vector.shape_cast %1030 : vector<1x1x256xf32> to vector<1x256xf32>
      %1032 = arith.mulf %1022, %1031 : vector<1x256xf32>
      %1033 = arith.addf %1029, %1032 : vector<1x256xf32>
      %c0_550 = arith.constant 0 : index
      %c0_551 = arith.constant 0 : index
      %c19_552 = arith.constant 19 : index
      %1034 = vector.load %arg2[%c0_550, %c0_551, %c19_552] : memref<1x3x324xf32, #tpu.memory_space<vmem>>, vector<1x1x256xf32>
      %1035 = vector.shape_cast %1034 : vector<1x1x256xf32> to vector<1x256xf32>
      %1036 = arith.mulf %1025, %1035 : vector<1x256xf32>
      %1037 = arith.addf %1033, %1036 : vector<1x256xf32>
      %1038 = arith.mulf %1008, %1037 : vector<1x256xf32>
      %c0_553 = arith.constant 0 : index
      %c0_554 = arith.constant 0 : index
      %c33_555 = arith.constant 33 : index
      %1039 = vector.load %arg2[%c0_553, %c0_554, %c33_555] : memref<1x3x324xf32, #tpu.memory_space<vmem>>, vector<1x1x256xf32>
      %1040 = vector.shape_cast %1039 : vector<1x1x256xf32> to vector<1x256xf32>
      %1041 = arith.mulf %1018, %1040 : vector<1x256xf32>
      %c0_556 = arith.constant 0 : index
      %c0_557 = arith.constant 0 : index
      %c34_558 = arith.constant 34 : index
      %1042 = vector.load %arg2[%c0_556, %c0_557, %c34_558] : memref<1x3x324xf32, #tpu.memory_space<vmem>>, vector<1x1x256xf32>
      %1043 = vector.shape_cast %1042 : vector<1x1x256xf32> to vector<1x256xf32>
      %1044 = arith.mulf %1022, %1043 : vector<1x256xf32>
      %1045 = arith.addf %1041, %1044 : vector<1x256xf32>
      %c0_559 = arith.constant 0 : index
      %c0_560 = arith.constant 0 : index
      %c35_561 = arith.constant 35 : index
      %1046 = vector.load %arg2[%c0_559, %c0_560, %c35_561] : memref<1x3x324xf32, #tpu.memory_space<vmem>>, vector<1x1x256xf32>
      %1047 = vector.shape_cast %1046 : vector<1x1x256xf32> to vector<1x256xf32>
      %1048 = arith.mulf %1025, %1047 : vector<1x256xf32>
      %1049 = arith.addf %1045, %1048 : vector<1x256xf32>
      %1050 = arith.mulf %1011, %1049 : vector<1x256xf32>
      %1051 = arith.addf %1038, %1050 : vector<1x256xf32>
      %c0_562 = arith.constant 0 : index
      %c0_563 = arith.constant 0 : index
      %c49_564 = arith.constant 49 : index
      %1052 = vector.load %arg2[%c0_562, %c0_563, %c49_564] : memref<1x3x324xf32, #tpu.memory_space<vmem>>, vector<1x1x256xf32>
      %1053 = vector.shape_cast %1052 : vector<1x1x256xf32> to vector<1x256xf32>
      %1054 = arith.mulf %1018, %1053 : vector<1x256xf32>
      %c0_565 = arith.constant 0 : index
      %c0_566 = arith.constant 0 : index
      %c50_567 = arith.constant 50 : index
      %1055 = vector.load %arg2[%c0_565, %c0_566, %c50_567] : memref<1x3x324xf32, #tpu.memory_space<vmem>>, vector<1x1x256xf32>
      %1056 = vector.shape_cast %1055 : vector<1x1x256xf32> to vector<1x256xf32>
      %1057 = arith.mulf %1022, %1056 : vector<1x256xf32>
      %1058 = arith.addf %1054, %1057 : vector<1x256xf32>
      %c0_568 = arith.constant 0 : index
      %c0_569 = arith.constant 0 : index
      %c51_570 = arith.constant 51 : index
      %1059 = vector.load %arg2[%c0_568, %c0_569, %c51_570] : memref<1x3x324xf32, #tpu.memory_space<vmem>>, vector<1x1x256xf32>
      %1060 = vector.shape_cast %1059 : vector<1x1x256xf32> to vector<1x256xf32>
      %1061 = arith.mulf %1025, %1060 : vector<1x256xf32>
      %1062 = arith.addf %1058, %1061 : vector<1x256xf32>
      %1063 = arith.mulf %1013, %1062 : vector<1x256xf32>
      %1064 = arith.addf %1051, %1063 : vector<1x256xf32>
      %1065 = vector.broadcast %1026 : f32 to vector<1x256xf32>
      %1066 = arith.mulf %1065, %1064 : vector<1x256xf32>
      %1067 = arith.addf %890, %1066 : vector<1x256xf32>
      %c13_571 = arith.constant 13 : index
      %1068 = memref.load %arg5[%c13_571] : memref<27xf32, #tpu.memory_space<smem>>
      %c0_572 = arith.constant 0 : index
      %c1_573 = arith.constant 1 : index
      %c17_574 = arith.constant 17 : index
      %1069 = vector.load %arg2[%c0_572, %c1_573, %c17_574] : memref<1x3x324xf32, #tpu.memory_space<vmem>>, vector<1x1x256xf32>
      %1070 = vector.shape_cast %1069 : vector<1x1x256xf32> to vector<1x256xf32>
      %1071 = arith.mulf %1018, %1070 : vector<1x256xf32>
      %c0_575 = arith.constant 0 : index
      %c1_576 = arith.constant 1 : index
      %c18_577 = arith.constant 18 : index
      %1072 = vector.load %arg2[%c0_575, %c1_576, %c18_577] : memref<1x3x324xf32, #tpu.memory_space<vmem>>, vector<1x1x256xf32>
      %1073 = vector.shape_cast %1072 : vector<1x1x256xf32> to vector<1x256xf32>
      %1074 = arith.mulf %1022, %1073 : vector<1x256xf32>
      %1075 = arith.addf %1071, %1074 : vector<1x256xf32>
      %c0_578 = arith.constant 0 : index
      %c1_579 = arith.constant 1 : index
      %c19_580 = arith.constant 19 : index
      %1076 = vector.load %arg2[%c0_578, %c1_579, %c19_580] : memref<1x3x324xf32, #tpu.memory_space<vmem>>, vector<1x1x256xf32>
      %1077 = vector.shape_cast %1076 : vector<1x1x256xf32> to vector<1x256xf32>
      %1078 = arith.mulf %1025, %1077 : vector<1x256xf32>
      %1079 = arith.addf %1075, %1078 : vector<1x256xf32>
      %1080 = arith.mulf %1008, %1079 : vector<1x256xf32>
      %c0_581 = arith.constant 0 : index
      %c1_582 = arith.constant 1 : index
      %c33_583 = arith.constant 33 : index
      %1081 = vector.load %arg2[%c0_581, %c1_582, %c33_583] : memref<1x3x324xf32, #tpu.memory_space<vmem>>, vector<1x1x256xf32>
      %1082 = vector.shape_cast %1081 : vector<1x1x256xf32> to vector<1x256xf32>
      %1083 = arith.mulf %1018, %1082 : vector<1x256xf32>
      %c0_584 = arith.constant 0 : index
      %c1_585 = arith.constant 1 : index
      %c34_586 = arith.constant 34 : index
      %1084 = vector.load %arg2[%c0_584, %c1_585, %c34_586] : memref<1x3x324xf32, #tpu.memory_space<vmem>>, vector<1x1x256xf32>
      %1085 = vector.shape_cast %1084 : vector<1x1x256xf32> to vector<1x256xf32>
      %1086 = arith.mulf %1022, %1085 : vector<1x256xf32>
      %1087 = arith.addf %1083, %1086 : vector<1x256xf32>
      %c0_587 = arith.constant 0 : index
      %c1_588 = arith.constant 1 : index
      %c35_589 = arith.constant 35 : index
      %1088 = vector.load %arg2[%c0_587, %c1_588, %c35_589] : memref<1x3x324xf32, #tpu.memory_space<vmem>>, vector<1x1x256xf32>
      %1089 = vector.shape_cast %1088 : vector<1x1x256xf32> to vector<1x256xf32>
      %1090 = arith.mulf %1025, %1089 : vector<1x256xf32>
      %1091 = arith.addf %1087, %1090 : vector<1x256xf32>
      %1092 = arith.mulf %1011, %1091 : vector<1x256xf32>
      %1093 = arith.addf %1080, %1092 : vector<1x256xf32>
      %c0_590 = arith.constant 0 : index
      %c1_591 = arith.constant 1 : index
      %c49_592 = arith.constant 49 : index
      %1094 = vector.load %arg2[%c0_590, %c1_591, %c49_592] : memref<1x3x324xf32, #tpu.memory_space<vmem>>, vector<1x1x256xf32>
      %1095 = vector.shape_cast %1094 : vector<1x1x256xf32> to vector<1x256xf32>
      %1096 = arith.mulf %1018, %1095 : vector<1x256xf32>
      %c0_593 = arith.constant 0 : index
      %c1_594 = arith.constant 1 : index
      %c50_595 = arith.constant 50 : index
      %1097 = vector.load %arg2[%c0_593, %c1_594, %c50_595] : memref<1x3x324xf32, #tpu.memory_space<vmem>>, vector<1x1x256xf32>
      %1098 = vector.shape_cast %1097 : vector<1x1x256xf32> to vector<1x256xf32>
      %1099 = arith.mulf %1022, %1098 : vector<1x256xf32>
      %1100 = arith.addf %1096, %1099 : vector<1x256xf32>
      %c0_596 = arith.constant 0 : index
      %c1_597 = arith.constant 1 : index
      %c51_598 = arith.constant 51 : index
      %1101 = vector.load %arg2[%c0_596, %c1_597, %c51_598] : memref<1x3x324xf32, #tpu.memory_space<vmem>>, vector<1x1x256xf32>
      %1102 = vector.shape_cast %1101 : vector<1x1x256xf32> to vector<1x256xf32>
      %1103 = arith.mulf %1025, %1102 : vector<1x256xf32>
      %1104 = arith.addf %1100, %1103 : vector<1x256xf32>
      %1105 = arith.mulf %1013, %1104 : vector<1x256xf32>
      %1106 = arith.addf %1093, %1105 : vector<1x256xf32>
      %1107 = vector.broadcast %1068 : f32 to vector<1x256xf32>
      %1108 = arith.mulf %1107, %1106 : vector<1x256xf32>
      %1109 = arith.addf %932, %1108 : vector<1x256xf32>
      %c22_599 = arith.constant 22 : index
      %1110 = memref.load %arg5[%c22_599] : memref<27xf32, #tpu.memory_space<smem>>
      %c0_600 = arith.constant 0 : index
      %c2_601 = arith.constant 2 : index
      %c17_602 = arith.constant 17 : index
      %1111 = vector.load %arg2[%c0_600, %c2_601, %c17_602] : memref<1x3x324xf32, #tpu.memory_space<vmem>>, vector<1x1x256xf32>
      %1112 = vector.shape_cast %1111 : vector<1x1x256xf32> to vector<1x256xf32>
      %1113 = arith.mulf %1018, %1112 : vector<1x256xf32>
      %c0_603 = arith.constant 0 : index
      %c2_604 = arith.constant 2 : index
      %c18_605 = arith.constant 18 : index
      %1114 = vector.load %arg2[%c0_603, %c2_604, %c18_605] : memref<1x3x324xf32, #tpu.memory_space<vmem>>, vector<1x1x256xf32>
      %1115 = vector.shape_cast %1114 : vector<1x1x256xf32> to vector<1x256xf32>
      %1116 = arith.mulf %1022, %1115 : vector<1x256xf32>
      %1117 = arith.addf %1113, %1116 : vector<1x256xf32>
      %c0_606 = arith.constant 0 : index
      %c2_607 = arith.constant 2 : index
      %c19_608 = arith.constant 19 : index
      %1118 = vector.load %arg2[%c0_606, %c2_607, %c19_608] : memref<1x3x324xf32, #tpu.memory_space<vmem>>, vector<1x1x256xf32>
      %1119 = vector.shape_cast %1118 : vector<1x1x256xf32> to vector<1x256xf32>
      %1120 = arith.mulf %1025, %1119 : vector<1x256xf32>
      %1121 = arith.addf %1117, %1120 : vector<1x256xf32>
      %1122 = arith.mulf %1008, %1121 : vector<1x256xf32>
      %c0_609 = arith.constant 0 : index
      %c2_610 = arith.constant 2 : index
      %c33_611 = arith.constant 33 : index
      %1123 = vector.load %arg2[%c0_609, %c2_610, %c33_611] : memref<1x3x324xf32, #tpu.memory_space<vmem>>, vector<1x1x256xf32>
      %1124 = vector.shape_cast %1123 : vector<1x1x256xf32> to vector<1x256xf32>
      %1125 = arith.mulf %1018, %1124 : vector<1x256xf32>
      %c0_612 = arith.constant 0 : index
      %c2_613 = arith.constant 2 : index
      %c34_614 = arith.constant 34 : index
      %1126 = vector.load %arg2[%c0_612, %c2_613, %c34_614] : memref<1x3x324xf32, #tpu.memory_space<vmem>>, vector<1x1x256xf32>
      %1127 = vector.shape_cast %1126 : vector<1x1x256xf32> to vector<1x256xf32>
      %1128 = arith.mulf %1022, %1127 : vector<1x256xf32>
      %1129 = arith.addf %1125, %1128 : vector<1x256xf32>
      %c0_615 = arith.constant 0 : index
      %c2_616 = arith.constant 2 : index
      %c35_617 = arith.constant 35 : index
      %1130 = vector.load %arg2[%c0_615, %c2_616, %c35_617] : memref<1x3x324xf32, #tpu.memory_space<vmem>>, vector<1x1x256xf32>
      %1131 = vector.shape_cast %1130 : vector<1x1x256xf32> to vector<1x256xf32>
      %1132 = arith.mulf %1025, %1131 : vector<1x256xf32>
      %1133 = arith.addf %1129, %1132 : vector<1x256xf32>
      %1134 = arith.mulf %1011, %1133 : vector<1x256xf32>
      %1135 = arith.addf %1122, %1134 : vector<1x256xf32>
      %c0_618 = arith.constant 0 : index
      %c2_619 = arith.constant 2 : index
      %c49_620 = arith.constant 49 : index
      %1136 = vector.load %arg2[%c0_618, %c2_619, %c49_620] : memref<1x3x324xf32, #tpu.memory_space<vmem>>, vector<1x1x256xf32>
      %1137 = vector.shape_cast %1136 : vector<1x1x256xf32> to vector<1x256xf32>
      %1138 = arith.mulf %1018, %1137 : vector<1x256xf32>
      %c0_621 = arith.constant 0 : index
      %c2_622 = arith.constant 2 : index
      %c50_623 = arith.constant 50 : index
      %1139 = vector.load %arg2[%c0_621, %c2_622, %c50_623] : memref<1x3x324xf32, #tpu.memory_space<vmem>>, vector<1x1x256xf32>
      %1140 = vector.shape_cast %1139 : vector<1x1x256xf32> to vector<1x256xf32>
      %1141 = arith.mulf %1022, %1140 : vector<1x256xf32>
      %1142 = arith.addf %1138, %1141 : vector<1x256xf32>
      %c0_624 = arith.constant 0 : index
      %c2_625 = arith.constant 2 : index
      %c51_626 = arith.constant 51 : index
      %1143 = vector.load %arg2[%c0_624, %c2_625, %c51_626] : memref<1x3x324xf32, #tpu.memory_space<vmem>>, vector<1x1x256xf32>
      %1144 = vector.shape_cast %1143 : vector<1x1x256xf32> to vector<1x256xf32>
      %1145 = arith.mulf %1025, %1144 : vector<1x256xf32>
      %1146 = arith.addf %1142, %1145 : vector<1x256xf32>
      %1147 = arith.mulf %1013, %1146 : vector<1x256xf32>
      %1148 = arith.addf %1135, %1147 : vector<1x256xf32>
      %1149 = vector.broadcast %1110 : f32 to vector<1x256xf32>
      %1150 = arith.mulf %1149, %1148 : vector<1x256xf32>
      %1151 = arith.addf %974, %1150 : vector<1x256xf32>
      %c30 = arith.constant 30 : index
      %1152 = memref.load %arg4[%c30] : memref<54xf32, #tpu.memory_space<smem>>
      %1153 = vector.broadcast %1152 : f32 to vector<1x256xf32>
      %1154 = arith.mulf %1153, %157 : vector<1x256xf32>
      %c33_627 = arith.constant 33 : index
      %1155 = memref.load %arg4[%c33_627] : memref<54xf32, #tpu.memory_space<smem>>
      %1156 = vector.broadcast %1155 : f32 to vector<1x256xf32>
      %1157 = arith.mulf %1156, %157 : vector<1x256xf32>
      %c31 = arith.constant 31 : index
      %1158 = memref.load %arg4[%c31] : memref<54xf32, #tpu.memory_space<smem>>
      %1159 = vector.broadcast %1158 : f32 to vector<1x256xf32>
      %1160 = arith.mulf %1159, %213 : vector<1x256xf32>
      %1161 = arith.addf %1154, %1160 : vector<1x256xf32>
      %c34_628 = arith.constant 34 : index
      %1162 = memref.load %arg4[%c34_628] : memref<54xf32, #tpu.memory_space<smem>>
      %1163 = vector.broadcast %1162 : f32 to vector<1x256xf32>
      %1164 = arith.mulf %1163, %213 : vector<1x256xf32>
      %1165 = arith.addf %1157, %1164 : vector<1x256xf32>
      %c32_629 = arith.constant 32 : index
      %1166 = memref.load %arg4[%c32_629] : memref<54xf32, #tpu.memory_space<smem>>
      %1167 = vector.broadcast %1166 : f32 to vector<1x256xf32>
      %1168 = arith.mulf %1167, %269 : vector<1x256xf32>
      %1169 = arith.addf %1161, %1168 : vector<1x256xf32>
      %c35_630 = arith.constant 35 : index
      %1170 = memref.load %arg4[%c35_630] : memref<54xf32, #tpu.memory_space<smem>>
      %1171 = vector.broadcast %1170 : f32 to vector<1x256xf32>
      %1172 = arith.mulf %1171, %269 : vector<1x256xf32>
      %1173 = arith.addf %1165, %1172 : vector<1x256xf32>
      %cst_631 = arith.constant -1.000000e+00 : f32
      %cst_632 = arith.constant 1.000000e+00 : f32
      %1174 = vector.broadcast %cst_631 : f32 to vector<1x256xf32>
      %1175 = arith.maximumf %1174, %1169 : vector<1x256xf32>
      %1176 = vector.broadcast %cst_632 : f32 to vector<1x256xf32>
      %1177 = arith.minimumf %1176, %1175 : vector<1x256xf32>
      %cst_633 = arith.constant -1.000000e+00 : f32
      %cst_634 = arith.constant 1.000000e+00 : f32
      %1178 = vector.broadcast %cst_633 : f32 to vector<1x256xf32>
      %1179 = arith.maximumf %1178, %1173 : vector<1x256xf32>
      %1180 = vector.broadcast %cst_634 : f32 to vector<1x256xf32>
      %1181 = arith.minimumf %1180, %1179 : vector<1x256xf32>
      %cst_635 = arith.constant 0.000000e+00 : f32
      %1182 = vector.broadcast %cst_635 : f32 to vector<1x256xf32>
      %1183 = arith.subf %1182, %1177 : vector<1x256xf32>
      %cst_636 = arith.constant 0.000000e+00 : f32
      %1184 = vector.broadcast %cst_636 : f32 to vector<1x256xf32>
      %1185 = arith.maximumf %1183, %1184 : vector<1x256xf32>
      %1186 = math.absf %1177 : vector<1x256xf32>
      %cst_637 = arith.constant 1.000000e+00 : f32
      %1187 = vector.broadcast %cst_637 : f32 to vector<1x256xf32>
      %1188 = arith.subf %1187, %1186 : vector<1x256xf32>
      %cst_638 = arith.constant 0.000000e+00 : f32
      %1189 = vector.broadcast %cst_638 : f32 to vector<1x256xf32>
      %1190 = arith.maximumf %1177, %1189 : vector<1x256xf32>
      %cst_639 = arith.constant 0.000000e+00 : f32
      %1191 = vector.broadcast %cst_639 : f32 to vector<1x256xf32>
      %1192 = arith.subf %1191, %1181 : vector<1x256xf32>
      %cst_640 = arith.constant 0.000000e+00 : f32
      %1193 = vector.broadcast %cst_640 : f32 to vector<1x256xf32>
      %1194 = arith.maximumf %1192, %1193 : vector<1x256xf32>
      %1195 = arith.mulf %1194, %81 : vector<1x256xf32>
      %1196 = math.absf %1181 : vector<1x256xf32>
      %cst_641 = arith.constant 1.000000e+00 : f32
      %1197 = vector.broadcast %cst_641 : f32 to vector<1x256xf32>
      %1198 = arith.subf %1197, %1196 : vector<1x256xf32>
      %1199 = arith.mulf %1198, %91 : vector<1x256xf32>
      %cst_642 = arith.constant 0.000000e+00 : f32
      %1200 = vector.broadcast %cst_642 : f32 to vector<1x256xf32>
      %1201 = arith.maximumf %1181, %1200 : vector<1x256xf32>
      %1202 = arith.mulf %1201, %101 : vector<1x256xf32>
      %c5_643 = arith.constant 5 : index
      %1203 = memref.load %arg5[%c5_643] : memref<27xf32, #tpu.memory_space<smem>>
      %c0_644 = arith.constant 0 : index
      %c0_645 = arith.constant 0 : index
      %c18_646 = arith.constant 18 : index
      %1204 = vector.load %arg2[%c0_644, %c0_645, %c18_646] : memref<1x3x324xf32, #tpu.memory_space<vmem>>, vector<1x1x256xf32>
      %1205 = vector.shape_cast %1204 : vector<1x1x256xf32> to vector<1x256xf32>
      %1206 = arith.mulf %1195, %1205 : vector<1x256xf32>
      %c0_647 = arith.constant 0 : index
      %c0_648 = arith.constant 0 : index
      %c19_649 = arith.constant 19 : index
      %1207 = vector.load %arg2[%c0_647, %c0_648, %c19_649] : memref<1x3x324xf32, #tpu.memory_space<vmem>>, vector<1x1x256xf32>
      %1208 = vector.shape_cast %1207 : vector<1x1x256xf32> to vector<1x256xf32>
      %1209 = arith.mulf %1199, %1208 : vector<1x256xf32>
      %1210 = arith.addf %1206, %1209 : vector<1x256xf32>
      %c0_650 = arith.constant 0 : index
      %c0_651 = arith.constant 0 : index
      %c20_652 = arith.constant 20 : index
      %1211 = vector.load %arg2[%c0_650, %c0_651, %c20_652] : memref<1x3x324xf32, #tpu.memory_space<vmem>>, vector<1x1x256xf32>
      %1212 = vector.shape_cast %1211 : vector<1x1x256xf32> to vector<1x256xf32>
      %1213 = arith.mulf %1202, %1212 : vector<1x256xf32>
      %1214 = arith.addf %1210, %1213 : vector<1x256xf32>
      %1215 = arith.mulf %1185, %1214 : vector<1x256xf32>
      %c0_653 = arith.constant 0 : index
      %c0_654 = arith.constant 0 : index
      %c34_655 = arith.constant 34 : index
      %1216 = vector.load %arg2[%c0_653, %c0_654, %c34_655] : memref<1x3x324xf32, #tpu.memory_space<vmem>>, vector<1x1x256xf32>
      %1217 = vector.shape_cast %1216 : vector<1x1x256xf32> to vector<1x256xf32>
      %1218 = arith.mulf %1195, %1217 : vector<1x256xf32>
      %c0_656 = arith.constant 0 : index
      %c0_657 = arith.constant 0 : index
      %c35_658 = arith.constant 35 : index
      %1219 = vector.load %arg2[%c0_656, %c0_657, %c35_658] : memref<1x3x324xf32, #tpu.memory_space<vmem>>, vector<1x1x256xf32>
      %1220 = vector.shape_cast %1219 : vector<1x1x256xf32> to vector<1x256xf32>
      %1221 = arith.mulf %1199, %1220 : vector<1x256xf32>
      %1222 = arith.addf %1218, %1221 : vector<1x256xf32>
      %c0_659 = arith.constant 0 : index
      %c0_660 = arith.constant 0 : index
      %c36_661 = arith.constant 36 : index
      %1223 = vector.load %arg2[%c0_659, %c0_660, %c36_661] : memref<1x3x324xf32, #tpu.memory_space<vmem>>, vector<1x1x256xf32>
      %1224 = vector.shape_cast %1223 : vector<1x1x256xf32> to vector<1x256xf32>
      %1225 = arith.mulf %1202, %1224 : vector<1x256xf32>
      %1226 = arith.addf %1222, %1225 : vector<1x256xf32>
      %1227 = arith.mulf %1188, %1226 : vector<1x256xf32>
      %1228 = arith.addf %1215, %1227 : vector<1x256xf32>
      %c0_662 = arith.constant 0 : index
      %c0_663 = arith.constant 0 : index
      %c50_664 = arith.constant 50 : index
      %1229 = vector.load %arg2[%c0_662, %c0_663, %c50_664] : memref<1x3x324xf32, #tpu.memory_space<vmem>>, vector<1x1x256xf32>
      %1230 = vector.shape_cast %1229 : vector<1x1x256xf32> to vector<1x256xf32>
      %1231 = arith.mulf %1195, %1230 : vector<1x256xf32>
      %c0_665 = arith.constant 0 : index
      %c0_666 = arith.constant 0 : index
      %c51_667 = arith.constant 51 : index
      %1232 = vector.load %arg2[%c0_665, %c0_666, %c51_667] : memref<1x3x324xf32, #tpu.memory_space<vmem>>, vector<1x1x256xf32>
      %1233 = vector.shape_cast %1232 : vector<1x1x256xf32> to vector<1x256xf32>
      %1234 = arith.mulf %1199, %1233 : vector<1x256xf32>
      %1235 = arith.addf %1231, %1234 : vector<1x256xf32>
      %c0_668 = arith.constant 0 : index
      %c0_669 = arith.constant 0 : index
      %c52 = arith.constant 52 : index
      %1236 = vector.load %arg2[%c0_668, %c0_669, %c52] : memref<1x3x324xf32, #tpu.memory_space<vmem>>, vector<1x1x256xf32>
      %1237 = vector.shape_cast %1236 : vector<1x1x256xf32> to vector<1x256xf32>
      %1238 = arith.mulf %1202, %1237 : vector<1x256xf32>
      %1239 = arith.addf %1235, %1238 : vector<1x256xf32>
      %1240 = arith.mulf %1190, %1239 : vector<1x256xf32>
      %1241 = arith.addf %1228, %1240 : vector<1x256xf32>
      %1242 = vector.broadcast %1203 : f32 to vector<1x256xf32>
      %1243 = arith.mulf %1242, %1241 : vector<1x256xf32>
      %1244 = arith.addf %1067, %1243 : vector<1x256xf32>
      %c14_670 = arith.constant 14 : index
      %1245 = memref.load %arg5[%c14_670] : memref<27xf32, #tpu.memory_space<smem>>
      %c0_671 = arith.constant 0 : index
      %c1_672 = arith.constant 1 : index
      %c18_673 = arith.constant 18 : index
      %1246 = vector.load %arg2[%c0_671, %c1_672, %c18_673] : memref<1x3x324xf32, #tpu.memory_space<vmem>>, vector<1x1x256xf32>
      %1247 = vector.shape_cast %1246 : vector<1x1x256xf32> to vector<1x256xf32>
      %1248 = arith.mulf %1195, %1247 : vector<1x256xf32>
      %c0_674 = arith.constant 0 : index
      %c1_675 = arith.constant 1 : index
      %c19_676 = arith.constant 19 : index
      %1249 = vector.load %arg2[%c0_674, %c1_675, %c19_676] : memref<1x3x324xf32, #tpu.memory_space<vmem>>, vector<1x1x256xf32>
      %1250 = vector.shape_cast %1249 : vector<1x1x256xf32> to vector<1x256xf32>
      %1251 = arith.mulf %1199, %1250 : vector<1x256xf32>
      %1252 = arith.addf %1248, %1251 : vector<1x256xf32>
      %c0_677 = arith.constant 0 : index
      %c1_678 = arith.constant 1 : index
      %c20_679 = arith.constant 20 : index
      %1253 = vector.load %arg2[%c0_677, %c1_678, %c20_679] : memref<1x3x324xf32, #tpu.memory_space<vmem>>, vector<1x1x256xf32>
      %1254 = vector.shape_cast %1253 : vector<1x1x256xf32> to vector<1x256xf32>
      %1255 = arith.mulf %1202, %1254 : vector<1x256xf32>
      %1256 = arith.addf %1252, %1255 : vector<1x256xf32>
      %1257 = arith.mulf %1185, %1256 : vector<1x256xf32>
      %c0_680 = arith.constant 0 : index
      %c1_681 = arith.constant 1 : index
      %c34_682 = arith.constant 34 : index
      %1258 = vector.load %arg2[%c0_680, %c1_681, %c34_682] : memref<1x3x324xf32, #tpu.memory_space<vmem>>, vector<1x1x256xf32>
      %1259 = vector.shape_cast %1258 : vector<1x1x256xf32> to vector<1x256xf32>
      %1260 = arith.mulf %1195, %1259 : vector<1x256xf32>
      %c0_683 = arith.constant 0 : index
      %c1_684 = arith.constant 1 : index
      %c35_685 = arith.constant 35 : index
      %1261 = vector.load %arg2[%c0_683, %c1_684, %c35_685] : memref<1x3x324xf32, #tpu.memory_space<vmem>>, vector<1x1x256xf32>
      %1262 = vector.shape_cast %1261 : vector<1x1x256xf32> to vector<1x256xf32>
      %1263 = arith.mulf %1199, %1262 : vector<1x256xf32>
      %1264 = arith.addf %1260, %1263 : vector<1x256xf32>
      %c0_686 = arith.constant 0 : index
      %c1_687 = arith.constant 1 : index
      %c36_688 = arith.constant 36 : index
      %1265 = vector.load %arg2[%c0_686, %c1_687, %c36_688] : memref<1x3x324xf32, #tpu.memory_space<vmem>>, vector<1x1x256xf32>
      %1266 = vector.shape_cast %1265 : vector<1x1x256xf32> to vector<1x256xf32>
      %1267 = arith.mulf %1202, %1266 : vector<1x256xf32>
      %1268 = arith.addf %1264, %1267 : vector<1x256xf32>
      %1269 = arith.mulf %1188, %1268 : vector<1x256xf32>
      %1270 = arith.addf %1257, %1269 : vector<1x256xf32>
      %c0_689 = arith.constant 0 : index
      %c1_690 = arith.constant 1 : index
      %c50_691 = arith.constant 50 : index
      %1271 = vector.load %arg2[%c0_689, %c1_690, %c50_691] : memref<1x3x324xf32, #tpu.memory_space<vmem>>, vector<1x1x256xf32>
      %1272 = vector.shape_cast %1271 : vector<1x1x256xf32> to vector<1x256xf32>
      %1273 = arith.mulf %1195, %1272 : vector<1x256xf32>
      %c0_692 = arith.constant 0 : index
      %c1_693 = arith.constant 1 : index
      %c51_694 = arith.constant 51 : index
      %1274 = vector.load %arg2[%c0_692, %c1_693, %c51_694] : memref<1x3x324xf32, #tpu.memory_space<vmem>>, vector<1x1x256xf32>
      %1275 = vector.shape_cast %1274 : vector<1x1x256xf32> to vector<1x256xf32>
      %1276 = arith.mulf %1199, %1275 : vector<1x256xf32>
      %1277 = arith.addf %1273, %1276 : vector<1x256xf32>
      %c0_695 = arith.constant 0 : index
      %c1_696 = arith.constant 1 : index
      %c52_697 = arith.constant 52 : index
      %1278 = vector.load %arg2[%c0_695, %c1_696, %c52_697] : memref<1x3x324xf32, #tpu.memory_space<vmem>>, vector<1x1x256xf32>
      %1279 = vector.shape_cast %1278 : vector<1x1x256xf32> to vector<1x256xf32>
      %1280 = arith.mulf %1202, %1279 : vector<1x256xf32>
      %1281 = arith.addf %1277, %1280 : vector<1x256xf32>
      %1282 = arith.mulf %1190, %1281 : vector<1x256xf32>
      %1283 = arith.addf %1270, %1282 : vector<1x256xf32>
      %1284 = vector.broadcast %1245 : f32 to vector<1x256xf32>
      %1285 = arith.mulf %1284, %1283 : vector<1x256xf32>
      %1286 = arith.addf %1109, %1285 : vector<1x256xf32>
      %c23_698 = arith.constant 23 : index
      %1287 = memref.load %arg5[%c23_698] : memref<27xf32, #tpu.memory_space<smem>>
      %c0_699 = arith.constant 0 : index
      %c2_700 = arith.constant 2 : index
      %c18_701 = arith.constant 18 : index
      %1288 = vector.load %arg2[%c0_699, %c2_700, %c18_701] : memref<1x3x324xf32, #tpu.memory_space<vmem>>, vector<1x1x256xf32>
      %1289 = vector.shape_cast %1288 : vector<1x1x256xf32> to vector<1x256xf32>
      %1290 = arith.mulf %1195, %1289 : vector<1x256xf32>
      %c0_702 = arith.constant 0 : index
      %c2_703 = arith.constant 2 : index
      %c19_704 = arith.constant 19 : index
      %1291 = vector.load %arg2[%c0_702, %c2_703, %c19_704] : memref<1x3x324xf32, #tpu.memory_space<vmem>>, vector<1x1x256xf32>
      %1292 = vector.shape_cast %1291 : vector<1x1x256xf32> to vector<1x256xf32>
      %1293 = arith.mulf %1199, %1292 : vector<1x256xf32>
      %1294 = arith.addf %1290, %1293 : vector<1x256xf32>
      %c0_705 = arith.constant 0 : index
      %c2_706 = arith.constant 2 : index
      %c20_707 = arith.constant 20 : index
      %1295 = vector.load %arg2[%c0_705, %c2_706, %c20_707] : memref<1x3x324xf32, #tpu.memory_space<vmem>>, vector<1x1x256xf32>
      %1296 = vector.shape_cast %1295 : vector<1x1x256xf32> to vector<1x256xf32>
      %1297 = arith.mulf %1202, %1296 : vector<1x256xf32>
      %1298 = arith.addf %1294, %1297 : vector<1x256xf32>
      %1299 = arith.mulf %1185, %1298 : vector<1x256xf32>
      %c0_708 = arith.constant 0 : index
      %c2_709 = arith.constant 2 : index
      %c34_710 = arith.constant 34 : index
      %1300 = vector.load %arg2[%c0_708, %c2_709, %c34_710] : memref<1x3x324xf32, #tpu.memory_space<vmem>>, vector<1x1x256xf32>
      %1301 = vector.shape_cast %1300 : vector<1x1x256xf32> to vector<1x256xf32>
      %1302 = arith.mulf %1195, %1301 : vector<1x256xf32>
      %c0_711 = arith.constant 0 : index
      %c2_712 = arith.constant 2 : index
      %c35_713 = arith.constant 35 : index
      %1303 = vector.load %arg2[%c0_711, %c2_712, %c35_713] : memref<1x3x324xf32, #tpu.memory_space<vmem>>, vector<1x1x256xf32>
      %1304 = vector.shape_cast %1303 : vector<1x1x256xf32> to vector<1x256xf32>
      %1305 = arith.mulf %1199, %1304 : vector<1x256xf32>
      %1306 = arith.addf %1302, %1305 : vector<1x256xf32>
      %c0_714 = arith.constant 0 : index
      %c2_715 = arith.constant 2 : index
      %c36_716 = arith.constant 36 : index
      %1307 = vector.load %arg2[%c0_714, %c2_715, %c36_716] : memref<1x3x324xf32, #tpu.memory_space<vmem>>, vector<1x1x256xf32>
      %1308 = vector.shape_cast %1307 : vector<1x1x256xf32> to vector<1x256xf32>
      %1309 = arith.mulf %1202, %1308 : vector<1x256xf32>
      %1310 = arith.addf %1306, %1309 : vector<1x256xf32>
      %1311 = arith.mulf %1188, %1310 : vector<1x256xf32>
      %1312 = arith.addf %1299, %1311 : vector<1x256xf32>
      %c0_717 = arith.constant 0 : index
      %c2_718 = arith.constant 2 : index
      %c50_719 = arith.constant 50 : index
      %1313 = vector.load %arg2[%c0_717, %c2_718, %c50_719] : memref<1x3x324xf32, #tpu.memory_space<vmem>>, vector<1x1x256xf32>
      %1314 = vector.shape_cast %1313 : vector<1x1x256xf32> to vector<1x256xf32>
      %1315 = arith.mulf %1195, %1314 : vector<1x256xf32>
      %c0_720 = arith.constant 0 : index
      %c2_721 = arith.constant 2 : index
      %c51_722 = arith.constant 51 : index
      %1316 = vector.load %arg2[%c0_720, %c2_721, %c51_722] : memref<1x3x324xf32, #tpu.memory_space<vmem>>, vector<1x1x256xf32>
      %1317 = vector.shape_cast %1316 : vector<1x1x256xf32> to vector<1x256xf32>
      %1318 = arith.mulf %1199, %1317 : vector<1x256xf32>
      %1319 = arith.addf %1315, %1318 : vector<1x256xf32>
      %c0_723 = arith.constant 0 : index
      %c2_724 = arith.constant 2 : index
      %c52_725 = arith.constant 52 : index
      %1320 = vector.load %arg2[%c0_723, %c2_724, %c52_725] : memref<1x3x324xf32, #tpu.memory_space<vmem>>, vector<1x1x256xf32>
      %1321 = vector.shape_cast %1320 : vector<1x1x256xf32> to vector<1x256xf32>
      %1322 = arith.mulf %1202, %1321 : vector<1x256xf32>
      %1323 = arith.addf %1319, %1322 : vector<1x256xf32>
      %1324 = arith.mulf %1190, %1323 : vector<1x256xf32>
      %1325 = arith.addf %1312, %1324 : vector<1x256xf32>
      %1326 = vector.broadcast %1287 : f32 to vector<1x256xf32>
      %1327 = arith.mulf %1326, %1325 : vector<1x256xf32>
      %1328 = arith.addf %1151, %1327 : vector<1x256xf32>
      %c36_726 = arith.constant 36 : index
      %1329 = memref.load %arg4[%c36_726] : memref<54xf32, #tpu.memory_space<smem>>
      %1330 = vector.broadcast %1329 : f32 to vector<1x256xf32>
      %1331 = arith.mulf %1330, %157 : vector<1x256xf32>
      %c39 = arith.constant 39 : index
      %1332 = memref.load %arg4[%c39] : memref<54xf32, #tpu.memory_space<smem>>
      %1333 = vector.broadcast %1332 : f32 to vector<1x256xf32>
      %1334 = arith.mulf %1333, %157 : vector<1x256xf32>
      %c37 = arith.constant 37 : index
      %1335 = memref.load %arg4[%c37] : memref<54xf32, #tpu.memory_space<smem>>
      %1336 = vector.broadcast %1335 : f32 to vector<1x256xf32>
      %1337 = arith.mulf %1336, %213 : vector<1x256xf32>
      %1338 = arith.addf %1331, %1337 : vector<1x256xf32>
      %c40 = arith.constant 40 : index
      %1339 = memref.load %arg4[%c40] : memref<54xf32, #tpu.memory_space<smem>>
      %1340 = vector.broadcast %1339 : f32 to vector<1x256xf32>
      %1341 = arith.mulf %1340, %213 : vector<1x256xf32>
      %1342 = arith.addf %1334, %1341 : vector<1x256xf32>
      %c38 = arith.constant 38 : index
      %1343 = memref.load %arg4[%c38] : memref<54xf32, #tpu.memory_space<smem>>
      %1344 = vector.broadcast %1343 : f32 to vector<1x256xf32>
      %1345 = arith.mulf %1344, %269 : vector<1x256xf32>
      %1346 = arith.addf %1338, %1345 : vector<1x256xf32>
      %c41 = arith.constant 41 : index
      %1347 = memref.load %arg4[%c41] : memref<54xf32, #tpu.memory_space<smem>>
      %1348 = vector.broadcast %1347 : f32 to vector<1x256xf32>
      %1349 = arith.mulf %1348, %269 : vector<1x256xf32>
      %1350 = arith.addf %1342, %1349 : vector<1x256xf32>
      %cst_727 = arith.constant -1.000000e+00 : f32
      %cst_728 = arith.constant 1.000000e+00 : f32
      %1351 = vector.broadcast %cst_727 : f32 to vector<1x256xf32>
      %1352 = arith.maximumf %1351, %1346 : vector<1x256xf32>
      %1353 = vector.broadcast %cst_728 : f32 to vector<1x256xf32>
      %1354 = arith.minimumf %1353, %1352 : vector<1x256xf32>
      %cst_729 = arith.constant -1.000000e+00 : f32
      %cst_730 = arith.constant 1.000000e+00 : f32
      %1355 = vector.broadcast %cst_729 : f32 to vector<1x256xf32>
      %1356 = arith.maximumf %1355, %1350 : vector<1x256xf32>
      %1357 = vector.broadcast %cst_730 : f32 to vector<1x256xf32>
      %1358 = arith.minimumf %1357, %1356 : vector<1x256xf32>
      %cst_731 = arith.constant 0.000000e+00 : f32
      %1359 = vector.broadcast %cst_731 : f32 to vector<1x256xf32>
      %1360 = arith.subf %1359, %1354 : vector<1x256xf32>
      %cst_732 = arith.constant 0.000000e+00 : f32
      %1361 = vector.broadcast %cst_732 : f32 to vector<1x256xf32>
      %1362 = arith.maximumf %1360, %1361 : vector<1x256xf32>
      %1363 = math.absf %1354 : vector<1x256xf32>
      %cst_733 = arith.constant 1.000000e+00 : f32
      %1364 = vector.broadcast %cst_733 : f32 to vector<1x256xf32>
      %1365 = arith.subf %1364, %1363 : vector<1x256xf32>
      %cst_734 = arith.constant 0.000000e+00 : f32
      %1366 = vector.broadcast %cst_734 : f32 to vector<1x256xf32>
      %1367 = arith.maximumf %1354, %1366 : vector<1x256xf32>
      %cst_735 = arith.constant 0.000000e+00 : f32
      %1368 = vector.broadcast %cst_735 : f32 to vector<1x256xf32>
      %1369 = arith.subf %1368, %1358 : vector<1x256xf32>
      %cst_736 = arith.constant 0.000000e+00 : f32
      %1370 = vector.broadcast %cst_736 : f32 to vector<1x256xf32>
      %1371 = arith.maximumf %1369, %1370 : vector<1x256xf32>
      %1372 = arith.mulf %1371, %61 : vector<1x256xf32>
      %1373 = math.absf %1358 : vector<1x256xf32>
      %cst_737 = arith.constant 1.000000e+00 : f32
      %1374 = vector.broadcast %cst_737 : f32 to vector<1x256xf32>
      %1375 = arith.subf %1374, %1373 : vector<1x256xf32>
      %1376 = arith.mulf %1375, %71 : vector<1x256xf32>
      %cst_738 = arith.constant 0.000000e+00 : f32
      %1377 = vector.broadcast %cst_738 : f32 to vector<1x256xf32>
      %1378 = arith.maximumf %1358, %1377 : vector<1x256xf32>
      %1379 = arith.mulf %1378, %81 : vector<1x256xf32>
      %c6_739 = arith.constant 6 : index
      %1380 = memref.load %arg5[%c6_739] : memref<27xf32, #tpu.memory_space<smem>>
      %c0_740 = arith.constant 0 : index
      %c0_741 = arith.constant 0 : index
      %c32_742 = arith.constant 32 : index
      %1381 = vector.load %arg2[%c0_740, %c0_741, %c32_742] : memref<1x3x324xf32, #tpu.memory_space<vmem>>, vector<1x1x256xf32>
      %1382 = vector.shape_cast %1381 : vector<1x1x256xf32> to vector<1x256xf32>
      %1383 = arith.mulf %1372, %1382 : vector<1x256xf32>
      %c0_743 = arith.constant 0 : index
      %c0_744 = arith.constant 0 : index
      %c33_745 = arith.constant 33 : index
      %1384 = vector.load %arg2[%c0_743, %c0_744, %c33_745] : memref<1x3x324xf32, #tpu.memory_space<vmem>>, vector<1x1x256xf32>
      %1385 = vector.shape_cast %1384 : vector<1x1x256xf32> to vector<1x256xf32>
      %1386 = arith.mulf %1376, %1385 : vector<1x256xf32>
      %1387 = arith.addf %1383, %1386 : vector<1x256xf32>
      %c0_746 = arith.constant 0 : index
      %c0_747 = arith.constant 0 : index
      %c34_748 = arith.constant 34 : index
      %1388 = vector.load %arg2[%c0_746, %c0_747, %c34_748] : memref<1x3x324xf32, #tpu.memory_space<vmem>>, vector<1x1x256xf32>
      %1389 = vector.shape_cast %1388 : vector<1x1x256xf32> to vector<1x256xf32>
      %1390 = arith.mulf %1379, %1389 : vector<1x256xf32>
      %1391 = arith.addf %1387, %1390 : vector<1x256xf32>
      %1392 = arith.mulf %1362, %1391 : vector<1x256xf32>
      %c0_749 = arith.constant 0 : index
      %c0_750 = arith.constant 0 : index
      %c48_751 = arith.constant 48 : index
      %1393 = vector.load %arg2[%c0_749, %c0_750, %c48_751] : memref<1x3x324xf32, #tpu.memory_space<vmem>>, vector<1x1x256xf32>
      %1394 = vector.shape_cast %1393 : vector<1x1x256xf32> to vector<1x256xf32>
      %1395 = arith.mulf %1372, %1394 : vector<1x256xf32>
      %c0_752 = arith.constant 0 : index
      %c0_753 = arith.constant 0 : index
      %c49_754 = arith.constant 49 : index
      %1396 = vector.load %arg2[%c0_752, %c0_753, %c49_754] : memref<1x3x324xf32, #tpu.memory_space<vmem>>, vector<1x1x256xf32>
      %1397 = vector.shape_cast %1396 : vector<1x1x256xf32> to vector<1x256xf32>
      %1398 = arith.mulf %1376, %1397 : vector<1x256xf32>
      %1399 = arith.addf %1395, %1398 : vector<1x256xf32>
      %c0_755 = arith.constant 0 : index
      %c0_756 = arith.constant 0 : index
      %c50_757 = arith.constant 50 : index
      %1400 = vector.load %arg2[%c0_755, %c0_756, %c50_757] : memref<1x3x324xf32, #tpu.memory_space<vmem>>, vector<1x1x256xf32>
      %1401 = vector.shape_cast %1400 : vector<1x1x256xf32> to vector<1x256xf32>
      %1402 = arith.mulf %1379, %1401 : vector<1x256xf32>
      %1403 = arith.addf %1399, %1402 : vector<1x256xf32>
      %1404 = arith.mulf %1365, %1403 : vector<1x256xf32>
      %1405 = arith.addf %1392, %1404 : vector<1x256xf32>
      %c0_758 = arith.constant 0 : index
      %c0_759 = arith.constant 0 : index
      %c64 = arith.constant 64 : index
      %1406 = vector.load %arg2[%c0_758, %c0_759, %c64] : memref<1x3x324xf32, #tpu.memory_space<vmem>>, vector<1x1x256xf32>
      %1407 = vector.shape_cast %1406 : vector<1x1x256xf32> to vector<1x256xf32>
      %1408 = arith.mulf %1372, %1407 : vector<1x256xf32>
      %c0_760 = arith.constant 0 : index
      %c0_761 = arith.constant 0 : index
      %c65 = arith.constant 65 : index
      %1409 = vector.load %arg2[%c0_760, %c0_761, %c65] : memref<1x3x324xf32, #tpu.memory_space<vmem>>, vector<1x1x256xf32>
      %1410 = vector.shape_cast %1409 : vector<1x1x256xf32> to vector<1x256xf32>
      %1411 = arith.mulf %1376, %1410 : vector<1x256xf32>
      %1412 = arith.addf %1408, %1411 : vector<1x256xf32>
      %c0_762 = arith.constant 0 : index
      %c0_763 = arith.constant 0 : index
      %c66 = arith.constant 66 : index
      %1413 = vector.load %arg2[%c0_762, %c0_763, %c66] : memref<1x3x324xf32, #tpu.memory_space<vmem>>, vector<1x1x256xf32>
      %1414 = vector.shape_cast %1413 : vector<1x1x256xf32> to vector<1x256xf32>
      %1415 = arith.mulf %1379, %1414 : vector<1x256xf32>
      %1416 = arith.addf %1412, %1415 : vector<1x256xf32>
      %1417 = arith.mulf %1367, %1416 : vector<1x256xf32>
      %1418 = arith.addf %1405, %1417 : vector<1x256xf32>
      %1419 = vector.broadcast %1380 : f32 to vector<1x256xf32>
      %1420 = arith.mulf %1419, %1418 : vector<1x256xf32>
      %1421 = arith.addf %1244, %1420 : vector<1x256xf32>
      %c15_764 = arith.constant 15 : index
      %1422 = memref.load %arg5[%c15_764] : memref<27xf32, #tpu.memory_space<smem>>
      %c0_765 = arith.constant 0 : index
      %c1_766 = arith.constant 1 : index
      %c32_767 = arith.constant 32 : index
      %1423 = vector.load %arg2[%c0_765, %c1_766, %c32_767] : memref<1x3x324xf32, #tpu.memory_space<vmem>>, vector<1x1x256xf32>
      %1424 = vector.shape_cast %1423 : vector<1x1x256xf32> to vector<1x256xf32>
      %1425 = arith.mulf %1372, %1424 : vector<1x256xf32>
      %c0_768 = arith.constant 0 : index
      %c1_769 = arith.constant 1 : index
      %c33_770 = arith.constant 33 : index
      %1426 = vector.load %arg2[%c0_768, %c1_769, %c33_770] : memref<1x3x324xf32, #tpu.memory_space<vmem>>, vector<1x1x256xf32>
      %1427 = vector.shape_cast %1426 : vector<1x1x256xf32> to vector<1x256xf32>
      %1428 = arith.mulf %1376, %1427 : vector<1x256xf32>
      %1429 = arith.addf %1425, %1428 : vector<1x256xf32>
      %c0_771 = arith.constant 0 : index
      %c1_772 = arith.constant 1 : index
      %c34_773 = arith.constant 34 : index
      %1430 = vector.load %arg2[%c0_771, %c1_772, %c34_773] : memref<1x3x324xf32, #tpu.memory_space<vmem>>, vector<1x1x256xf32>
      %1431 = vector.shape_cast %1430 : vector<1x1x256xf32> to vector<1x256xf32>
      %1432 = arith.mulf %1379, %1431 : vector<1x256xf32>
      %1433 = arith.addf %1429, %1432 : vector<1x256xf32>
      %1434 = arith.mulf %1362, %1433 : vector<1x256xf32>
      %c0_774 = arith.constant 0 : index
      %c1_775 = arith.constant 1 : index
      %c48_776 = arith.constant 48 : index
      %1435 = vector.load %arg2[%c0_774, %c1_775, %c48_776] : memref<1x3x324xf32, #tpu.memory_space<vmem>>, vector<1x1x256xf32>
      %1436 = vector.shape_cast %1435 : vector<1x1x256xf32> to vector<1x256xf32>
      %1437 = arith.mulf %1372, %1436 : vector<1x256xf32>
      %c0_777 = arith.constant 0 : index
      %c1_778 = arith.constant 1 : index
      %c49_779 = arith.constant 49 : index
      %1438 = vector.load %arg2[%c0_777, %c1_778, %c49_779] : memref<1x3x324xf32, #tpu.memory_space<vmem>>, vector<1x1x256xf32>
      %1439 = vector.shape_cast %1438 : vector<1x1x256xf32> to vector<1x256xf32>
      %1440 = arith.mulf %1376, %1439 : vector<1x256xf32>
      %1441 = arith.addf %1437, %1440 : vector<1x256xf32>
      %c0_780 = arith.constant 0 : index
      %c1_781 = arith.constant 1 : index
      %c50_782 = arith.constant 50 : index
      %1442 = vector.load %arg2[%c0_780, %c1_781, %c50_782] : memref<1x3x324xf32, #tpu.memory_space<vmem>>, vector<1x1x256xf32>
      %1443 = vector.shape_cast %1442 : vector<1x1x256xf32> to vector<1x256xf32>
      %1444 = arith.mulf %1379, %1443 : vector<1x256xf32>
      %1445 = arith.addf %1441, %1444 : vector<1x256xf32>
      %1446 = arith.mulf %1365, %1445 : vector<1x256xf32>
      %1447 = arith.addf %1434, %1446 : vector<1x256xf32>
      %c0_783 = arith.constant 0 : index
      %c1_784 = arith.constant 1 : index
      %c64_785 = arith.constant 64 : index
      %1448 = vector.load %arg2[%c0_783, %c1_784, %c64_785] : memref<1x3x324xf32, #tpu.memory_space<vmem>>, vector<1x1x256xf32>
      %1449 = vector.shape_cast %1448 : vector<1x1x256xf32> to vector<1x256xf32>
      %1450 = arith.mulf %1372, %1449 : vector<1x256xf32>
      %c0_786 = arith.constant 0 : index
      %c1_787 = arith.constant 1 : index
      %c65_788 = arith.constant 65 : index
      %1451 = vector.load %arg2[%c0_786, %c1_787, %c65_788] : memref<1x3x324xf32, #tpu.memory_space<vmem>>, vector<1x1x256xf32>
      %1452 = vector.shape_cast %1451 : vector<1x1x256xf32> to vector<1x256xf32>
      %1453 = arith.mulf %1376, %1452 : vector<1x256xf32>
      %1454 = arith.addf %1450, %1453 : vector<1x256xf32>
      %c0_789 = arith.constant 0 : index
      %c1_790 = arith.constant 1 : index
      %c66_791 = arith.constant 66 : index
      %1455 = vector.load %arg2[%c0_789, %c1_790, %c66_791] : memref<1x3x324xf32, #tpu.memory_space<vmem>>, vector<1x1x256xf32>
      %1456 = vector.shape_cast %1455 : vector<1x1x256xf32> to vector<1x256xf32>
      %1457 = arith.mulf %1379, %1456 : vector<1x256xf32>
      %1458 = arith.addf %1454, %1457 : vector<1x256xf32>
      %1459 = arith.mulf %1367, %1458 : vector<1x256xf32>
      %1460 = arith.addf %1447, %1459 : vector<1x256xf32>
      %1461 = vector.broadcast %1422 : f32 to vector<1x256xf32>
      %1462 = arith.mulf %1461, %1460 : vector<1x256xf32>
      %1463 = arith.addf %1286, %1462 : vector<1x256xf32>
      %c24_792 = arith.constant 24 : index
      %1464 = memref.load %arg5[%c24_792] : memref<27xf32, #tpu.memory_space<smem>>
      %c0_793 = arith.constant 0 : index
      %c2_794 = arith.constant 2 : index
      %c32_795 = arith.constant 32 : index
      %1465 = vector.load %arg2[%c0_793, %c2_794, %c32_795] : memref<1x3x324xf32, #tpu.memory_space<vmem>>, vector<1x1x256xf32>
      %1466 = vector.shape_cast %1465 : vector<1x1x256xf32> to vector<1x256xf32>
      %1467 = arith.mulf %1372, %1466 : vector<1x256xf32>
      %c0_796 = arith.constant 0 : index
      %c2_797 = arith.constant 2 : index
      %c33_798 = arith.constant 33 : index
      %1468 = vector.load %arg2[%c0_796, %c2_797, %c33_798] : memref<1x3x324xf32, #tpu.memory_space<vmem>>, vector<1x1x256xf32>
      %1469 = vector.shape_cast %1468 : vector<1x1x256xf32> to vector<1x256xf32>
      %1470 = arith.mulf %1376, %1469 : vector<1x256xf32>
      %1471 = arith.addf %1467, %1470 : vector<1x256xf32>
      %c0_799 = arith.constant 0 : index
      %c2_800 = arith.constant 2 : index
      %c34_801 = arith.constant 34 : index
      %1472 = vector.load %arg2[%c0_799, %c2_800, %c34_801] : memref<1x3x324xf32, #tpu.memory_space<vmem>>, vector<1x1x256xf32>
      %1473 = vector.shape_cast %1472 : vector<1x1x256xf32> to vector<1x256xf32>
      %1474 = arith.mulf %1379, %1473 : vector<1x256xf32>
      %1475 = arith.addf %1471, %1474 : vector<1x256xf32>
      %1476 = arith.mulf %1362, %1475 : vector<1x256xf32>
      %c0_802 = arith.constant 0 : index
      %c2_803 = arith.constant 2 : index
      %c48_804 = arith.constant 48 : index
      %1477 = vector.load %arg2[%c0_802, %c2_803, %c48_804] : memref<1x3x324xf32, #tpu.memory_space<vmem>>, vector<1x1x256xf32>
      %1478 = vector.shape_cast %1477 : vector<1x1x256xf32> to vector<1x256xf32>
      %1479 = arith.mulf %1372, %1478 : vector<1x256xf32>
      %c0_805 = arith.constant 0 : index
      %c2_806 = arith.constant 2 : index
      %c49_807 = arith.constant 49 : index
      %1480 = vector.load %arg2[%c0_805, %c2_806, %c49_807] : memref<1x3x324xf32, #tpu.memory_space<vmem>>, vector<1x1x256xf32>
      %1481 = vector.shape_cast %1480 : vector<1x1x256xf32> to vector<1x256xf32>
      %1482 = arith.mulf %1376, %1481 : vector<1x256xf32>
      %1483 = arith.addf %1479, %1482 : vector<1x256xf32>
      %c0_808 = arith.constant 0 : index
      %c2_809 = arith.constant 2 : index
      %c50_810 = arith.constant 50 : index
      %1484 = vector.load %arg2[%c0_808, %c2_809, %c50_810] : memref<1x3x324xf32, #tpu.memory_space<vmem>>, vector<1x1x256xf32>
      %1485 = vector.shape_cast %1484 : vector<1x1x256xf32> to vector<1x256xf32>
      %1486 = arith.mulf %1379, %1485 : vector<1x256xf32>
      %1487 = arith.addf %1483, %1486 : vector<1x256xf32>
      %1488 = arith.mulf %1365, %1487 : vector<1x256xf32>
      %1489 = arith.addf %1476, %1488 : vector<1x256xf32>
      %c0_811 = arith.constant 0 : index
      %c2_812 = arith.constant 2 : index
      %c64_813 = arith.constant 64 : index
      %1490 = vector.load %arg2[%c0_811, %c2_812, %c64_813] : memref<1x3x324xf32, #tpu.memory_space<vmem>>, vector<1x1x256xf32>
      %1491 = vector.shape_cast %1490 : vector<1x1x256xf32> to vector<1x256xf32>
      %1492 = arith.mulf %1372, %1491 : vector<1x256xf32>
      %c0_814 = arith.constant 0 : index
      %c2_815 = arith.constant 2 : index
      %c65_816 = arith.constant 65 : index
      %1493 = vector.load %arg2[%c0_814, %c2_815, %c65_816] : memref<1x3x324xf32, #tpu.memory_space<vmem>>, vector<1x1x256xf32>
      %1494 = vector.shape_cast %1493 : vector<1x1x256xf32> to vector<1x256xf32>
      %1495 = arith.mulf %1376, %1494 : vector<1x256xf32>
      %1496 = arith.addf %1492, %1495 : vector<1x256xf32>
      %c0_817 = arith.constant 0 : index
      %c2_818 = arith.constant 2 : index
      %c66_819 = arith.constant 66 : index
      %1497 = vector.load %arg2[%c0_817, %c2_818, %c66_819] : memref<1x3x324xf32, #tpu.memory_space<vmem>>, vector<1x1x256xf32>
      %1498 = vector.shape_cast %1497 : vector<1x1x256xf32> to vector<1x256xf32>
      %1499 = arith.mulf %1379, %1498 : vector<1x256xf32>
      %1500 = arith.addf %1496, %1499 : vector<1x256xf32>
      %1501 = arith.mulf %1367, %1500 : vector<1x256xf32>
      %1502 = arith.addf %1489, %1501 : vector<1x256xf32>
      %1503 = vector.broadcast %1464 : f32 to vector<1x256xf32>
      %1504 = arith.mulf %1503, %1502 : vector<1x256xf32>
      %1505 = arith.addf %1328, %1504 : vector<1x256xf32>
      %c42 = arith.constant 42 : index
      %1506 = memref.load %arg4[%c42] : memref<54xf32, #tpu.memory_space<smem>>
      %1507 = vector.broadcast %1506 : f32 to vector<1x256xf32>
      %1508 = arith.mulf %1507, %157 : vector<1x256xf32>
      %c45 = arith.constant 45 : index
      %1509 = memref.load %arg4[%c45] : memref<54xf32, #tpu.memory_space<smem>>
      %1510 = vector.broadcast %1509 : f32 to vector<1x256xf32>
      %1511 = arith.mulf %1510, %157 : vector<1x256xf32>
      %c43 = arith.constant 43 : index
      %1512 = memref.load %arg4[%c43] : memref<54xf32, #tpu.memory_space<smem>>
      %1513 = vector.broadcast %1512 : f32 to vector<1x256xf32>
      %1514 = arith.mulf %1513, %213 : vector<1x256xf32>
      %1515 = arith.addf %1508, %1514 : vector<1x256xf32>
      %c46 = arith.constant 46 : index
      %1516 = memref.load %arg4[%c46] : memref<54xf32, #tpu.memory_space<smem>>
      %1517 = vector.broadcast %1516 : f32 to vector<1x256xf32>
      %1518 = arith.mulf %1517, %213 : vector<1x256xf32>
      %1519 = arith.addf %1511, %1518 : vector<1x256xf32>
      %c44 = arith.constant 44 : index
      %1520 = memref.load %arg4[%c44] : memref<54xf32, #tpu.memory_space<smem>>
      %1521 = vector.broadcast %1520 : f32 to vector<1x256xf32>
      %1522 = arith.mulf %1521, %269 : vector<1x256xf32>
      %1523 = arith.addf %1515, %1522 : vector<1x256xf32>
      %c47 = arith.constant 47 : index
      %1524 = memref.load %arg4[%c47] : memref<54xf32, #tpu.memory_space<smem>>
      %1525 = vector.broadcast %1524 : f32 to vector<1x256xf32>
      %1526 = arith.mulf %1525, %269 : vector<1x256xf32>
      %1527 = arith.addf %1519, %1526 : vector<1x256xf32>
      %cst_820 = arith.constant -1.000000e+00 : f32
      %cst_821 = arith.constant 1.000000e+00 : f32
      %1528 = vector.broadcast %cst_820 : f32 to vector<1x256xf32>
      %1529 = arith.maximumf %1528, %1523 : vector<1x256xf32>
      %1530 = vector.broadcast %cst_821 : f32 to vector<1x256xf32>
      %1531 = arith.minimumf %1530, %1529 : vector<1x256xf32>
      %cst_822 = arith.constant -1.000000e+00 : f32
      %cst_823 = arith.constant 1.000000e+00 : f32
      %1532 = vector.broadcast %cst_822 : f32 to vector<1x256xf32>
      %1533 = arith.maximumf %1532, %1527 : vector<1x256xf32>
      %1534 = vector.broadcast %cst_823 : f32 to vector<1x256xf32>
      %1535 = arith.minimumf %1534, %1533 : vector<1x256xf32>
      %cst_824 = arith.constant 0.000000e+00 : f32
      %1536 = vector.broadcast %cst_824 : f32 to vector<1x256xf32>
      %1537 = arith.subf %1536, %1531 : vector<1x256xf32>
      %cst_825 = arith.constant 0.000000e+00 : f32
      %1538 = vector.broadcast %cst_825 : f32 to vector<1x256xf32>
      %1539 = arith.maximumf %1537, %1538 : vector<1x256xf32>
      %1540 = math.absf %1531 : vector<1x256xf32>
      %cst_826 = arith.constant 1.000000e+00 : f32
      %1541 = vector.broadcast %cst_826 : f32 to vector<1x256xf32>
      %1542 = arith.subf %1541, %1540 : vector<1x256xf32>
      %cst_827 = arith.constant 0.000000e+00 : f32
      %1543 = vector.broadcast %cst_827 : f32 to vector<1x256xf32>
      %1544 = arith.maximumf %1531, %1543 : vector<1x256xf32>
      %cst_828 = arith.constant 0.000000e+00 : f32
      %1545 = vector.broadcast %cst_828 : f32 to vector<1x256xf32>
      %1546 = arith.subf %1545, %1535 : vector<1x256xf32>
      %cst_829 = arith.constant 0.000000e+00 : f32
      %1547 = vector.broadcast %cst_829 : f32 to vector<1x256xf32>
      %1548 = arith.maximumf %1546, %1547 : vector<1x256xf32>
      %1549 = arith.mulf %1548, %71 : vector<1x256xf32>
      %1550 = math.absf %1535 : vector<1x256xf32>
      %cst_830 = arith.constant 1.000000e+00 : f32
      %1551 = vector.broadcast %cst_830 : f32 to vector<1x256xf32>
      %1552 = arith.subf %1551, %1550 : vector<1x256xf32>
      %1553 = arith.mulf %1552, %81 : vector<1x256xf32>
      %cst_831 = arith.constant 0.000000e+00 : f32
      %1554 = vector.broadcast %cst_831 : f32 to vector<1x256xf32>
      %1555 = arith.maximumf %1535, %1554 : vector<1x256xf32>
      %1556 = arith.mulf %1555, %91 : vector<1x256xf32>
      %c7_832 = arith.constant 7 : index
      %1557 = memref.load %arg5[%c7_832] : memref<27xf32, #tpu.memory_space<smem>>
      %c0_833 = arith.constant 0 : index
      %c0_834 = arith.constant 0 : index
      %c33_835 = arith.constant 33 : index
      %1558 = vector.load %arg2[%c0_833, %c0_834, %c33_835] : memref<1x3x324xf32, #tpu.memory_space<vmem>>, vector<1x1x256xf32>
      %1559 = vector.shape_cast %1558 : vector<1x1x256xf32> to vector<1x256xf32>
      %1560 = arith.mulf %1549, %1559 : vector<1x256xf32>
      %c0_836 = arith.constant 0 : index
      %c0_837 = arith.constant 0 : index
      %c34_838 = arith.constant 34 : index
      %1561 = vector.load %arg2[%c0_836, %c0_837, %c34_838] : memref<1x3x324xf32, #tpu.memory_space<vmem>>, vector<1x1x256xf32>
      %1562 = vector.shape_cast %1561 : vector<1x1x256xf32> to vector<1x256xf32>
      %1563 = arith.mulf %1553, %1562 : vector<1x256xf32>
      %1564 = arith.addf %1560, %1563 : vector<1x256xf32>
      %c0_839 = arith.constant 0 : index
      %c0_840 = arith.constant 0 : index
      %c35_841 = arith.constant 35 : index
      %1565 = vector.load %arg2[%c0_839, %c0_840, %c35_841] : memref<1x3x324xf32, #tpu.memory_space<vmem>>, vector<1x1x256xf32>
      %1566 = vector.shape_cast %1565 : vector<1x1x256xf32> to vector<1x256xf32>
      %1567 = arith.mulf %1556, %1566 : vector<1x256xf32>
      %1568 = arith.addf %1564, %1567 : vector<1x256xf32>
      %1569 = arith.mulf %1539, %1568 : vector<1x256xf32>
      %c0_842 = arith.constant 0 : index
      %c0_843 = arith.constant 0 : index
      %c49_844 = arith.constant 49 : index
      %1570 = vector.load %arg2[%c0_842, %c0_843, %c49_844] : memref<1x3x324xf32, #tpu.memory_space<vmem>>, vector<1x1x256xf32>
      %1571 = vector.shape_cast %1570 : vector<1x1x256xf32> to vector<1x256xf32>
      %1572 = arith.mulf %1549, %1571 : vector<1x256xf32>
      %c0_845 = arith.constant 0 : index
      %c0_846 = arith.constant 0 : index
      %c50_847 = arith.constant 50 : index
      %1573 = vector.load %arg2[%c0_845, %c0_846, %c50_847] : memref<1x3x324xf32, #tpu.memory_space<vmem>>, vector<1x1x256xf32>
      %1574 = vector.shape_cast %1573 : vector<1x1x256xf32> to vector<1x256xf32>
      %1575 = arith.mulf %1553, %1574 : vector<1x256xf32>
      %1576 = arith.addf %1572, %1575 : vector<1x256xf32>
      %c0_848 = arith.constant 0 : index
      %c0_849 = arith.constant 0 : index
      %c51_850 = arith.constant 51 : index
      %1577 = vector.load %arg2[%c0_848, %c0_849, %c51_850] : memref<1x3x324xf32, #tpu.memory_space<vmem>>, vector<1x1x256xf32>
      %1578 = vector.shape_cast %1577 : vector<1x1x256xf32> to vector<1x256xf32>
      %1579 = arith.mulf %1556, %1578 : vector<1x256xf32>
      %1580 = arith.addf %1576, %1579 : vector<1x256xf32>
      %1581 = arith.mulf %1542, %1580 : vector<1x256xf32>
      %1582 = arith.addf %1569, %1581 : vector<1x256xf32>
      %c0_851 = arith.constant 0 : index
      %c0_852 = arith.constant 0 : index
      %c65_853 = arith.constant 65 : index
      %1583 = vector.load %arg2[%c0_851, %c0_852, %c65_853] : memref<1x3x324xf32, #tpu.memory_space<vmem>>, vector<1x1x256xf32>
      %1584 = vector.shape_cast %1583 : vector<1x1x256xf32> to vector<1x256xf32>
      %1585 = arith.mulf %1549, %1584 : vector<1x256xf32>
      %c0_854 = arith.constant 0 : index
      %c0_855 = arith.constant 0 : index
      %c66_856 = arith.constant 66 : index
      %1586 = vector.load %arg2[%c0_854, %c0_855, %c66_856] : memref<1x3x324xf32, #tpu.memory_space<vmem>>, vector<1x1x256xf32>
      %1587 = vector.shape_cast %1586 : vector<1x1x256xf32> to vector<1x256xf32>
      %1588 = arith.mulf %1553, %1587 : vector<1x256xf32>
      %1589 = arith.addf %1585, %1588 : vector<1x256xf32>
      %c0_857 = arith.constant 0 : index
      %c0_858 = arith.constant 0 : index
      %c67 = arith.constant 67 : index
      %1590 = vector.load %arg2[%c0_857, %c0_858, %c67] : memref<1x3x324xf32, #tpu.memory_space<vmem>>, vector<1x1x256xf32>
      %1591 = vector.shape_cast %1590 : vector<1x1x256xf32> to vector<1x256xf32>
      %1592 = arith.mulf %1556, %1591 : vector<1x256xf32>
      %1593 = arith.addf %1589, %1592 : vector<1x256xf32>
      %1594 = arith.mulf %1544, %1593 : vector<1x256xf32>
      %1595 = arith.addf %1582, %1594 : vector<1x256xf32>
      %1596 = vector.broadcast %1557 : f32 to vector<1x256xf32>
      %1597 = arith.mulf %1596, %1595 : vector<1x256xf32>
      %1598 = arith.addf %1421, %1597 : vector<1x256xf32>
      %c16_859 = arith.constant 16 : index
      %1599 = memref.load %arg5[%c16_859] : memref<27xf32, #tpu.memory_space<smem>>
      %c0_860 = arith.constant 0 : index
      %c1_861 = arith.constant 1 : index
      %c33_862 = arith.constant 33 : index
      %1600 = vector.load %arg2[%c0_860, %c1_861, %c33_862] : memref<1x3x324xf32, #tpu.memory_space<vmem>>, vector<1x1x256xf32>
      %1601 = vector.shape_cast %1600 : vector<1x1x256xf32> to vector<1x256xf32>
      %1602 = arith.mulf %1549, %1601 : vector<1x256xf32>
      %c0_863 = arith.constant 0 : index
      %c1_864 = arith.constant 1 : index
      %c34_865 = arith.constant 34 : index
      %1603 = vector.load %arg2[%c0_863, %c1_864, %c34_865] : memref<1x3x324xf32, #tpu.memory_space<vmem>>, vector<1x1x256xf32>
      %1604 = vector.shape_cast %1603 : vector<1x1x256xf32> to vector<1x256xf32>
      %1605 = arith.mulf %1553, %1604 : vector<1x256xf32>
      %1606 = arith.addf %1602, %1605 : vector<1x256xf32>
      %c0_866 = arith.constant 0 : index
      %c1_867 = arith.constant 1 : index
      %c35_868 = arith.constant 35 : index
      %1607 = vector.load %arg2[%c0_866, %c1_867, %c35_868] : memref<1x3x324xf32, #tpu.memory_space<vmem>>, vector<1x1x256xf32>
      %1608 = vector.shape_cast %1607 : vector<1x1x256xf32> to vector<1x256xf32>
      %1609 = arith.mulf %1556, %1608 : vector<1x256xf32>
      %1610 = arith.addf %1606, %1609 : vector<1x256xf32>
      %1611 = arith.mulf %1539, %1610 : vector<1x256xf32>
      %c0_869 = arith.constant 0 : index
      %c1_870 = arith.constant 1 : index
      %c49_871 = arith.constant 49 : index
      %1612 = vector.load %arg2[%c0_869, %c1_870, %c49_871] : memref<1x3x324xf32, #tpu.memory_space<vmem>>, vector<1x1x256xf32>
      %1613 = vector.shape_cast %1612 : vector<1x1x256xf32> to vector<1x256xf32>
      %1614 = arith.mulf %1549, %1613 : vector<1x256xf32>
      %c0_872 = arith.constant 0 : index
      %c1_873 = arith.constant 1 : index
      %c50_874 = arith.constant 50 : index
      %1615 = vector.load %arg2[%c0_872, %c1_873, %c50_874] : memref<1x3x324xf32, #tpu.memory_space<vmem>>, vector<1x1x256xf32>
      %1616 = vector.shape_cast %1615 : vector<1x1x256xf32> to vector<1x256xf32>
      %1617 = arith.mulf %1553, %1616 : vector<1x256xf32>
      %1618 = arith.addf %1614, %1617 : vector<1x256xf32>
      %c0_875 = arith.constant 0 : index
      %c1_876 = arith.constant 1 : index
      %c51_877 = arith.constant 51 : index
      %1619 = vector.load %arg2[%c0_875, %c1_876, %c51_877] : memref<1x3x324xf32, #tpu.memory_space<vmem>>, vector<1x1x256xf32>
      %1620 = vector.shape_cast %1619 : vector<1x1x256xf32> to vector<1x256xf32>
      %1621 = arith.mulf %1556, %1620 : vector<1x256xf32>
      %1622 = arith.addf %1618, %1621 : vector<1x256xf32>
      %1623 = arith.mulf %1542, %1622 : vector<1x256xf32>
      %1624 = arith.addf %1611, %1623 : vector<1x256xf32>
      %c0_878 = arith.constant 0 : index
      %c1_879 = arith.constant 1 : index
      %c65_880 = arith.constant 65 : index
      %1625 = vector.load %arg2[%c0_878, %c1_879, %c65_880] : memref<1x3x324xf32, #tpu.memory_space<vmem>>, vector<1x1x256xf32>
      %1626 = vector.shape_cast %1625 : vector<1x1x256xf32> to vector<1x256xf32>
      %1627 = arith.mulf %1549, %1626 : vector<1x256xf32>
      %c0_881 = arith.constant 0 : index
      %c1_882 = arith.constant 1 : index
      %c66_883 = arith.constant 66 : index
      %1628 = vector.load %arg2[%c0_881, %c1_882, %c66_883] : memref<1x3x324xf32, #tpu.memory_space<vmem>>, vector<1x1x256xf32>
      %1629 = vector.shape_cast %1628 : vector<1x1x256xf32> to vector<1x256xf32>
      %1630 = arith.mulf %1553, %1629 : vector<1x256xf32>
      %1631 = arith.addf %1627, %1630 : vector<1x256xf32>
      %c0_884 = arith.constant 0 : index
      %c1_885 = arith.constant 1 : index
      %c67_886 = arith.constant 67 : index
      %1632 = vector.load %arg2[%c0_884, %c1_885, %c67_886] : memref<1x3x324xf32, #tpu.memory_space<vmem>>, vector<1x1x256xf32>
      %1633 = vector.shape_cast %1632 : vector<1x1x256xf32> to vector<1x256xf32>
      %1634 = arith.mulf %1556, %1633 : vector<1x256xf32>
      %1635 = arith.addf %1631, %1634 : vector<1x256xf32>
      %1636 = arith.mulf %1544, %1635 : vector<1x256xf32>
      %1637 = arith.addf %1624, %1636 : vector<1x256xf32>
      %1638 = vector.broadcast %1599 : f32 to vector<1x256xf32>
      %1639 = arith.mulf %1638, %1637 : vector<1x256xf32>
      %1640 = arith.addf %1463, %1639 : vector<1x256xf32>
      %c25_887 = arith.constant 25 : index
      %1641 = memref.load %arg5[%c25_887] : memref<27xf32, #tpu.memory_space<smem>>
      %c0_888 = arith.constant 0 : index
      %c2_889 = arith.constant 2 : index
      %c33_890 = arith.constant 33 : index
      %1642 = vector.load %arg2[%c0_888, %c2_889, %c33_890] : memref<1x3x324xf32, #tpu.memory_space<vmem>>, vector<1x1x256xf32>
      %1643 = vector.shape_cast %1642 : vector<1x1x256xf32> to vector<1x256xf32>
      %1644 = arith.mulf %1549, %1643 : vector<1x256xf32>
      %c0_891 = arith.constant 0 : index
      %c2_892 = arith.constant 2 : index
      %c34_893 = arith.constant 34 : index
      %1645 = vector.load %arg2[%c0_891, %c2_892, %c34_893] : memref<1x3x324xf32, #tpu.memory_space<vmem>>, vector<1x1x256xf32>
      %1646 = vector.shape_cast %1645 : vector<1x1x256xf32> to vector<1x256xf32>
      %1647 = arith.mulf %1553, %1646 : vector<1x256xf32>
      %1648 = arith.addf %1644, %1647 : vector<1x256xf32>
      %c0_894 = arith.constant 0 : index
      %c2_895 = arith.constant 2 : index
      %c35_896 = arith.constant 35 : index
      %1649 = vector.load %arg2[%c0_894, %c2_895, %c35_896] : memref<1x3x324xf32, #tpu.memory_space<vmem>>, vector<1x1x256xf32>
      %1650 = vector.shape_cast %1649 : vector<1x1x256xf32> to vector<1x256xf32>
      %1651 = arith.mulf %1556, %1650 : vector<1x256xf32>
      %1652 = arith.addf %1648, %1651 : vector<1x256xf32>
      %1653 = arith.mulf %1539, %1652 : vector<1x256xf32>
      %c0_897 = arith.constant 0 : index
      %c2_898 = arith.constant 2 : index
      %c49_899 = arith.constant 49 : index
      %1654 = vector.load %arg2[%c0_897, %c2_898, %c49_899] : memref<1x3x324xf32, #tpu.memory_space<vmem>>, vector<1x1x256xf32>
      %1655 = vector.shape_cast %1654 : vector<1x1x256xf32> to vector<1x256xf32>
      %1656 = arith.mulf %1549, %1655 : vector<1x256xf32>
      %c0_900 = arith.constant 0 : index
      %c2_901 = arith.constant 2 : index
      %c50_902 = arith.constant 50 : index
      %1657 = vector.load %arg2[%c0_900, %c2_901, %c50_902] : memref<1x3x324xf32, #tpu.memory_space<vmem>>, vector<1x1x256xf32>
      %1658 = vector.shape_cast %1657 : vector<1x1x256xf32> to vector<1x256xf32>
      %1659 = arith.mulf %1553, %1658 : vector<1x256xf32>
      %1660 = arith.addf %1656, %1659 : vector<1x256xf32>
      %c0_903 = arith.constant 0 : index
      %c2_904 = arith.constant 2 : index
      %c51_905 = arith.constant 51 : index
      %1661 = vector.load %arg2[%c0_903, %c2_904, %c51_905] : memref<1x3x324xf32, #tpu.memory_space<vmem>>, vector<1x1x256xf32>
      %1662 = vector.shape_cast %1661 : vector<1x1x256xf32> to vector<1x256xf32>
      %1663 = arith.mulf %1556, %1662 : vector<1x256xf32>
      %1664 = arith.addf %1660, %1663 : vector<1x256xf32>
      %1665 = arith.mulf %1542, %1664 : vector<1x256xf32>
      %1666 = arith.addf %1653, %1665 : vector<1x256xf32>
      %c0_906 = arith.constant 0 : index
      %c2_907 = arith.constant 2 : index
      %c65_908 = arith.constant 65 : index
      %1667 = vector.load %arg2[%c0_906, %c2_907, %c65_908] : memref<1x3x324xf32, #tpu.memory_space<vmem>>, vector<1x1x256xf32>
      %1668 = vector.shape_cast %1667 : vector<1x1x256xf32> to vector<1x256xf32>
      %1669 = arith.mulf %1549, %1668 : vector<1x256xf32>
      %c0_909 = arith.constant 0 : index
      %c2_910 = arith.constant 2 : index
      %c66_911 = arith.constant 66 : index
      %1670 = vector.load %arg2[%c0_909, %c2_910, %c66_911] : memref<1x3x324xf32, #tpu.memory_space<vmem>>, vector<1x1x256xf32>
      %1671 = vector.shape_cast %1670 : vector<1x1x256xf32> to vector<1x256xf32>
      %1672 = arith.mulf %1553, %1671 : vector<1x256xf32>
      %1673 = arith.addf %1669, %1672 : vector<1x256xf32>
      %c0_912 = arith.constant 0 : index
      %c2_913 = arith.constant 2 : index
      %c67_914 = arith.constant 67 : index
      %1674 = vector.load %arg2[%c0_912, %c2_913, %c67_914] : memref<1x3x324xf32, #tpu.memory_space<vmem>>, vector<1x1x256xf32>
      %1675 = vector.shape_cast %1674 : vector<1x1x256xf32> to vector<1x256xf32>
      %1676 = arith.mulf %1556, %1675 : vector<1x256xf32>
      %1677 = arith.addf %1673, %1676 : vector<1x256xf32>
      %1678 = arith.mulf %1544, %1677 : vector<1x256xf32>
      %1679 = arith.addf %1666, %1678 : vector<1x256xf32>
      %1680 = vector.broadcast %1641 : f32 to vector<1x256xf32>
      %1681 = arith.mulf %1680, %1679 : vector<1x256xf32>
      %1682 = arith.addf %1505, %1681 : vector<1x256xf32>
      %c48_915 = arith.constant 48 : index
      %1683 = memref.load %arg4[%c48_915] : memref<54xf32, #tpu.memory_space<smem>>
      %1684 = vector.broadcast %1683 : f32 to vector<1x256xf32>
      %1685 = arith.mulf %1684, %157 : vector<1x256xf32>
      %c51_916 = arith.constant 51 : index
      %1686 = memref.load %arg4[%c51_916] : memref<54xf32, #tpu.memory_space<smem>>
      %1687 = vector.broadcast %1686 : f32 to vector<1x256xf32>
      %1688 = arith.mulf %1687, %157 : vector<1x256xf32>
      %c49_917 = arith.constant 49 : index
      %1689 = memref.load %arg4[%c49_917] : memref<54xf32, #tpu.memory_space<smem>>
      %1690 = vector.broadcast %1689 : f32 to vector<1x256xf32>
      %1691 = arith.mulf %1690, %213 : vector<1x256xf32>
      %1692 = arith.addf %1685, %1691 : vector<1x256xf32>
      %c52_918 = arith.constant 52 : index
      %1693 = memref.load %arg4[%c52_918] : memref<54xf32, #tpu.memory_space<smem>>
      %1694 = vector.broadcast %1693 : f32 to vector<1x256xf32>
      %1695 = arith.mulf %1694, %213 : vector<1x256xf32>
      %1696 = arith.addf %1688, %1695 : vector<1x256xf32>
      %c50_919 = arith.constant 50 : index
      %1697 = memref.load %arg4[%c50_919] : memref<54xf32, #tpu.memory_space<smem>>
      %1698 = vector.broadcast %1697 : f32 to vector<1x256xf32>
      %1699 = arith.mulf %1698, %269 : vector<1x256xf32>
      %1700 = arith.addf %1692, %1699 : vector<1x256xf32>
      %c53 = arith.constant 53 : index
      %1701 = memref.load %arg4[%c53] : memref<54xf32, #tpu.memory_space<smem>>
      %1702 = vector.broadcast %1701 : f32 to vector<1x256xf32>
      %1703 = arith.mulf %1702, %269 : vector<1x256xf32>
      %1704 = arith.addf %1696, %1703 : vector<1x256xf32>
      %cst_920 = arith.constant -1.000000e+00 : f32
      %cst_921 = arith.constant 1.000000e+00 : f32
      %1705 = vector.broadcast %cst_920 : f32 to vector<1x256xf32>
      %1706 = arith.maximumf %1705, %1700 : vector<1x256xf32>
      %1707 = vector.broadcast %cst_921 : f32 to vector<1x256xf32>
      %1708 = arith.minimumf %1707, %1706 : vector<1x256xf32>
      %cst_922 = arith.constant -1.000000e+00 : f32
      %cst_923 = arith.constant 1.000000e+00 : f32
      %1709 = vector.broadcast %cst_922 : f32 to vector<1x256xf32>
      %1710 = arith.maximumf %1709, %1704 : vector<1x256xf32>
      %1711 = vector.broadcast %cst_923 : f32 to vector<1x256xf32>
      %1712 = arith.minimumf %1711, %1710 : vector<1x256xf32>
      %cst_924 = arith.constant 0.000000e+00 : f32
      %1713 = vector.broadcast %cst_924 : f32 to vector<1x256xf32>
      %1714 = arith.subf %1713, %1708 : vector<1x256xf32>
      %cst_925 = arith.constant 0.000000e+00 : f32
      %1715 = vector.broadcast %cst_925 : f32 to vector<1x256xf32>
      %1716 = arith.maximumf %1714, %1715 : vector<1x256xf32>
      %1717 = math.absf %1708 : vector<1x256xf32>
      %cst_926 = arith.constant 1.000000e+00 : f32
      %1718 = vector.broadcast %cst_926 : f32 to vector<1x256xf32>
      %1719 = arith.subf %1718, %1717 : vector<1x256xf32>
      %cst_927 = arith.constant 0.000000e+00 : f32
      %1720 = vector.broadcast %cst_927 : f32 to vector<1x256xf32>
      %1721 = arith.maximumf %1708, %1720 : vector<1x256xf32>
      %cst_928 = arith.constant 0.000000e+00 : f32
      %1722 = vector.broadcast %cst_928 : f32 to vector<1x256xf32>
      %1723 = arith.subf %1722, %1712 : vector<1x256xf32>
      %cst_929 = arith.constant 0.000000e+00 : f32
      %1724 = vector.broadcast %cst_929 : f32 to vector<1x256xf32>
      %1725 = arith.maximumf %1723, %1724 : vector<1x256xf32>
      %1726 = arith.mulf %1725, %81 : vector<1x256xf32>
      %1727 = math.absf %1712 : vector<1x256xf32>
      %cst_930 = arith.constant 1.000000e+00 : f32
      %1728 = vector.broadcast %cst_930 : f32 to vector<1x256xf32>
      %1729 = arith.subf %1728, %1727 : vector<1x256xf32>
      %1730 = arith.mulf %1729, %91 : vector<1x256xf32>
      %cst_931 = arith.constant 0.000000e+00 : f32
      %1731 = vector.broadcast %cst_931 : f32 to vector<1x256xf32>
      %1732 = arith.maximumf %1712, %1731 : vector<1x256xf32>
      %1733 = arith.mulf %1732, %101 : vector<1x256xf32>
      %c8_932 = arith.constant 8 : index
      %1734 = memref.load %arg5[%c8_932] : memref<27xf32, #tpu.memory_space<smem>>
      %c0_933 = arith.constant 0 : index
      %c0_934 = arith.constant 0 : index
      %c34_935 = arith.constant 34 : index
      %1735 = vector.load %arg2[%c0_933, %c0_934, %c34_935] : memref<1x3x324xf32, #tpu.memory_space<vmem>>, vector<1x1x256xf32>
      %1736 = vector.shape_cast %1735 : vector<1x1x256xf32> to vector<1x256xf32>
      %1737 = arith.mulf %1726, %1736 : vector<1x256xf32>
      %c0_936 = arith.constant 0 : index
      %c0_937 = arith.constant 0 : index
      %c35_938 = arith.constant 35 : index
      %1738 = vector.load %arg2[%c0_936, %c0_937, %c35_938] : memref<1x3x324xf32, #tpu.memory_space<vmem>>, vector<1x1x256xf32>
      %1739 = vector.shape_cast %1738 : vector<1x1x256xf32> to vector<1x256xf32>
      %1740 = arith.mulf %1730, %1739 : vector<1x256xf32>
      %1741 = arith.addf %1737, %1740 : vector<1x256xf32>
      %c0_939 = arith.constant 0 : index
      %c0_940 = arith.constant 0 : index
      %c36_941 = arith.constant 36 : index
      %1742 = vector.load %arg2[%c0_939, %c0_940, %c36_941] : memref<1x3x324xf32, #tpu.memory_space<vmem>>, vector<1x1x256xf32>
      %1743 = vector.shape_cast %1742 : vector<1x1x256xf32> to vector<1x256xf32>
      %1744 = arith.mulf %1733, %1743 : vector<1x256xf32>
      %1745 = arith.addf %1741, %1744 : vector<1x256xf32>
      %1746 = arith.mulf %1716, %1745 : vector<1x256xf32>
      %c0_942 = arith.constant 0 : index
      %c0_943 = arith.constant 0 : index
      %c50_944 = arith.constant 50 : index
      %1747 = vector.load %arg2[%c0_942, %c0_943, %c50_944] : memref<1x3x324xf32, #tpu.memory_space<vmem>>, vector<1x1x256xf32>
      %1748 = vector.shape_cast %1747 : vector<1x1x256xf32> to vector<1x256xf32>
      %1749 = arith.mulf %1726, %1748 : vector<1x256xf32>
      %c0_945 = arith.constant 0 : index
      %c0_946 = arith.constant 0 : index
      %c51_947 = arith.constant 51 : index
      %1750 = vector.load %arg2[%c0_945, %c0_946, %c51_947] : memref<1x3x324xf32, #tpu.memory_space<vmem>>, vector<1x1x256xf32>
      %1751 = vector.shape_cast %1750 : vector<1x1x256xf32> to vector<1x256xf32>
      %1752 = arith.mulf %1730, %1751 : vector<1x256xf32>
      %1753 = arith.addf %1749, %1752 : vector<1x256xf32>
      %c0_948 = arith.constant 0 : index
      %c0_949 = arith.constant 0 : index
      %c52_950 = arith.constant 52 : index
      %1754 = vector.load %arg2[%c0_948, %c0_949, %c52_950] : memref<1x3x324xf32, #tpu.memory_space<vmem>>, vector<1x1x256xf32>
      %1755 = vector.shape_cast %1754 : vector<1x1x256xf32> to vector<1x256xf32>
      %1756 = arith.mulf %1733, %1755 : vector<1x256xf32>
      %1757 = arith.addf %1753, %1756 : vector<1x256xf32>
      %1758 = arith.mulf %1719, %1757 : vector<1x256xf32>
      %1759 = arith.addf %1746, %1758 : vector<1x256xf32>
      %c0_951 = arith.constant 0 : index
      %c0_952 = arith.constant 0 : index
      %c66_953 = arith.constant 66 : index
      %1760 = vector.load %arg2[%c0_951, %c0_952, %c66_953] : memref<1x3x324xf32, #tpu.memory_space<vmem>>, vector<1x1x256xf32>
      %1761 = vector.shape_cast %1760 : vector<1x1x256xf32> to vector<1x256xf32>
      %1762 = arith.mulf %1726, %1761 : vector<1x256xf32>
      %c0_954 = arith.constant 0 : index
      %c0_955 = arith.constant 0 : index
      %c67_956 = arith.constant 67 : index
      %1763 = vector.load %arg2[%c0_954, %c0_955, %c67_956] : memref<1x3x324xf32, #tpu.memory_space<vmem>>, vector<1x1x256xf32>
      %1764 = vector.shape_cast %1763 : vector<1x1x256xf32> to vector<1x256xf32>
      %1765 = arith.mulf %1730, %1764 : vector<1x256xf32>
      %1766 = arith.addf %1762, %1765 : vector<1x256xf32>
      %c0_957 = arith.constant 0 : index
      %c0_958 = arith.constant 0 : index
      %c68 = arith.constant 68 : index
      %1767 = vector.load %arg2[%c0_957, %c0_958, %c68] : memref<1x3x324xf32, #tpu.memory_space<vmem>>, vector<1x1x256xf32>
      %1768 = vector.shape_cast %1767 : vector<1x1x256xf32> to vector<1x256xf32>
      %1769 = arith.mulf %1733, %1768 : vector<1x256xf32>
      %1770 = arith.addf %1766, %1769 : vector<1x256xf32>
      %1771 = arith.mulf %1721, %1770 : vector<1x256xf32>
      %1772 = arith.addf %1759, %1771 : vector<1x256xf32>
      %1773 = vector.broadcast %1734 : f32 to vector<1x256xf32>
      %1774 = arith.mulf %1773, %1772 : vector<1x256xf32>
      %1775 = arith.addf %1598, %1774 : vector<1x256xf32>
      %c17_959 = arith.constant 17 : index
      %1776 = memref.load %arg5[%c17_959] : memref<27xf32, #tpu.memory_space<smem>>
      %c0_960 = arith.constant 0 : index
      %c1_961 = arith.constant 1 : index
      %c34_962 = arith.constant 34 : index
      %1777 = vector.load %arg2[%c0_960, %c1_961, %c34_962] : memref<1x3x324xf32, #tpu.memory_space<vmem>>, vector<1x1x256xf32>
      %1778 = vector.shape_cast %1777 : vector<1x1x256xf32> to vector<1x256xf32>
      %1779 = arith.mulf %1726, %1778 : vector<1x256xf32>
      %c0_963 = arith.constant 0 : index
      %c1_964 = arith.constant 1 : index
      %c35_965 = arith.constant 35 : index
      %1780 = vector.load %arg2[%c0_963, %c1_964, %c35_965] : memref<1x3x324xf32, #tpu.memory_space<vmem>>, vector<1x1x256xf32>
      %1781 = vector.shape_cast %1780 : vector<1x1x256xf32> to vector<1x256xf32>
      %1782 = arith.mulf %1730, %1781 : vector<1x256xf32>
      %1783 = arith.addf %1779, %1782 : vector<1x256xf32>
      %c0_966 = arith.constant 0 : index
      %c1_967 = arith.constant 1 : index
      %c36_968 = arith.constant 36 : index
      %1784 = vector.load %arg2[%c0_966, %c1_967, %c36_968] : memref<1x3x324xf32, #tpu.memory_space<vmem>>, vector<1x1x256xf32>
      %1785 = vector.shape_cast %1784 : vector<1x1x256xf32> to vector<1x256xf32>
      %1786 = arith.mulf %1733, %1785 : vector<1x256xf32>
      %1787 = arith.addf %1783, %1786 : vector<1x256xf32>
      %1788 = arith.mulf %1716, %1787 : vector<1x256xf32>
      %c0_969 = arith.constant 0 : index
      %c1_970 = arith.constant 1 : index
      %c50_971 = arith.constant 50 : index
      %1789 = vector.load %arg2[%c0_969, %c1_970, %c50_971] : memref<1x3x324xf32, #tpu.memory_space<vmem>>, vector<1x1x256xf32>
      %1790 = vector.shape_cast %1789 : vector<1x1x256xf32> to vector<1x256xf32>
      %1791 = arith.mulf %1726, %1790 : vector<1x256xf32>
      %c0_972 = arith.constant 0 : index
      %c1_973 = arith.constant 1 : index
      %c51_974 = arith.constant 51 : index
      %1792 = vector.load %arg2[%c0_972, %c1_973, %c51_974] : memref<1x3x324xf32, #tpu.memory_space<vmem>>, vector<1x1x256xf32>
      %1793 = vector.shape_cast %1792 : vector<1x1x256xf32> to vector<1x256xf32>
      %1794 = arith.mulf %1730, %1793 : vector<1x256xf32>
      %1795 = arith.addf %1791, %1794 : vector<1x256xf32>
      %c0_975 = arith.constant 0 : index
      %c1_976 = arith.constant 1 : index
      %c52_977 = arith.constant 52 : index
      %1796 = vector.load %arg2[%c0_975, %c1_976, %c52_977] : memref<1x3x324xf32, #tpu.memory_space<vmem>>, vector<1x1x256xf32>
      %1797 = vector.shape_cast %1796 : vector<1x1x256xf32> to vector<1x256xf32>
      %1798 = arith.mulf %1733, %1797 : vector<1x256xf32>
      %1799 = arith.addf %1795, %1798 : vector<1x256xf32>
      %1800 = arith.mulf %1719, %1799 : vector<1x256xf32>
      %1801 = arith.addf %1788, %1800 : vector<1x256xf32>
      %c0_978 = arith.constant 0 : index
      %c1_979 = arith.constant 1 : index
      %c66_980 = arith.constant 66 : index
      %1802 = vector.load %arg2[%c0_978, %c1_979, %c66_980] : memref<1x3x324xf32, #tpu.memory_space<vmem>>, vector<1x1x256xf32>
      %1803 = vector.shape_cast %1802 : vector<1x1x256xf32> to vector<1x256xf32>
      %1804 = arith.mulf %1726, %1803 : vector<1x256xf32>
      %c0_981 = arith.constant 0 : index
      %c1_982 = arith.constant 1 : index
      %c67_983 = arith.constant 67 : index
      %1805 = vector.load %arg2[%c0_981, %c1_982, %c67_983] : memref<1x3x324xf32, #tpu.memory_space<vmem>>, vector<1x1x256xf32>
      %1806 = vector.shape_cast %1805 : vector<1x1x256xf32> to vector<1x256xf32>
      %1807 = arith.mulf %1730, %1806 : vector<1x256xf32>
      %1808 = arith.addf %1804, %1807 : vector<1x256xf32>
      %c0_984 = arith.constant 0 : index
      %c1_985 = arith.constant 1 : index
      %c68_986 = arith.constant 68 : index
      %1809 = vector.load %arg2[%c0_984, %c1_985, %c68_986] : memref<1x3x324xf32, #tpu.memory_space<vmem>>, vector<1x1x256xf32>
      %1810 = vector.shape_cast %1809 : vector<1x1x256xf32> to vector<1x256xf32>
      %1811 = arith.mulf %1733, %1810 : vector<1x256xf32>
      %1812 = arith.addf %1808, %1811 : vector<1x256xf32>
      %1813 = arith.mulf %1721, %1812 : vector<1x256xf32>
      %1814 = arith.addf %1801, %1813 : vector<1x256xf32>
      %1815 = vector.broadcast %1776 : f32 to vector<1x256xf32>
      %1816 = arith.mulf %1815, %1814 : vector<1x256xf32>
      %1817 = arith.addf %1640, %1816 : vector<1x256xf32>
      %c26_987 = arith.constant 26 : index
      %1818 = memref.load %arg5[%c26_987] : memref<27xf32, #tpu.memory_space<smem>>
      %c0_988 = arith.constant 0 : index
      %c2_989 = arith.constant 2 : index
      %c34_990 = arith.constant 34 : index
      %1819 = vector.load %arg2[%c0_988, %c2_989, %c34_990] : memref<1x3x324xf32, #tpu.memory_space<vmem>>, vector<1x1x256xf32>
      %1820 = vector.shape_cast %1819 : vector<1x1x256xf32> to vector<1x256xf32>
      %1821 = arith.mulf %1726, %1820 : vector<1x256xf32>
      %c0_991 = arith.constant 0 : index
      %c2_992 = arith.constant 2 : index
      %c35_993 = arith.constant 35 : index
      %1822 = vector.load %arg2[%c0_991, %c2_992, %c35_993] : memref<1x3x324xf32, #tpu.memory_space<vmem>>, vector<1x1x256xf32>
      %1823 = vector.shape_cast %1822 : vector<1x1x256xf32> to vector<1x256xf32>
      %1824 = arith.mulf %1730, %1823 : vector<1x256xf32>
      %1825 = arith.addf %1821, %1824 : vector<1x256xf32>
      %c0_994 = arith.constant 0 : index
      %c2_995 = arith.constant 2 : index
      %c36_996 = arith.constant 36 : index
      %1826 = vector.load %arg2[%c0_994, %c2_995, %c36_996] : memref<1x3x324xf32, #tpu.memory_space<vmem>>, vector<1x1x256xf32>
      %1827 = vector.shape_cast %1826 : vector<1x1x256xf32> to vector<1x256xf32>
      %1828 = arith.mulf %1733, %1827 : vector<1x256xf32>
      %1829 = arith.addf %1825, %1828 : vector<1x256xf32>
      %1830 = arith.mulf %1716, %1829 : vector<1x256xf32>
      %c0_997 = arith.constant 0 : index
      %c2_998 = arith.constant 2 : index
      %c50_999 = arith.constant 50 : index
      %1831 = vector.load %arg2[%c0_997, %c2_998, %c50_999] : memref<1x3x324xf32, #tpu.memory_space<vmem>>, vector<1x1x256xf32>
      %1832 = vector.shape_cast %1831 : vector<1x1x256xf32> to vector<1x256xf32>
      %1833 = arith.mulf %1726, %1832 : vector<1x256xf32>
      %c0_1000 = arith.constant 0 : index
      %c2_1001 = arith.constant 2 : index
      %c51_1002 = arith.constant 51 : index
      %1834 = vector.load %arg2[%c0_1000, %c2_1001, %c51_1002] : memref<1x3x324xf32, #tpu.memory_space<vmem>>, vector<1x1x256xf32>
      %1835 = vector.shape_cast %1834 : vector<1x1x256xf32> to vector<1x256xf32>
      %1836 = arith.mulf %1730, %1835 : vector<1x256xf32>
      %1837 = arith.addf %1833, %1836 : vector<1x256xf32>
      %c0_1003 = arith.constant 0 : index
      %c2_1004 = arith.constant 2 : index
      %c52_1005 = arith.constant 52 : index
      %1838 = vector.load %arg2[%c0_1003, %c2_1004, %c52_1005] : memref<1x3x324xf32, #tpu.memory_space<vmem>>, vector<1x1x256xf32>
      %1839 = vector.shape_cast %1838 : vector<1x1x256xf32> to vector<1x256xf32>
      %1840 = arith.mulf %1733, %1839 : vector<1x256xf32>
      %1841 = arith.addf %1837, %1840 : vector<1x256xf32>
      %1842 = arith.mulf %1719, %1841 : vector<1x256xf32>
      %1843 = arith.addf %1830, %1842 : vector<1x256xf32>
      %c0_1006 = arith.constant 0 : index
      %c2_1007 = arith.constant 2 : index
      %c66_1008 = arith.constant 66 : index
      %1844 = vector.load %arg2[%c0_1006, %c2_1007, %c66_1008] : memref<1x3x324xf32, #tpu.memory_space<vmem>>, vector<1x1x256xf32>
      %1845 = vector.shape_cast %1844 : vector<1x1x256xf32> to vector<1x256xf32>
      %1846 = arith.mulf %1726, %1845 : vector<1x256xf32>
      %c0_1009 = arith.constant 0 : index
      %c2_1010 = arith.constant 2 : index
      %c67_1011 = arith.constant 67 : index
      %1847 = vector.load %arg2[%c0_1009, %c2_1010, %c67_1011] : memref<1x3x324xf32, #tpu.memory_space<vmem>>, vector<1x1x256xf32>
      %1848 = vector.shape_cast %1847 : vector<1x1x256xf32> to vector<1x256xf32>
      %1849 = arith.mulf %1730, %1848 : vector<1x256xf32>
      %1850 = arith.addf %1846, %1849 : vector<1x256xf32>
      %c0_1012 = arith.constant 0 : index
      %c2_1013 = arith.constant 2 : index
      %c68_1014 = arith.constant 68 : index
      %1851 = vector.load %arg2[%c0_1012, %c2_1013, %c68_1014] : memref<1x3x324xf32, #tpu.memory_space<vmem>>, vector<1x1x256xf32>
      %1852 = vector.shape_cast %1851 : vector<1x1x256xf32> to vector<1x256xf32>
      %1853 = arith.mulf %1733, %1852 : vector<1x256xf32>
      %1854 = arith.addf %1850, %1853 : vector<1x256xf32>
      %1855 = arith.mulf %1721, %1854 : vector<1x256xf32>
      %1856 = arith.addf %1843, %1855 : vector<1x256xf32>
      %1857 = vector.broadcast %1818 : f32 to vector<1x256xf32>
      %1858 = arith.mulf %1857, %1856 : vector<1x256xf32>
      %1859 = arith.addf %1682, %1858 : vector<1x256xf32>
      %c0_1015 = arith.constant 0 : index
      %c0_1016 = arith.constant 0 : index
      %c0_1017 = arith.constant 0 : index
      %1860 = vector.load %arg8[%c0_1015, %c0_1016, %c0_1017] : memref<1x3x256xf32, #tpu.memory_space<vmem>>, vector<1x1x256xf32>
      %1861 = vector.shape_cast %1860 : vector<1x1x256xf32> to vector<1x256xf32>
      %1862 = vector.shape_cast %1775 : vector<1x256xf32> to vector<1x1x256xf32>
      tpu.vector_store %arg8[%c0_1015, %c0_1016, %c0_1017], %1862 {strides = array<i32>} : memref<1x3x256xf32, #tpu.memory_space<vmem>>, vector<1x1x256xf32>,
      %c0_1018 = arith.constant 0 : index
      %c1_1019 = arith.constant 1 : index
      %c0_1020 = arith.constant 0 : index
      %1863 = vector.load %arg8[%c0_1018, %c1_1019, %c0_1020] : memref<1x3x256xf32, #tpu.memory_space<vmem>>, vector<1x1x256xf32>
      %1864 = vector.shape_cast %1863 : vector<1x1x256xf32> to vector<1x256xf32>
      %1865 = vector.shape_cast %1817 : vector<1x256xf32> to vector<1x1x256xf32>
      tpu.vector_store %arg8[%c0_1018, %c1_1019, %c0_1020], %1865 {strides = array<i32>} : memref<1x3x256xf32, #tpu.memory_space<vmem>>, vector<1x1x256xf32>,
      %c0_1021 = arith.constant 0 : index
      %c2_1022 = arith.constant 2 : index
      %c0_1023 = arith.constant 0 : index
      %1866 = vector.load %arg8[%c0_1021, %c2_1022, %c0_1023] : memref<1x3x256xf32, #tpu.memory_space<vmem>>, vector<1x1x256xf32>
      %1867 = vector.shape_cast %1866 : vector<1x1x256xf32> to vector<1x256xf32>
      %1868 = vector.shape_cast %1859 : vector<1x256xf32> to vector<1x1x256xf32>
      tpu.vector_store %arg8[%c0_1021, %c2_1022, %c0_1023], %1868 {strides = array<i32>} : memref<1x3x256xf32, #tpu.memory_space<vmem>>, vector<1x1x256xf32>,
    } else {
    }
    %c0 = arith.constant 0 : index
    %c0_1 = arith.constant 0 : index
    %3 = vector.load %arg6[%c0, %c0_1] : memref<64x3xf32, #tpu.memory_space<vmem>>, vector<64x1xf32>
    %c0_2 = arith.constant 0 : index
    %c0_3 = arith.constant 0 : index
    %c0_4 = arith.constant 0 : index
    %4 = vector.load %arg8[%c0_2, %c0_3, %c0_4] : memref<1x3x256xf32, #tpu.memory_space<vmem>>, vector<1x1x256xf32>
    %5 = vector.shape_cast %4 : vector<1x1x256xf32> to vector<1x256xf32>
    %6 = vector.broadcast %3 : vector<64x1xf32> to vector<64x256xf32>
    %7 = vector.broadcast %5 : vector<1x256xf32> to vector<64x256xf32>
    %8 = arith.mulf %6, %7 : vector<64x256xf32>
    %c0_5 = arith.constant 0 : index
    %c1 = arith.constant 1 : index
    %9 = vector.load %arg6[%c0_5, %c1] : memref<64x3xf32, #tpu.memory_space<vmem>>, vector<64x1xf32>
    %c0_6 = arith.constant 0 : index
    %c1_7 = arith.constant 1 : index
    %c0_8 = arith.constant 0 : index
    %10 = vector.load %arg8[%c0_6, %c1_7, %c0_8] : memref<1x3x256xf32, #tpu.memory_space<vmem>>, vector<1x1x256xf32>
    %11 = vector.shape_cast %10 : vector<1x1x256xf32> to vector<1x256xf32>
    %12 = vector.broadcast %9 : vector<64x1xf32> to vector<64x256xf32>
    %13 = vector.broadcast %11 : vector<1x256xf32> to vector<64x256xf32>
    %14 = arith.mulf %12, %13 : vector<64x256xf32>
    %15 = arith.addf %8, %14 : vector<64x256xf32>
    %c0_9 = arith.constant 0 : index
    %c2 = arith.constant 2 : index
    %16 = vector.load %arg6[%c0_9, %c2] : memref<64x3xf32, #tpu.memory_space<vmem>>, vector<64x1xf32>
    %c0_10 = arith.constant 0 : index
    %c2_11 = arith.constant 2 : index
    %c0_12 = arith.constant 0 : index
    %17 = vector.load %arg8[%c0_10, %c2_11, %c0_12] : memref<1x3x256xf32, #tpu.memory_space<vmem>>, vector<1x1x256xf32>
    %18 = vector.shape_cast %17 : vector<1x1x256xf32> to vector<1x256xf32>
    %19 = vector.broadcast %16 : vector<64x1xf32> to vector<64x256xf32>
    %20 = vector.broadcast %18 : vector<1x256xf32> to vector<64x256xf32>
    %21 = arith.mulf %19, %20 : vector<64x256xf32>
    %22 = arith.addf %15, %21 : vector<64x256xf32>
    %cst = arith.constant 3.000000e+00 : f32
    %23 = vector.broadcast %cst : f32 to vector<64x256xf32>
    %24 = arith.addf %22, %23 : vector<64x256xf32>
    %cst_13 = arith.constant 0.000000e+00 : f32
    %cst_14 = arith.constant 6.000000e+00 : f32
    %25 = vector.broadcast %cst_13 : f32 to vector<64x256xf32>
    %26 = arith.maximumf %25, %24 : vector<64x256xf32>
    %27 = vector.broadcast %cst_14 : f32 to vector<64x256xf32>
    %28 = arith.minimumf %27, %26 : vector<64x256xf32>
    %29 = arith.mulf %22, %28 : vector<64x256xf32>
    %cst_15 = arith.constant 0.166666672 : f32
    %30 = vector.broadcast %cst_15 : f32 to vector<64x256xf32>
    %31 = arith.mulf %29, %30 : vector<64x256xf32>
    %c0_16 = arith.constant 0 : index
    %c0_17 = arith.constant 0 : index
    %c0_18 = arith.constant 0 : index
    %32 = vector.load %arg7[%c0_16, %c0_17, %c0_18] : memref<1x64x256xf32, #tpu.memory_space<vmem>>, vector<1x64x256xf32>
    %33 = vector.shape_cast %32 : vector<1x64x256xf32> to vector<64x256xf32>
    %34 = vector.shape_cast %31 : vector<64x256xf32> to vector<1x64x256xf32>
    tpu.vector_store %arg7[%c0_16, %c0_17, %c0_18], %34 {strides = array<i32>} : memref<1x64x256xf32, #tpu.memory_space<vmem>>, vector<1x64x256xf32>,
    return
  }
  func.func @transform_0(%arg0: i32, %arg1: i32) -> (i32, i32, i32) {
    %c0_i32 = arith.constant 0 : i32
    %c0_i32_0 = arith.constant 0 : i32
    %c0_i32_1 = arith.constant 0 : i32
    return %arg0, %c0_i32, %c0_i32_0 : i32, i32, i32
  }
  func.func @transform_1(%arg0: i32, %arg1: i32) -> i32 {
    %c0_i32 = arith.constant 0 : i32
    %c0_i32_0 = arith.constant 0 : i32
    return %c0_i32 : i32
  }
  func.func @transform_2(%arg0: i32, %arg1: i32) -> i32 {
    %c0_i32 = arith.constant 0 : i32
    %c0_i32_0 = arith.constant 0 : i32
    return %c0_i32 : i32
  }
  func.func @transform_3(%arg0: i32, %arg1: i32) -> i32 {
    %c0_i32 = arith.constant 0 : i32
    %c0_i32_0 = arith.constant 0 : i32
    return %c0_i32 : i32
  }
  func.func @transform_4(%arg0: i32, %arg1: i32) -> (i32, i32) {
    %c0_i32 = arith.constant 0 : i32
    %c0_i32_0 = arith.constant 0 : i32
    return %arg1, %c0_i32 : i32, i32
  }
  func.func @transform_5(%arg0: i32, %arg1: i32) -> (i32, i32, i32) {
    %c0_i32 = arith.constant 0 : i32
    %c0_i32_0 = arith.constant 0 : i32
    return %arg0, %arg1, %c0_i32 : i32, i32, i32
  }
}

</mosaic_0001>

<llo_original>
// kernel: dwc_patch_embed_forward.1
$region0: #{dwc_patch_embed_forward.1}
  #allocation0 [shape = 'u32[]', space=smem, size = 0x4, offset = 0x4, fixed_abs, tag = 'smem constant byte address 0x4 - core index']
  #allocation1 [shape = 'u32[72,128]{1,0:T(1,128)}', space=vmem, size = 0x9000, scoped, tag = 'internal scratch']
  #allocation2 [shape = 'f32[1,3,256]{2,1,0:T(4,128)}', space=vmem, size = 0x1000, scoped, tag = 'scratch operand']
  %s0 = inlined_call_operand.vmem [shape: f32[2,3,324], index: 0, kind: input, shape index: {}]
  %s1 = inlined_call_operand.vmem [shape: f32[27], index: 1, kind: input, shape index: {}]
  %s2 = inlined_call_operand.vmem [shape: f32[54], index: 2, kind: input, shape index: {}]
  %s3 = inlined_call_operand.vmem [shape: f32[27], index: 3, kind: input, shape index: {}]
  %s4 = inlined_call_operand.vmem [shape: f32[64,3], index: 4, kind: input, shape index: {}]
  %s5 = inlined_call_operand.vmem [shape: f32[2,64,256], index: 5, kind: output, shape index: {}]
  %s6 = sld [smem:[#allocation0]]
  $region69: #{dwc_patch_embed_forward.1} parent=0
    _
  %s8 = ssub.s32 1, %s6
  %s9 = scalar_select 0, %s8, %s6
  $region1: #{dwc_patch_embed_forward.1} parent=0
    #allocation3 [shape = 'u8[512]{0}', space=smem, size = 0x200, scoped, tag = 'input window, operand 1, single buffered']
    #allocation4 [shape = 's32[2]{0}', space=sflag, size = 0x8, scoped, tag = 'scoped memory for dwc_patch_embed_forward.1']
    #allocation5 [shape = 'u8[512]{0}', space=smem, size = 0x200, scoped, tag = 'input window, operand 2, single buffered']
    #allocation6 [shape = 's32[1]{0}', space=sflag, size = 0x4, scoped, tag = 'scoped memory for dwc_patch_embed_forward.1']
    #allocation7 [shape = 'u8[512]{0}', space=smem, size = 0x200, scoped, tag = 'input window, operand 3, single buffered']
    %10 = vsyncpa [#allocation4], 0
    %11 = vsyncpa [#allocation6], 0
    loop: start=0, step=1, limit=4
    $region2: #{dwc_patch_embed_forward.1} parent=1 // loop_pre_header
      _
    $region3: #{dwc_patch_embed_forward.1} parent=1 // loop_header
      %s13 = sphi 0, %s17
      %p14 = scmp.ge.s32.totalorder %s13, 4
      %s20 = sphi 0, %s32
      %s21 = sphi 0, %s28
      %s22 = sphi 0, %s20
      %s23 = sphi 0, %s21
      %s24 = sphi 0, %s22
      %s25 = sphi 0, %s23
      %s35 = sphi 0, %s37
      %s38 = sphi 0, %s35
      %s39 = sphi 0, %s38
      %s55 = sphi 0, %s39
      %s59 = sphi 0, %s59
      %s61 = sphi 0, %s59
      %s62 = sphi 0, %s61
      %s76 = sphi 0, %s62
      %s80 = sphi 0, %s80
      %s82 = sphi 0, %s80
      %s83 = sphi 0, %s82
      %s97 = sphi 0, %s83
      %s101 = sphi 0, %s101
      %s103 = sphi 0, %s101
      %s104 = sphi 0, %s103
      %s118 = sphi 0, %s104
      %s124 = sphi 0, %s126
      %s127 = sphi 0, %s124
      %s128 = sphi 0, %s127
      %s144 = sphi 0, %s128
      %s152 = sphi 0, %s154
      %s155 = sphi 0, %s152
      %s156 = sphi 0, %s155
      %s172 = sphi 0, %s156
    $region4: #{dwc_patch_embed_forward.1} parent=1 // loop_header_branch
      %16 = sbr.rel (%p14) target = $region8
    $region5: #{dwc_patch_embed_forward.1} parent=1 // loop_body
      %s18 = ssub.s32 %s13, 1
      %s19 = ssub.s32 %s13, 2
      %s26 = sadd.s32 1, %s21
      %p27 = scmp.ge.s32.totalorder %s26, 1
      %s28 = scalar_select %p27, 0, %s26
      %s29 = sadd.s32 1, %s20
      %s30 = scalar_select %p27, %s29, %s20
      %p31 = scmp.ge.s32.totalorder %s30, 2
      %s32 = scalar_select %p31, 0, %s30
      %s33 = ssub.s32 %s20, %s32
      %p34 = scmp.eq.s32.totalorder %s33, 0
      %s36 = sadd.s32 %s35, 1
      %s37 = scalar_select %p34, %s35, %s36
      %p40 = pneg %p34
      %p41 = scmp.eq.s32.totalorder %s13, 1
      %p42 = por %p40, %p41
      %p43 = scmp.ne.s32.totalorder %s35, %s38
      %p44 = scmp.eq.s32.totalorder %s13, 0
      %p45 = por %p43, %p44
      %p46 = scmp.ne.s32.totalorder %s35, %s38
      %p47 = scmp.eq.s32.totalorder %s18, 1
      %p48 = por %p46, %p47
      %p49 = scmp.ne.s32.totalorder %s38, %s39
      %p50 = scmp.eq.s32.totalorder %s18, 0
      %p51 = por %p49, %p50
      %p52 = scmp.ne.s32.totalorder %s38, %s39
      %p53 = scmp.eq.s32.totalorder %s19, 1
      %p54 = por %p52, %p53
      %p56 = scmp.ne.s32.totalorder %s39, %s55
      %p57 = scmp.eq.s32.totalorder %s19, 0
      %p58 = por %p56, %p57
      %s60 = sadd.s32 %s59, 1
      %p63 = scmp.eq.s32.totalorder %s13, 1
      %p64 = scmp.ne.s32.totalorder %s59, %s61
      %p65 = scmp.eq.s32.totalorder %s13, 0
      %p66 = por %p64, %p65
      %p67 = scmp.ne.s32.totalorder %s59, %s61
      %p68 = scmp.eq.s32.totalorder %s18, 1
      %p69 = por %p67, %p68
      %p70 = scmp.ne.s32.totalorder %s61, %s62
      %p71 = scmp.eq.s32.totalorder %s18, 0
      %p72 = por %p70, %p71
      %p73 = scmp.ne.s32.totalorder %s61, %s62
      %p74 = scmp.eq.s32.totalorder %s19, 1
      %p75 = por %p73, %p74
      %p77 = scmp.ne.s32.totalorder %s62, %s76
      %p78 = scmp.eq.s32.totalorder %s19, 0
      %p79 = por %p77, %p78
      %s81 = sadd.s32 %s80, 1
      %p84 = scmp.eq.s32.totalorder %s13, 1
      %p85 = scmp.ne.s32.totalorder %s80, %s82
      %p86 = scmp.eq.s32.totalorder %s13, 0
      %p87 = por %p85, %p86
      %p88 = scmp.ne.s32.totalorder %s80, %s82
      %p89 = scmp.eq.s32.totalorder %s18, 1
      %p90 = por %p88, %p89
      %p91 = scmp.ne.s32.totalorder %s82, %s83
      %p92 = scmp.eq.s32.totalorder %s18, 0
      %p93 = por %p91, %p92
      %p94 = scmp.ne.s32.totalorder %s82, %s83
      %p95 = scmp.eq.s32.totalorder %s19, 1
      %p96 = por %p94, %p95
      %p98 = scmp.ne.s32.totalorder %s83, %s97
      %p99 = scmp.eq.s32.totalorder %s19, 0
      %p100 = por %p98, %p99
      %s102 = sadd.s32 %s101, 1
      %p105 = scmp.eq.s32.totalorder %s13, 1
      %p106 = scmp.ne.s32.totalorder %s101, %s103
      %p107 = scmp.eq.s32.totalorder %s13, 0
      %p108 = por %p106, %p107
      %p109 = scmp.ne.s32.totalorder %s101, %s103
      %p110 = scmp.eq.s32.totalorder %s18, 1
      %p111 = por %p109, %p110
      %p112 = scmp.ne.s32.totalorder %s103, %s104
      %p113 = scmp.eq.s32.totalorder %s18, 0
      %p114 = por %p112, %p113
      %p115 = scmp.ne.s32.totalorder %s103, %s104
      %p116 = scmp.eq.s32.totalorder %s19, 1
      %p117 = por %p115, %p116
      %p119 = scmp.ne.s32.totalorder %s104, %s118
      %p120 = scmp.eq.s32.totalorder %s19, 0
      %p121 = por %p119, %p120
      %s122 = ssub.s32 %s21, %s28
      %p123 = scmp.eq.s32.totalorder %s122, 0
      %s125 = sadd.s32 %s124, 1
      %s126 = scalar_select %p123, %s124, %s125
      %p129 = pneg %p123
      %p130 = scmp.eq.s32.totalorder %s13, 1
      %p131 = por %p129, %p130
      %p132 = scmp.ne.s32.totalorder %s124, %s127
      %p133 = scmp.eq.s32.totalorder %s13, 0
      %p134 = por %p132, %p133
      %p135 = scmp.ne.s32.totalorder %s124, %s127
      %p136 = scmp.eq.s32.totalorder %s18, 1
      %p137 = por %p135, %p136
      %p138 = scmp.ne.s32.totalorder %s127, %s128
      %p139 = scmp.eq.s32.totalorder %s18, 0
      %p140 = por %p138, %p139
      %p141 = scmp.ne.s32.totalorder %s127, %s128
      %p142 = scmp.eq.s32.totalorder %s19, 1
      %p143 = por %p141, %p142
      %p145 = scmp.ne.s32.totalorder %s128, %s144
      %p146 = scmp.eq.s32.totalorder %s19, 0
      %p147 = por %p145, %p146
      %s148 = ssub.s32 %s20, %s32
      %s149 = ssub.s32 %s21, %s28
      %s150 = sor.u32 %s148, %s149
      %p151 = scmp.eq.s32.totalorder %s150, 0
      %s153 = sadd.s32 %s152, 1
      %s154 = scalar_select %p151, %s152, %s153
      %p157 = pneg %p151
      %p158 = scmp.eq.s32.totalorder %s13, 1
      %p159 = por %p157, %p158
      %p160 = scmp.ne.s32.totalorder %s152, %s155
      %p161 = scmp.eq.s32.totalorder %s13, 0
      %p162 = por %p160, %p161
      %p163 = scmp.ne.s32.totalorder %s152, %s155
      %p164 = scmp.eq.s32.totalorder %s18, 1
      %p165 = por %p163, %p164
      %p166 = scmp.ne.s32.totalorder %s155, %s156
      %p167 = scmp.eq.s32.totalorder %s18, 0
      %p168 = por %p166, %p167
      %p169 = scmp.ne.s32.totalorder %s155, %s156
      %p170 = scmp.eq.s32.totalorder %s19, 1
      %p171 = por %p169, %p170
      %p173 = scmp.ne.s32.totalorder %s156, %s172
      %p174 = scmp.eq.s32.totalorder %s19, 0
      %p175 = por %p173, %p174
      %p176 = scmp.le.s32.totalorder 1, %s13
      %p177 = scmp.lt.s32.totalorder %s13, 3
      %p178 = pnand %p176, %p177
      %p179 = pneg %p178
      // Predicated region
      $region9: #{dwc_patch_embed_forward.1} parent=5 // pred_check
        _
      $region10: #{dwc_patch_embed_forward.1} parent=5 // pred_check_branch
        %181 = sbr.rel (%p178) target = $region12
      $region11: #{dwc_patch_embed_forward.1} parent=5 // pred_region
        %s182 = ssub.s32 %s13, 1
        // Predicated region
        $region13: #{dwc_patch_embed_forward.1} parent=11 // pred_check
          %p183 = pneg %p72
        $region14: #{dwc_patch_embed_forward.1} parent=11 // pred_check_branch
          %185 = sbr.rel (%p183) target = $region16
        $region15: #{dwc_patch_embed_forward.1} parent=11 // pred_region
          %187 = vsyncadd [#allocation4], 0
          %s189 = sshll.u32 %s1, 4
          %s190 = int_to_ptr.vmem [resolvable:$true] %s189
          %192 = dma.vmem_to_smem %s190, 16, [#allocation3], [#allocation4]
        $region16: #{dwc_patch_embed_forward.1} parent=11 // pred_fallthru
          _
        // Predicated region
        $region17: #{dwc_patch_embed_forward.1} parent=11 // pred_check
          %p193 = pneg %p93
        $region18: #{dwc_patch_embed_forward.1} parent=11 // pred_check_branch
          %195 = sbr.rel (%p193) target = $region20
        $region19: #{dwc_patch_embed_forward.1} parent=11 // pred_region
          %197 = vsyncadd [#allocation6], 0
          %s199 = sshll.u32 %s2, 4
          %s200 = int_to_ptr.vmem [resolvable:$true] %s199
          %202 = dma.vmem_to_smem %s200, 16, [#allocation5], [#allocation6]
        $region20: #{dwc_patch_embed_forward.1} parent=11 // pred_fallthru
          _
        // Predicated region
        $region21: #{dwc_patch_embed_forward.1} parent=11 // pred_check
          %p203 = pneg %p114
        $region22: #{dwc_patch_embed_forward.1} parent=11 // pred_check_branch
          %205 = sbr.rel (%p203) target = $region24
        $region23: #{dwc_patch_embed_forward.1} parent=11 // pred_region
          %207 = vsyncadd [#allocation6], 0
          %s209 = sshll.u32 %s3, 4
          %s210 = int_to_ptr.vmem [resolvable:$true] %s209
          %212 = dma.vmem_to_smem %s210, 16, [#allocation7], [#allocation6]
        $region24: #{dwc_patch_embed_forward.1} parent=11 // pred_fallthru
          _
        // Predicated region
        $region25: #{dwc_patch_embed_forward.1} parent=11 // pred_check
          %p213 = pneg %p140
        $region26: #{dwc_patch_embed_forward.1} parent=11 // pred_check_branch
          %215 = sbr.rel (%p213) target = $region28
        $region27: #{dwc_patch_embed_forward.1} parent=11 // pred_region
          %s216 = smul.u32 8, %s23
          %p217 = scmp.lt.s32.totalorder %s216, 7
          %s218 = scalar_select %p217, %s216, 7
          %s219 = smul.addr %s218, 8
          %s220 = scalar_lea.vmem %s4, %s219
          %s221 = smul.u32 8, %s23
        $region28: #{dwc_patch_embed_forward.1} parent=11 // pred_fallthru
          _
      $region12: #{dwc_patch_embed_forward.1} parent=5 // pred_fallthru
        _
      %p222 = scmp.lt.s32.totalorder %s13, 2
      // Predicated region
      $region29: #{dwc_patch_embed_forward.1} parent=5 // pred_check
        %p223 = pneg %p222
      $region30: #{dwc_patch_embed_forward.1} parent=5 // pred_check_branch
        %225 = sbr.rel (%p223) target = $region32
      $region31: #{dwc_patch_embed_forward.1} parent=5 // pred_region
        // Predicated region
        $region33: #{dwc_patch_embed_forward.1} parent=31 // pred_check
          %p226 = pneg %p45
        $region34: #{dwc_patch_embed_forward.1} parent=31 // pred_check_branch
          %228 = sbr.rel (%p226) target = $region36
        $region35: #{dwc_patch_embed_forward.1} parent=31 // pred_region
          %p229 = scmp.lt.s32.totalorder %s20, 1
          %s230 = scalar_select %p229, %s20, 1
          %s231 = smul.addr %s230, 3
          %s232 = smul.addr %s231, 4
          %s233 = scalar_lea.vmem %s0, %s232
        $region36: #{dwc_patch_embed_forward.1} parent=31 // pred_fallthru
          _
      $region32: #{dwc_patch_embed_forward.1} parent=5 // pred_fallthru
        _
      %p234 = scmp.le.s32.totalorder 1, %s13
      %p235 = scmp.lt.s32.totalorder %s13, 3
      %p236 = pnand %p234, %p235
      %p237 = pneg %p236
      // Predicated region
      $region37: #{dwc_patch_embed_forward.1} parent=5 // pred_check
        _
      $region38: #{dwc_patch_embed_forward.1} parent=5 // pred_check_branch
        %239 = sbr.rel (%p236) target = $region40
      $region39: #{dwc_patch_embed_forward.1} parent=5 // pred_region
        %s240 = ssub.s32 %s13, 1
        // Predicated region
        $region41: #{dwc_patch_embed_forward.1} parent=39 // pred_check
          %p241 = pneg %p72
        $region42: #{dwc_patch_embed_forward.1} parent=39 // pred_check_branch
          %243 = sbr.rel (%p241) target = $region44
        $region43: #{dwc_patch_embed_forward.1} parent=39 // pred_region
          %245 = dma.done [#allocation4], 16
        $region44: #{dwc_patch_embed_forward.1} parent=39 // pred_fallthru
          _
        // Predicated region
        $region45: #{dwc_patch_embed_forward.1} parent=39 // pred_check
          %p246 = pneg %p93
        $region46: #{dwc_patch_embed_forward.1} parent=39 // pred_check_branch
          %248 = sbr.rel (%p246) target = $region48
        $region47: #{dwc_patch_embed_forward.1} parent=39 // pred_region
          %250 = dma.done [#allocation6], 16
        $region48: #{dwc_patch_embed_forward.1} parent=39 // pred_fallthru
          _
        // Predicated region
        $region49: #{dwc_patch_embed_forward.1} parent=39 // pred_check
          %p251 = pneg %p114
        $region50: #{dwc_patch_embed_forward.1} parent=39 // pred_check_branch
          %253 = sbr.rel (%p251) target = $region52
        $region51: #{dwc_patch_embed_forward.1} parent=39 // pred_region
          %255 = dma.done [#allocation6], 16
        $region52: #{dwc_patch_embed_forward.1} parent=39 // pred_fallthru
          _
        %256 = sfence
        %p257 = scmp.lt.s32.totalorder %s22, 1
        %s258 = scalar_select %p257, %s22, 1
        %s259 = smul.addr %s258, 3
        %s260 = smul.addr %s259, 4
        %s261 = scalar_lea.vmem %s0, %s260
        %p262 = pneg %p51
        %p263 = pneg %p48
        %p264 = pneg %p72
        %p265 = pneg %p69
        %p266 = pneg %p93
        %p267 = pneg %p90
        %p268 = pneg %p114
        %p269 = pneg %p111
        %s270 = smul.u32 8, %s23
        %p271 = scmp.lt.s32.totalorder %s270, 7
        %s272 = scalar_select %p271, %s270, 7
        %s273 = smul.addr %s272, 8
        %s274 = scalar_lea.vmem %s4, %s273
        %p275 = pneg %p140
        %p276 = pneg %p137
        %p277 = pneg %p168
        %p278 = pneg %p165
        %s279 = smul.u32 8, %s23
        %p280 = scmp.lt.s32.totalorder %s22, 1
        %s281 = scalar_select %p280, %s22, 1
        %p282 = scmp.lt.s32.totalorder %s279, 7
        %s283 = scalar_select %p282, %s279, 7
        %s284 = smul.addr %s283, 2
        %s285 = smul.addr %s281, 16
        %s286 = sadd.s32 %s284, %s285
        %s287 = smul.addr %s286, 8
        %s288 = scalar_lea.vmem %s5, %s287
        %p289 = scmp.lt.s32.totalorder %s22, 1
        %s290 = scalar_select %p289, %s22, 1
        %s291 = smul.addr %s290, 3
        %s292 = smul.addr %s291, 4
        %s293 = scalar_lea.vmem %s0, %s292
        %s294 = smul.u32 8, %s23
        %p295 = scmp.lt.s32.totalorder %s294, 7
        %s296 = scalar_select %p295, %s294, 7
        %s297 = smul.addr %s296, 8
        %s298 = scalar_lea.vmem %s4, %s297
        %s299 = smul.u32 8, %s23
        %s300 = smul.u32 8, %s23
        %p301 = scmp.lt.s32.totalorder %s22, 1
        %s302 = scalar_select %p301, %s22, 1
        %p303 = scmp.lt.s32.totalorder %s300, 7
        %s304 = scalar_select %p303, %s300, 7
        %s305 = smul.addr %s304, 2
        %s306 = smul.addr %s302, 16
        %s307 = sadd.s32 %s305, %s306
        %s308 = smul.addr %s307, 8
        %s309 = scalar_lea.vmem %s5, %s308
        %s310 = smul.u32 8, %s23
        %p311 = scmp.eq.s32.totalorder %s23, 0
        // Predicated region
        $region53: #{dwc_patch_embed_forward.1} parent=39 // pred_check
          %p312 = pneg %p311
        $region54: #{dwc_patch_embed_forward.1} parent=39 // pred_check_branch
          %314 = sbr.rel (%p312) target = $region56
        $region55: #{dwc_patch_embed_forward.1} parent=39 // pred_region
          %v315 = vlaneseq
          %v316 = vand.u32 %v315, 127
          %v317 = vadd.s32 %v316, 128
          %vm318 = vcmp.lt.s32.totalorder %v316, 0
          %v319 = vsub.s32 0, %v316
          %v320 = vsel %vm318, %v319, %v316
          %v321 = vshrl.u32 %v320, 4
          %v322 = vand.u32 %v320, 15
          %v323 = vsub.s32 0, %v322
          %v324 = vsel %vm318, %v323, %v322
          %vm325 = vcmp.lt.s32.totalorder %v317, 0
          %v326 = vsub.s32 0, %v317
          %v327 = vsel %vm325, %v326, %v317
          %v328 = vshrl.u32 %v327, 4
          %v329 = vand.u32 %v327, 15
          %v330 = vsub.s32 0, %v329
          %v331 = vsel %vm325, %v330, %v329
          %vm332 = vcmp.ne.s32.totalorder %v324, 0
          %vm333 = vcmp.ne.s32.totalorder %v331, 0
          %vm334 = vcmp.lt.s32.totalorder %v324, 0
          %vm335 = vcmp.lt.s32.totalorder %v331, 0
          %vm336 = vmand %vm334, %vm332
          %vm337 = vmand %vm335, %vm333
          %v338 = vadd.s32 %v324, 16
          %v339 = vadd.s32 %v331, 16
          %v340 = vsel %vm336, %v338, %v324
          %v341 = vsel %vm337, %v339, %v331
          %v342 = vadd.s32 %v340, 4294967294
          %v343 = vadd.s32 %v341, 4294967294
          %vm344 = vcmp.ge.s32.totalorder %v342, 0
          %vm345 = vcmp.ge.s32.totalorder %v343, 0
          %vm346 = vcmp.lt.s32.totalorder %v342, 16
          %vm347 = vcmp.lt.s32.totalorder %v343, 16
          %vm348 = vmand %vm344, %vm346
          %vm349 = vmand %vm345, %vm347
          %v350 = vsel %vm348, 1.0, 0.0
          %v351 = vsel %vm349, 1.0, 0.0
          %v352 = vadd.s32 %v340, 4294967295
          %v353 = vadd.s32 %v341, 4294967295
          %vm354 = vcmp.ge.s32.totalorder %v352, 0
          %vm355 = vcmp.ge.s32.totalorder %v353, 0
          %vm356 = vcmp.lt.s32.totalorder %v352, 16
          %vm357 = vcmp.lt.s32.totalorder %v353, 16
          %vm358 = vmand %vm354, %vm356
          %vm359 = vmand %vm355, %vm357
          %v360 = vsel %vm358, 1.0, 0.0
          %v361 = vsel %vm359, 1.0, 0.0
          %vm362 = vcmp.ge.s32.totalorder %v340, 0
          %vm363 = vcmp.ge.s32.totalorder %v341, 0
          %vm364 = vcmp.lt.s32.totalorder %v340, 16
          %vm365 = vcmp.lt.s32.totalorder %v341, 16
          %vm366 = vmand %vm362, %vm364
          %vm367 = vmand %vm363, %vm365
          %v368 = vsel %vm366, 1.0, 0.0
          %v369 = vsel %vm367, 1.0, 0.0
          %v370 = vadd.s32 %v340, 1
          %v371 = vadd.s32 %v341, 1
          %vm372 = vcmp.ge.s32.totalorder %v370, 0
          %vm373 = vcmp.ge.s32.totalorder %v371, 0
          %vm374 = vcmp.lt.s32.totalorder %v370, 16
          %vm375 = vcmp.lt.s32.totalorder %v371, 16
          %vm376 = vmand %vm372, %vm374
          %vm377 = vmand %vm373, %vm375
          %v378 = vsel %vm376, 1.0, 0.0
          %v379 = vsel %vm377, 1.0, 0.0
          %v380 = vadd.s32 %v340, 2
          %v381 = vadd.s32 %v341, 2
          %vm382 = vcmp.ge.s32.totalorder %v380, 0
          %vm383 = vcmp.ge.s32.totalorder %v381, 0
          %vm384 = vcmp.lt.s32.totalorder %v380, 16
          %vm385 = vcmp.lt.s32.totalorder %v381, 16
          %vm386 = vmand %vm382, %vm384
          %vm387 = vmand %vm383, %vm385
          %v388 = vsel %vm386, 1.0, 0.0
          %v389 = vsel %vm387, 1.0, 0.0
          %s390 = sld [smem:[#allocation3]]
          %v391 = vld [vmem:[%s293] ss:$4 sm:$0x7]
          %v392 = vstv %s390
          %v393 = vmul.f32 %v392, %v391
          %s394 = sld [smem:[#allocation3 + $0x3]]
          %v395 = vstv %s394
          %v396 = vmul.f32 %v395, %v391
          %398 = vrot.lane.b32.xlu0 %v396, 112
          %v399 = vpop.permute.xlu0 %398
          %v400 = vrot.slane %v399, 1
          %vm401 = vcmask 916480
          %v402 = vsel %vm401, %v399, %v400
          %v404 = vadd.f32 %v393, %v402
          %s405 = sld [smem:[#allocation3 + $0x6]]
          %v406 = vstv %s405
          %v407 = vmul.f32 %v406, %v391
          %409 = vrot.lane.b32.xlu0 %v407, 96
          %v410 = vpop.permute.xlu0 %409
          %v411 = vrot.slane %v410, 1
          %vm412 = vcmask 785408
          %v413 = vsel %vm412, %v410, %v411
          %v415 = vadd.f32 %v404, %v413
          %v418 = vrot.slane %v361, 7
          %vm419 = vcmask 1040384
          %v420 = vsel %vm419, %v360, %v418
          %421 = vrot.lane.b32.xlu0 %v420, 17
          %v422 = vpop.permute.xlu0 %421
          %v423 = vrot.slane %v422, 7
          %vm424 = vcmask 138240
          %v425 = vsel %vm424, %v423, %v422
          %v427 = vmul.f32 %v415, %v425
          %s428 = sld [smem:[#allocation3 + $0x1]]
          %v429 = vstv %s428
          %v430 = vmul.f32 %v429, %v391
          %s431 = sld [smem:[#allocation3 + $0x4]]
          %v432 = vstv %s431
          %v433 = vmul.f32 %v432, %v391
          %435 = vrot.lane.b32.xlu0 %v433, 112
          %v436 = vpop.permute.xlu0 %435
          %v437 = vrot.slane %v436, 1
          %v438 = vsel %vm401, %v436, %v437
          %v440 = vadd.f32 %v430, %v438
          %s441 = sld [smem:[#allocation3 + $0x7]]
          %v442 = vstv %s441
          %v443 = vmul.f32 %v442, %v391
          %445 = vrot.lane.b32.xlu0 %v443, 96
          %v446 = vpop.permute.xlu0 %445
          %v447 = vrot.slane %v446, 1
          %v448 = vsel %vm412, %v446, %v447
          %v450 = vadd.f32 %v440, %v448
          %v453 = vrot.slane %v369, 7
          %v454 = vsel %vm419, %v368, %v453
          %455 = vrot.lane.b32.xlu0 %v454, 18
          %v456 = vpop.permute.xlu0 %455
          %v457 = vrot.slane %v456, 7
          %vm458 = vcmask 146432
          %v459 = vsel %vm458, %v457, %v456
          %v461 = vmul.f32 %v450, %v459
          %463 = vrot.lane.b32.xlu0 %v461, 127
          %v464 = vpop.permute.xlu0 %463
          %v465 = vrot.slane %v464, 1
          %vm466 = vcmask 1039360
          %v467 = vsel %vm466, %v464, %v465
          %v469 = vadd.f32 %v427, %v467
          %s470 = sld [smem:[#allocation3 + $0x2]]
          %v471 = vstv %s470
          %v472 = vmul.f32 %v471, %v391
          %s473 = sld [smem:[#allocation3 + $0x5]]
          %v474 = vstv %s473
          %v475 = vmul.f32 %v474, %v391
          %477 = vrot.lane.b32.xlu0 %v475, 112
          %v478 = vpop.permute.xlu0 %477
          %v479 = vrot.slane %v478, 1
          %v480 = vsel %vm401, %v478, %v479
          %v482 = vadd.f32 %v472, %v480
          %s483 = sld [smem:[#allocation3 + $0x8]]
          %v484 = vstv %s483
          %v485 = vmul.f32 %v484, %v391
          %487 = vrot.lane.b32.xlu0 %v485, 96
          %v488 = vpop.permute.xlu0 %487
          %v489 = vrot.slane %v488, 1
          %v490 = vsel %vm412, %v488, %v489
          %v492 = vadd.f32 %v482, %v490
          %v495 = vrot.slane %v379, 7
          %v496 = vsel %vm419, %v378, %v495
          %497 = vrot.lane.b32.xlu0 %v496, 19
          %v498 = vpop.permute.xlu0 %497
          %v499 = vrot.slane %v498, 7
          %vm500 = vcmask 154624
          %v501 = vsel %vm500, %v499, %v498
          %v503 = vmul.f32 %v492, %v501
          %505 = vrot.lane.b32.xlu0 %v503, 126
          %v506 = vpop.permute.xlu0 %505
          %v507 = vrot.slane %v506, 1
          %vm508 = vcmask 1031168
          %v509 = vsel %vm508, %v506, %v507
          %v511 = vadd.f32 %v469, %v509
          %s512 = sld [smem:[#allocation3 + $0x9]]
          %s513 = scalar_lea.vmem %s293, 1
          %v514 = vld [vmem:[%s513] ss:$4 sm:$0x7]
          %v515 = vstv %s512
          %v516 = vmul.f32 %v515, %v514
          %s517 = sld [smem:[#allocation3 + $0xc]]
          %v518 = vstv %s517
          %v519 = vmul.f32 %v518, %v514
          %521 = vrot.lane.b32.xlu0 %v519, 112
          %v522 = vpop.permute.xlu0 %521
          %v523 = vrot.slane %v522, 1
          %v524 = vsel %vm401, %v522, %v523
          %v526 = vadd.f32 %v516, %v524
          %s527 = sld [smem:[#allocation3 + $0xf]]
          %v528 = vstv %s527
          %v529 = vmul.f32 %v528, %v514
          %531 = vrot.lane.b32.xlu0 %v529, 96
          %v532 = vpop.permute.xlu0 %531
          %v533 = vrot.slane %v532, 1
          %v534 = vsel %vm412, %v532, %v533
          %v536 = vadd.f32 %v526, %v534
          %v537 = vmul.f32 %v536, %v425
          %s538 = sld [smem:[#allocation3 + $0xa]]
          %v539 = vstv %s538
          %v540 = vmul.f32 %v539, %v514
          %s541 = sld [smem:[#allocation3 + $0xd]]
          %v542 = vstv %s541
          %v543 = vmul.f32 %v542, %v514
          %545 = vrot.lane.b32.xlu0 %v543, 112
          %v546 = vpop.permute.xlu0 %545
          %v547 = vrot.slane %v546, 1
          %v548 = vsel %vm401, %v546, %v547
          %v550 = vadd.f32 %v540, %v548
          %s551 = sld [smem:[#allocation3 + $0x10]]
          %v552 = vstv %s551
          %v553 = vmul.f32 %v552, %v514
          %555 = vrot.lane.b32.xlu0 %v553, 96
          %v556 = vpop.permute.xlu0 %555
          %v557 = vrot.slane %v556, 1
          %v558 = vsel %vm412, %v556, %v557
          %v560 = vadd.f32 %v550, %v558
          %v561 = vmul.f32 %v560, %v459
          %563 = vrot.lane.b32.xlu0 %v561, 127
          %v564 = vpop.permute.xlu0 %563
          %v565 = vrot.slane %v564, 1
          %v566 = vsel %vm466, %v564, %v565
          %v568 = vadd.f32 %v537, %v566
          %s569 = sld [smem:[#allocation3 + $0xb]]
          %v570 = vstv %s569
          %v571 = vmul.f32 %v570, %v514
          %s572 = sld [smem:[#allocation3 + $0xe]]
          %v573 = vstv %s572
          %v574 = vmul.f32 %v573, %v514
          %576 = vrot.lane.b32.xlu0 %v574, 112
          %v577 = vpop.permute.xlu0 %576
          %v578 = vrot.slane %v577, 1
          %v579 = vsel %vm401, %v577, %v578
          %v581 = vadd.f32 %v571, %v579
          %s582 = sld [smem:[#allocation3 + $0x11]]
          %v583 = vstv %s582
          %v584 = vmul.f32 %v583, %v514
          %586 = vrot.lane.b32.xlu0 %v584, 96
          %v587 = vpop.permute.xlu0 %586
          %v588 = vrot.slane %v587, 1
          %v589 = vsel %vm412, %v587, %v588
          %v591 = vadd.f32 %v581, %v589
          %v592 = vmul.f32 %v591, %v501
          %594 = vrot.lane.b32.xlu0 %v592, 126
          %v595 = vpop.permute.xlu0 %594
          %v596 = vrot.slane %v595, 1
          %v597 = vsel %vm508, %v595, %v596
          %v599 = vadd.f32 %v568, %v597
          %s600 = sld [smem:[#allocation3 + $0x12]]
          %s601 = scalar_lea.vmem %s293, 2
          %v602 = vld [vmem:[%s601] ss:$4 sm:$0x7]
          %v603 = vstv %s600
          %v604 = vmul.f32 %v603, %v602
          %s605 = sld [smem:[#allocation3 + $0x15]]
          %v606 = vstv %s605
          %v607 = vmul.f32 %v606, %v602
          %609 = vrot.lane.b32.xlu0 %v607, 112
          %v610 = vpop.permute.xlu0 %609
          %v611 = vrot.slane %v610, 1
          %v612 = vsel %vm401, %v610, %v611
          %v614 = vadd.f32 %v604, %v612
          %s615 = sld [smem:[#allocation3 + $0x18]]
          %v616 = vstv %s615
          %v617 = vmul.f32 %v616, %v602
          %619 = vrot.lane.b32.xlu0 %v617, 96
          %v620 = vpop.permute.xlu0 %619
          %v621 = vrot.slane %v620, 1
          %v622 = vsel %vm412, %v620, %v621
          %v624 = vadd.f32 %v614, %v622
          %v625 = vmul.f32 %v624, %v425
          %s626 = sld [smem:[#allocation3 + $0x13]]
          %v627 = vstv %s626
          %v628 = vmul.f32 %v627, %v602
          %s629 = sld [smem:[#allocation3 + $0x16]]
          %v630 = vstv %s629
          %v631 = vmul.f32 %v630, %v602
          %633 = vrot.lane.b32.xlu0 %v631, 112
          %v634 = vpop.permute.xlu0 %633
          %v635 = vrot.slane %v634, 1
          %v636 = vsel %vm401, %v634, %v635
          %v638 = vadd.f32 %v628, %v636
          %s639 = sld [smem:[#allocation3 + $0x19]]
          %v640 = vstv %s639
          %v641 = vmul.f32 %v640, %v602
          %643 = vrot.lane.b32.xlu0 %v641, 96
          %v644 = vpop.permute.xlu0 %643
          %v645 = vrot.slane %v644, 1
          %v646 = vsel %vm412, %v644, %v645
          %v648 = vadd.f32 %v638, %v646
          %v649 = vmul.f32 %v648, %v459
          %651 = vrot.lane.b32.xlu0 %v649, 127
          %v652 = vpop.permute.xlu0 %651
          %v653 = vrot.slane %v652, 1
          %v654 = vsel %vm466, %v652, %v653
          %v656 = vadd.f32 %v625, %v654
          %s657 = sld [smem:[#allocation3 + $0x14]]
          %v658 = vstv %s657
          %v659 = vmul.f32 %v658, %v602
          %s660 = sld [smem:[#allocation3 + $0x17]]
          %v661 = vstv %s660
          %v662 = vmul.f32 %v661, %v602
          %664 = vrot.lane.b32.xlu0 %v662, 112
          %v665 = vpop.permute.xlu0 %664
          %v666 = vrot.slane %v665, 1
          %v667 = vsel %vm401, %v665, %v666
          %v669 = vadd.f32 %v659, %v667
          %s670 = sld [smem:[#allocation3 + $0x1a]]
          %v671 = vstv %s670
          %v672 = vmul.f32 %v671, %v602
          %674 = vrot.lane.b32.xlu0 %v672, 96
          %v675 = vpop.permute.xlu0 %674
          %v676 = vrot.slane %v675, 1
          %v677 = vsel %vm412, %v675, %v676
          %v679 = vadd.f32 %v669, %v677
          %v680 = vmul.f32 %v679, %v501
          %682 = vrot.lane.b32.xlu0 %v680, 126
          %v683 = vpop.permute.xlu0 %682
          %v684 = vrot.slane %v683, 1
          %v685 = vsel %vm508, %v683, %v684
          %v687 = vadd.f32 %v656, %v685
          %s688 = sld [smem:[#allocation5]]
          %v689 = vstv %s688
          %v690 = vmul.f32 %v689, %v511
          %s691 = sld [smem:[#allocation5 + $0x3]]
          %v692 = vstv %s691
          %v693 = vmul.f32 %v692, %v511
          %s694 = sld [smem:[#allocation5 + $0x1]]
          %v695 = vstv %s694
          %v696 = vmul.f32 %v695, %v599
          %v697 = vadd.f32 %v690, %v696
          %s698 = sld [smem:[#allocation5 + $0x4]]
          %v699 = vstv %s698
          %v700 = vmul.f32 %v699, %v599
          %v701 = vadd.f32 %v693, %v700
          %s702 = sld [smem:[#allocation5 + $0x2]]
          %v703 = vstv %s702
          %v704 = vmul.f32 %v703, %v687
          %v705 = vadd.f32 %v697, %v704
          %s706 = sld [smem:[#allocation5 + $0x5]]
          %v707 = vstv %s706
          %v708 = vmul.f32 %v707, %v687
          %v709 = vadd.f32 %v701, %v708
          %v710 = vmax.f32 %v705, -1.0
          %v711 = vmin.f32 %v710, 1.0
          %v712 = vmax.f32 %v709, -1.0
          %v713 = vmin.f32 %v712, 1.0
          %v714 = vsub.f32 0.0, %v711
          %v715 = vmax.f32 %v714, 0.0
          %v716 = vand.u32 2147483647, %v711
          %v717 = vsub.f32 1.0, %v716
          %v718 = vmax.f32 %v711, 0.0
          %v719 = vsub.f32 0.0, %v713
          %v720 = vmax.f32 %v719, 0.0
          %v723 = vrot.slane %v351, 7
          %v724 = vsel %vm419, %v350, %v723
          %725 = vrot.lane.b32.xlu0 %v724, 17
          %v726 = vpop.permute.xlu0 %725
          %v727 = vrot.slane %v726, 7
          %v728 = vsel %vm424, %v727, %v726
          %v730 = vmul.f32 %v720, %v728
          %v731 = vand.u32 2147483647, %v713
          %v732 = vsub.f32 1.0, %v731
          %v733 = vmul.f32 %v732, %v425
          %v734 = vmax.f32 %v713, 0.0
          %735 = vrot.lane.b32.xlu0 %v454, 17
          %v736 = vpop.permute.xlu0 %735
          %v737 = vrot.slane %v736, 7
          %v738 = vsel %vm424, %v737, %v736
          %v740 = vmul.f32 %v734, %v738
          %s741 = sld [smem:[#allocation7]]
          %v742 = vld [vmem:[%s293] ss:$4 sm:$0x3]
          %744 = vrot.lane.b32.xlu0 %v742, 17
          %v745 = vpop.permute.xlu0 %744
          %v746 = vrot.slane %v745, 7
          %v747 = vsel %vm424, %v746, %v745
          %v749 = vmul.f32 %v730, %v747
          %751 = vrot.lane.b32.xlu0 %v391, 16
          %v752 = vpop.permute.xlu0 %751
          %v753 = vrot.slane %v752, 7
          %vm754 = vcmask 130048
          %v755 = vsel %vm754, %v753, %v752
          %v757 = vmul.f32 %v733, %v755
          %v758 = vadd.f32 %v749, %v757
          %759 = vrot.lane.b32.xlu0 %v391, 15
          %v760 = vpop.permute.xlu0 %759
          %v761 = vrot.slane %v760, 7
          %vm762 = vcmask 121856
          %v763 = vsel %vm762, %v761, %v760
          %v765 = vmul.f32 %v740, %v763
          %v766 = vadd.f32 %v758, %v765
          %v767 = vmul.f32 %v715, %v766
          %768 = vrot.lane.b32.xlu0 %v391, 1
          %v769 = vpop.permute.xlu0 %768
          %v770 = vrot.slane %v769, 7
          %vm771 = vcmask 7168
          %v772 = vsel %vm771, %v770, %v769
          %v774 = vmul.f32 %v730, %v772
          %v775 = vmul.f32 %v733, %v391
          %v776 = vadd.f32 %v774, %v775
          %777 = vrot.lane.b32.xlu0 %v391, 127
          %v778 = vpop.permute.xlu0 %777
          %v779 = vrot.slane %v778, 1
          %v780 = vsel %vm466, %v778, %v779
          %v782 = vmul.f32 %v740, %v780
          %v783 = vadd.f32 %v776, %v782
          %v784 = vmul.f32 %v717, %v783
          %v785 = vadd.f32 %v767, %v784
          %786 = vrot.lane.b32.xlu0 %v391, 113
          %v787 = vpop.permute.xlu0 %786
          %v788 = vrot.slane %v787, 1
          %vm789 = vcmask 924672
          %v790 = vsel %vm789, %v787, %v788
          %v792 = vmul.f32 %v730, %v790
          %793 = vrot.lane.b32.xlu0 %v391, 112
          %v794 = vpop.permute.xlu0 %793
          %v795 = vrot.slane %v794, 1
          %v796 = vsel %vm401, %v794, %v795
          %v798 = vmul.f32 %v733, %v796
          %v799 = vadd.f32 %v792, %v798
          %800 = vrot.lane.b32.xlu0 %v391, 111
          %v801 = vpop.permute.xlu0 %800
          %v802 = vrot.slane %v801, 1
          %vm803 = vcmask 908288
          %v804 = vsel %vm803, %v801, %v802
          %v806 = vmul.f32 %v740, %v804
          %v807 = vadd.f32 %v799, %v806
          %v808 = vmul.f32 %v718, %v807
          %v809 = vadd.f32 %v785, %v808
          %v810 = vstv %s741
          %v811 = vmul.f32 %v810, %v809
          %s812 = sld [smem:[#allocation7 + $0x9]]
          %v813 = vld [vmem:[%s513] ss:$4 sm:$0x3]
          %815 = vrot.lane.b32.xlu0 %v813, 17
          %v816 = vpop.permute.xlu0 %815
          %v817 = vrot.slane %v816, 7
          %v818 = vsel %vm424, %v817, %v816
          %v820 = vmul.f32 %v730, %v818
          %822 = vrot.lane.b32.xlu0 %v514, 16
          %v823 = vpop.permute.xlu0 %822
          %v824 = vrot.slane %v823, 7
          %v825 = vsel %vm754, %v824, %v823
          %v827 = vmul.f32 %v733, %v825
          %v828 = vadd.f32 %v820, %v827
          %829 = vrot.lane.b32.xlu0 %v514, 15
          %v830 = vpop.permute.xlu0 %829
          %v831 = vrot.slane %v830, 7
          %v832 = vsel %vm762, %v831, %v830
          %v834 = vmul.f32 %v740, %v832
          %v835 = vadd.f32 %v828, %v834
          %v836 = vmul.f32 %v715, %v835
          %837 = vrot.lane.b32.xlu0 %v514, 1
          %v838 = vpop.permute.xlu0 %837
          %v839 = vrot.slane %v838, 7
          %v840 = vsel %vm771, %v839, %v838
          %v842 = vmul.f32 %v730, %v840
          %v843 = vmul.f32 %v733, %v514
          %v844 = vadd.f32 %v842, %v843
          %845 = vrot.lane.b32.xlu0 %v514, 127
          %v846 = vpop.permute.xlu0 %845
          %v847 = vrot.slane %v846, 1
          %v848 = vsel %vm466, %v846, %v847
          %v850 = vmul.f32 %v740, %v848
          %v851 = vadd.f32 %v844, %v850
          %v852 = vmul.f32 %v717, %v851
          %v853 = vadd.f32 %v836, %v852
          %854 = vrot.lane.b32.xlu0 %v514, 113
          %v855 = vpop.permute.xlu0 %854
          %v856 = vrot.slane %v855, 1
          %v857 = vsel %vm789, %v855, %v856
          %v859 = vmul.f32 %v730, %v857
          %860 = vrot.lane.b32.xlu0 %v514, 112
          %v861 = vpop.permute.xlu0 %860
          %v862 = vrot.slane %v861, 1
          %v863 = vsel %vm401, %v861, %v862
          %v865 = vmul.f32 %v733, %v863
          %v866 = vadd.f32 %v859, %v865
          %867 = vrot.lane.b32.xlu0 %v514, 111
          %v868 = vpop.permute.xlu0 %867
          %v869 = vrot.slane %v868, 1
          %v870 = vsel %vm803, %v868, %v869
          %v872 = vmul.f32 %v740, %v870
          %v873 = vadd.f32 %v866, %v872
          %v874 = vmul.f32 %v718, %v873
          %v875 = vadd.f32 %v853, %v874
          %v876 = vstv %s812
          %v877 = vmul.f32 %v876, %v875
          %s878 = sld [smem:[#allocation7 + $0x12]]
          %v879 = vld [vmem:[%s601] ss:$4 sm:$0x3]
          %881 = vrot.lane.b32.xlu0 %v879, 17
          %v882 = vpop.permute.xlu0 %881
          %v883 = vrot.slane %v882, 7
          %v884 = vsel %vm424, %v883, %v882
          %v886 = vmul.f32 %v730, %v884
          %888 = vrot.lane.b32.xlu0 %v602, 16
          %v889 = vpop.permute.xlu0 %888
          %v890 = vrot.slane %v889, 7
          %v891 = vsel %vm754, %v890, %v889
          %v893 = vmul.f32 %v733, %v891
          %v894 = vadd.f32 %v886, %v893
          %895 = vrot.lane.b32.xlu0 %v602, 15
          %v896 = vpop.permute.xlu0 %895
          %v897 = vrot.slane %v896, 7
          %v898 = vsel %vm762, %v897, %v896
          %v900 = vmul.f32 %v740, %v898
          %v901 = vadd.f32 %v894, %v900
          %v902 = vmul.f32 %v715, %v901
          %903 = vrot.lane.b32.xlu0 %v602, 1
          %v904 = vpop.permute.xlu0 %903
          %v905 = vrot.slane %v904, 7
          %v906 = vsel %vm771, %v905, %v904
          %v908 = vmul.f32 %v730, %v906
          %v909 = vmul.f32 %v733, %v602
          %v910 = vadd.f32 %v908, %v909
          %911 = vrot.lane.b32.xlu0 %v602, 127
          %v912 = vpop.permute.xlu0 %911
          %v913 = vrot.slane %v912, 1
          %v914 = vsel %vm466, %v912, %v913
          %v916 = vmul.f32 %v740, %v914
          %v917 = vadd.f32 %v910, %v916
          %v918 = vmul.f32 %v717, %v917
          %v919 = vadd.f32 %v902, %v918
          %920 = vrot.lane.b32.xlu0 %v602, 113
          %v921 = vpop.permute.xlu0 %920
          %v922 = vrot.slane %v921, 1
          %v923 = vsel %vm789, %v921, %v922
          %v925 = vmul.f32 %v730, %v923
          %926 = vrot.lane.b32.xlu0 %v602, 112
          %v927 = vpop.permute.xlu0 %926
          %v928 = vrot.slane %v927, 1
          %v929 = vsel %vm401, %v927, %v928
          %v931 = vmul.f32 %v733, %v929
          %v932 = vadd.f32 %v925, %v931
          %933 = vrot.lane.b32.xlu0 %v602, 111
          %v934 = vpop.permute.xlu0 %933
          %v935 = vrot.slane %v934, 1
          %v936 = vsel %vm803, %v934, %v935
          %v938 = vmul.f32 %v740, %v936
          %v939 = vadd.f32 %v932, %v938
          %v940 = vmul.f32 %v718, %v939
          %v941 = vadd.f32 %v919, %v940
          %v942 = vstv %s878
          %v943 = vmul.f32 %v942, %v941
          %s944 = sld [smem:[#allocation5 + $0x6]]
          %v945 = vstv %s944
          %v946 = vmul.f32 %v945, %v511
          %s947 = sld [smem:[#allocation5 + $0x9]]
          %v948 = vstv %s947
          %v949 = vmul.f32 %v948, %v511
          %s950 = sld [smem:[#allocation5 + $0x7]]
          %v951 = vstv %s950
          %v952 = vmul.f32 %v951, %v599
          %v953 = vadd.f32 %v946, %v952
          %s954 = sld [smem:[#allocation5 + $0xa]]
          %v955 = vstv %s954
          %v956 = vmul.f32 %v955, %v599
          %v957 = vadd.f32 %v949, %v956
          %s958 = sld [smem:[#allocation5 + $0x8]]
          %v959 = vstv %s958
          %v960 = vmul.f32 %v959, %v687
          %v961 = vadd.f32 %v953, %v960
          %s962 = sld [smem:[#allocation5 + $0xb]]
          %v963 = vstv %s962
          %v964 = vmul.f32 %v963, %v687
          %v965 = vadd.f32 %v957, %v964
          %v966 = vmax.f32 %v961, -1.0
          %v967 = vmin.f32 %v966, 1.0
          %v968 = vmax.f32 %v965, -1.0
          %v969 = vmin.f32 %v968, 1.0
          %v970 = vsub.f32 0.0, %v967
          %v971 = vmax.f32 %v970, 0.0
          %v972 = vand.u32 2147483647, %v967
          %v973 = vsub.f32 1.0, %v972
          %v974 = vmax.f32 %v967, 0.0
          %v975 = vsub.f32 0.0, %v969
          %v976 = vmax.f32 %v975, 0.0
          %v977 = vmul.f32 %v976, %v425
          %v978 = vand.u32 2147483647, %v969
          %v979 = vsub.f32 1.0, %v978
          %v980 = vmul.f32 %v979, %v738
          %v981 = vmax.f32 %v969, 0.0
          %982 = vrot.lane.b32.xlu0 %v496, 17
          %v983 = vpop.permute.xlu0 %982
          %v984 = vrot.slane %v983, 7
          %v985 = vsel %vm424, %v984, %v983
          %v987 = vmul.f32 %v981, %v985
          %s988 = sld [smem:[#allocation7 + $0x1]]
          %v989 = vmul.f32 %v977, %v755
          %v990 = vmul.f32 %v980, %v763
          %v991 = vadd.f32 %v989, %v990
          %992 = vrot.lane.b32.xlu0 %v391, 14
          %v993 = vpop.permute.xlu0 %992
          %v994 = vrot.slane %v993, 7
          %vm995 = vcmask 113664
          %v996 = vsel %vm995, %v994, %v993
          %v998 = vmul.f32 %v987, %v996
          %v999 = vadd.f32 %v991, %v998
          %v1000 = vmul.f32 %v971, %v999
          %v1001 = vmul.f32 %v977, %v391
          %v1002 = vmul.f32 %v980, %v780
          %v1003 = vadd.f32 %v1001, %v1002
          %1004 = vrot.lane.b32.xlu0 %v391, 126
          %v1005 = vpop.permute.xlu0 %1004
          %v1006 = vrot.slane %v1005, 1
          %v1007 = vsel %vm508, %v1005, %v1006
          %v1009 = vmul.f32 %v987, %v1007
          %v1010 = vadd.f32 %v1003, %v1009
          %v1011 = vmul.f32 %v973, %v1010
          %v1012 = vadd.f32 %v1000, %v1011
          %v1013 = vmul.f32 %v977, %v796
          %v1014 = vmul.f32 %v980, %v804
          %v1015 = vadd.f32 %v1013, %v1014
          %1016 = vrot.lane.b32.xlu0 %v391, 110
          %v1017 = vpop.permute.xlu0 %1016
          %v1018 = vrot.slane %v1017, 1
          %vm1019 = vcmask 900096
          %v1020 = vsel %vm1019, %v1017, %v1018
          %v1022 = vmul.f32 %v987, %v1020
          %v1023 = vadd.f32 %v1015, %v1022
          %v1024 = vmul.f32 %v974, %v1023
          %v1025 = vadd.f32 %v1012, %v1024
          %v1026 = vstv %s988
          %v1027 = vmul.f32 %v1026, %v1025
          %v1028 = vadd.f32 %v811, %v1027
          %s1029 = sld [smem:[#allocation7 + $0xa]]
          %v1030 = vmul.f32 %v977, %v825
          %v1031 = vmul.f32 %v980, %v832
          %v1032 = vadd.f32 %v1030, %v1031
          %1033 = vrot.lane.b32.xlu0 %v514, 14
          %v1034 = vpop.permute.xlu0 %1033
          %v1035 = vrot.slane %v1034, 7
          %v1036 = vsel %vm995, %v1035, %v1034
          %v1038 = vmul.f32 %v987, %v1036
          %v1039 = vadd.f32 %v1032, %v1038
          %v1040 = vmul.f32 %v971, %v1039
          %v1041 = vmul.f32 %v977, %v514
          %v1042 = vmul.f32 %v980, %v848
          %v1043 = vadd.f32 %v1041, %v1042
          %1044 = vrot.lane.b32.xlu0 %v514, 126
          %v1045 = vpop.permute.xlu0 %1044
          %v1046 = vrot.slane %v1045, 1
          %v1047 = vsel %vm508, %v1045, %v1046
          %v1049 = vmul.f32 %v987, %v1047
          %v1050 = vadd.f32 %v1043, %v1049
          %v1051 = vmul.f32 %v973, %v1050
          %v1052 = vadd.f32 %v1040, %v1051
          %v1053 = vmul.f32 %v977, %v863
          %v1054 = vmul.f32 %v980, %v870
          %v1055 = vadd.f32 %v1053, %v1054
          %1056 = vrot.lane.b32.xlu0 %v514, 110
          %v1057 = vpop.permute.xlu0 %1056
          %v1058 = vrot.slane %v1057, 1
          %v1059 = vsel %vm1019, %v1057, %v1058
          %v1061 = vmul.f32 %v987, %v1059
          %v1062 = vadd.f32 %v1055, %v1061
          %v1063 = vmul.f32 %v974, %v1062
          %v1064 = vadd.f32 %v1052, %v1063
          %v1065 = vstv %s1029
          %v1066 = vmul.f32 %v1065, %v1064
          %v1067 = vadd.f32 %v877, %v1066
          %s1068 = sld [smem:[#allocation7 + $0x13]]
          %v1069 = vmul.f32 %v977, %v891
          %v1070 = vmul.f32 %v980, %v898
          %v1071 = vadd.f32 %v1069, %v1070
          %1072 = vrot.lane.b32.xlu0 %v602, 14
          %v1073 = vpop.permute.xlu0 %1072
          %v1074 = vrot.slane %v1073, 7
          %v1075 = vsel %vm995, %v1074, %v1073
          %v1077 = vmul.f32 %v987, %v1075
          %v1078 = vadd.f32 %v1071, %v1077
          %v1079 = vmul.f32 %v971, %v1078
          %v1080 = vmul.f32 %v977, %v602
          %v1081 = vmul.f32 %v980, %v914
          %v1082 = vadd.f32 %v1080, %v1081
          %1083 = vrot.lane.b32.xlu0 %v602, 126
          %v1084 = vpop.permute.xlu0 %1083
          %v1085 = vrot.slane %v1084, 1
          %v1086 = vsel %vm508, %v1084, %v1085
          %v1088 = vmul.f32 %v987, %v1086
          %v1089 = vadd.f32 %v1082, %v1088
          %v1090 = vmul.f32 %v973, %v1089
          %v1091 = vadd.f32 %v1079, %v1090
          %v1092 = vmul.f32 %v977, %v929
          %v1093 = vmul.f32 %v980, %v936
          %v1094 = vadd.f32 %v1092, %v1093
          %1095 = vrot.lane.b32.xlu0 %v602, 110
          %v1096 = vpop.permute.xlu0 %1095
          %v1097 = vrot.slane %v1096, 1
          %v1098 = vsel %vm1019, %v1096, %v1097
          %v1100 = vmul.f32 %v987, %v1098
          %v1101 = vadd.f32 %v1094, %v1100
          %v1102 = vmul.f32 %v974, %v1101
          %v1103 = vadd.f32 %v1091, %v1102
          %v1104 = vstv %s1068
          %v1105 = vmul.f32 %v1104, %v1103
          %v1106 = vadd.f32 %v943, %v1105
          %s1107 = sld [smem:[#allocation5 + $0xc]]
          %v1108 = vstv %s1107
          %v1109 = vmul.f32 %v1108, %v511
          %s1110 = sld [smem:[#allocation5 + $0xf]]
          %v1111 = vstv %s1110
          %v1112 = vmul.f32 %v1111, %v511
          %s1113 = sld [smem:[#allocation5 + $0xd]]
          %v1114 = vstv %s1113
          %v1115 = vmul.f32 %v1114, %v599
          %v1116 = vadd.f32 %v1109, %v1115
          %s1117 = sld [smem:[#allocation5 + $0x10]]
          %v1118 = vstv %s1117
          %v1119 = vmul.f32 %v1118, %v599
          %v1120 = vadd.f32 %v1112, %v1119
          %s1121 = sld [smem:[#allocation5 + $0xe]]
          %v1122 = vstv %s1121
          %v1123 = vmul.f32 %v1122, %v687
          %v1124 = vadd.f32 %v1116, %v1123
          %s1125 = sld [smem:[#allocation5 + $0x11]]
          %v1126 = vstv %s1125
          %v1127 = vmul.f32 %v1126, %v687
          %v1128 = vadd.f32 %v1120, %v1127
          %v1129 = vmax.f32 %v1124, -1.0
          %v1130 = vmin.f32 %v1129, 1.0
          %v1131 = vmax.f32 %v1128, -1.0
          %v1132 = vmin.f32 %v1131, 1.0
          %v1133 = vsub.f32 0.0, %v1130
          %v1134 = vmax.f32 %v1133, 0.0
          %v1135 = vand.u32 2147483647, %v1130
          %v1136 = vsub.f32 1.0, %v1135
          %v1137 = vmax.f32 %v1130, 0.0
          %v1138 = vsub.f32 0.0, %v1132
          %v1139 = vmax.f32 %v1138, 0.0
          %v1140 = vmul.f32 %v1139, %v738
          %v1141 = vand.u32 2147483647, %v1132
          %v1142 = vsub.f32 1.0, %v1141
          %v1143 = vmul.f32 %v1142, %v985
          %v1144 = vmax.f32 %v1132, 0.0
          %v1147 = vrot.slane %v389, 7
          %v1148 = vsel %vm419, %v388, %v1147
          %1149 = vrot.lane.b32.xlu0 %v1148, 17
          %v1150 = vpop.permute.xlu0 %1149
          %v1151 = vrot.slane %v1150, 7
          %v1152 = vsel %vm424, %v1151, %v1150
          %v1154 = vmul.f32 %v1144, %v1152
          %s1155 = sld [smem:[#allocation7 + $0x2]]
          %v1156 = vmul.f32 %v1140, %v763
          %v1157 = vmul.f32 %v1143, %v996
          %v1158 = vadd.f32 %v1156, %v1157
          %1159 = vrot.lane.b32.xlu0 %v391, 13
          %v1160 = vpop.permute.xlu0 %1159
          %v1161 = vrot.slane %v1160, 7
          %vm1162 = vcmask 105472
          %v1163 = vsel %vm1162, %v1161, %v1160
          %v1165 = vmul.f32 %v1154, %v1163
          %v1166 = vadd.f32 %v1158, %v1165
          %v1167 = vmul.f32 %v1134, %v1166
          %v1168 = vmul.f32 %v1140, %v780
          %v1169 = vmul.f32 %v1143, %v1007
          %v1170 = vadd.f32 %v1168, %v1169
          %1171 = vrot.lane.b32.xlu0 %v391, 125
          %v1172 = vpop.permute.xlu0 %1171
          %v1173 = vrot.slane %v1172, 1
          %vm1174 = vcmask 1022976
          %v1175 = vsel %vm1174, %v1172, %v1173
          %v1177 = vmul.f32 %v1154, %v1175
          %v1178 = vadd.f32 %v1170, %v1177
          %v1179 = vmul.f32 %v1136, %v1178
          %v1180 = vadd.f32 %v1167, %v1179
          %v1181 = vmul.f32 %v1140, %v804
          %v1182 = vmul.f32 %v1143, %v1020
          %v1183 = vadd.f32 %v1181, %v1182
          %1184 = vrot.lane.b32.xlu0 %v391, 109
          %v1185 = vpop.permute.xlu0 %1184
          %v1186 = vrot.slane %v1185, 1
          %vm1187 = vcmask 891904
          %v1188 = vsel %vm1187, %v1185, %v1186
          %v1190 = vmul.f32 %v1154, %v1188
          %v1191 = vadd.f32 %v1183, %v1190
          %v1192 = vmul.f32 %v1137, %v1191
          %v1193 = vadd.f32 %v1180, %v1192
          %v1194 = vstv %s1155
          %v1195 = vmul.f32 %v1194, %v1193
          %v1196 = vadd.f32 %v1028, %v1195
          %s1197 = sld [smem:[#allocation7 + $0xb]]
          %v1198 = vmul.f32 %v1140, %v832
          %v1199 = vmul.f32 %v1143, %v1036
          %v1200 = vadd.f32 %v1198, %v1199
          %1201 = vrot.lane.b32.xlu0 %v514, 13
          %v1202 = vpop.permute.xlu0 %1201
          %v1203 = vrot.slane %v1202, 7
          %v1204 = vsel %vm1162, %v1203, %v1202
          %v1206 = vmul.f32 %v1154, %v1204
          %v1207 = vadd.f32 %v1200, %v1206
          %v1208 = vmul.f32 %v1134, %v1207
          %v1209 = vmul.f32 %v1140, %v848
          %v1210 = vmul.f32 %v1143, %v1047
          %v1211 = vadd.f32 %v1209, %v1210
          %1212 = vrot.lane.b32.xlu0 %v514, 125
          %v1213 = vpop.permute.xlu0 %1212
          %v1214 = vrot.slane %v1213, 1
          %v1215 = vsel %vm1174, %v1213, %v1214
          %v1217 = vmul.f32 %v1154, %v1215
          %v1218 = vadd.f32 %v1211, %v1217
          %v1219 = vmul.f32 %v1136, %v1218
          %v1220 = vadd.f32 %v1208, %v1219
          %v1221 = vmul.f32 %v1140, %v870
          %v1222 = vmul.f32 %v1143, %v1059
          %v1223 = vadd.f32 %v1221, %v1222
          %1224 = vrot.lane.b32.xlu0 %v514, 109
          %v1225 = vpop.permute.xlu0 %1224
          %v1226 = vrot.slane %v1225, 1
          %v1227 = vsel %vm1187, %v1225, %v1226
          %v1229 = vmul.f32 %v1154, %v1227
          %v1230 = vadd.f32 %v1223, %v1229
          %v1231 = vmul.f32 %v1137, %v1230
          %v1232 = vadd.f32 %v1220, %v1231
          %v1233 = vstv %s1197
          %v1234 = vmul.f32 %v1233, %v1232
          %v1235 = vadd.f32 %v1067, %v1234
          %s1236 = sld [smem:[#allocation7 + $0x14]]
          %v1237 = vmul.f32 %v1140, %v898
          %v1238 = vmul.f32 %v1143, %v1075
          %v1239 = vadd.f32 %v1237, %v1238
          %1240 = vrot.lane.b32.xlu0 %v602, 13
          %v1241 = vpop.permute.xlu0 %1240
          %v1242 = vrot.slane %v1241, 7
          %v1243 = vsel %vm1162, %v1242, %v1241
          %v1245 = vmul.f32 %v1154, %v1243
          %v1246 = vadd.f32 %v1239, %v1245
          %v1247 = vmul.f32 %v1134, %v1246
          %v1248 = vmul.f32 %v1140, %v914
          %v1249 = vmul.f32 %v1143, %v1086
          %v1250 = vadd.f32 %v1248, %v1249
          %1251 = vrot.lane.b32.xlu0 %v602, 125
          %v1252 = vpop.permute.xlu0 %1251
          %v1253 = vrot.slane %v1252, 1
          %v1254 = vsel %vm1174, %v1252, %v1253
          %v1256 = vmul.f32 %v1154, %v1254
          %v1257 = vadd.f32 %v1250, %v1256
          %v1258 = vmul.f32 %v1136, %v1257
          %v1259 = vadd.f32 %v1247, %v1258
          %v1260 = vmul.f32 %v1140, %v936
          %v1261 = vmul.f32 %v1143, %v1098
          %v1262 = vadd.f32 %v1260, %v1261
          %1263 = vrot.lane.b32.xlu0 %v602, 109
          %v1264 = vpop.permute.xlu0 %1263
          %v1265 = vrot.slane %v1264, 1
          %v1266 = vsel %vm1187, %v1264, %v1265
          %v1268 = vmul.f32 %v1154, %v1266
          %v1269 = vadd.f32 %v1262, %v1268
          %v1270 = vmul.f32 %v1137, %v1269
          %v1271 = vadd.f32 %v1259, %v1270
          %v1272 = vstv %s1236
          %v1273 = vmul.f32 %v1272, %v1271
          %v1274 = vadd.f32 %v1106, %v1273
          %s1275 = sld [smem:[#allocation5 + $0x12]]
          %v1276 = vstv %s1275
          %v1277 = vmul.f32 %v1276, %v511
          %s1278 = sld [smem:[#allocation5 + $0x15]]
          %v1279 = vstv %s1278
          %v1280 = vmul.f32 %v1279, %v511
          %s1281 = sld [smem:[#allocation5 + $0x13]]
          %v1282 = vstv %s1281
          %v1283 = vmul.f32 %v1282, %v599
          %v1284 = vadd.f32 %v1277, %v1283
          %s1285 = sld [smem:[#allocation5 + $0x16]]
          %v1286 = vstv %s1285
          %v1287 = vmul.f32 %v1286, %v599
          %v1288 = vadd.f32 %v1280, %v1287
          %s1289 = sld [smem:[#allocation5 + $0x14]]
          %v1290 = vstv %s1289
          %v1291 = vmul.f32 %v1290, %v687
          %v1292 = vadd.f32 %v1284, %v1291
          %s1293 = sld [smem:[#allocation5 + $0x17]]
          %v1294 = vstv %s1293
          %v1295 = vmul.f32 %v1294, %v687
          %v1296 = vadd.f32 %v1288, %v1295
          %v1297 = vmax.f32 %v1292, -1.0
          %v1298 = vmin.f32 %v1297, 1.0
          %v1299 = vmax.f32 %v1296, -1.0
          %v1300 = vmin.f32 %v1299, 1.0
          %v1301 = vsub.f32 0.0, %v1298
          %v1302 = vmax.f32 %v1301, 0.0
          %v1303 = vand.u32 2147483647, %v1298
          %v1304 = vsub.f32 1.0, %v1303
          %v1305 = vmax.f32 %v1298, 0.0
          %v1306 = vsub.f32 0.0, %v1300
          %v1307 = vmax.f32 %v1306, 0.0
          %v1308 = vmul.f32 %v1307, %v728
          %v1309 = vand.u32 2147483647, %v1300
          %v1310 = vsub.f32 1.0, %v1309
          %v1311 = vmul.f32 %v1310, %v425
          %v1312 = vmax.f32 %v1300, 0.0
          %v1313 = vmul.f32 %v1312, %v738
          %s1314 = sld [smem:[#allocation7 + $0x3]]
          %v1315 = vmul.f32 %v1308, %v772
          %v1316 = vmul.f32 %v1311, %v391
          %v1317 = vadd.f32 %v1315, %v1316
          %v1318 = vmul.f32 %v1313, %v780
          %v1319 = vadd.f32 %v1317, %v1318
          %v1320 = vmul.f32 %v1302, %v1319
          %v1321 = vmul.f32 %v1308, %v790
          %v1322 = vmul.f32 %v1311, %v796
          %v1323 = vadd.f32 %v1321, %v1322
          %v1324 = vmul.f32 %v1313, %v804
          %v1325 = vadd.f32 %v1323, %v1324
          %v1326 = vmul.f32 %v1304, %v1325
          %v1327 = vadd.f32 %v1320, %v1326
          %1328 = vrot.lane.b32.xlu0 %v391, 97
          %v1329 = vpop.permute.xlu0 %1328
          %v1330 = vrot.slane %v1329, 1
          %vm1331 = vcmask 793600
          %v1332 = vsel %vm1331, %v1329, %v1330
          %v1334 = vmul.f32 %v1308, %v1332
          %1335 = vrot.lane.b32.xlu0 %v391, 96
          %v1336 = vpop.permute.xlu0 %1335
          %v1337 = vrot.slane %v1336, 1
          %v1338 = vsel %vm412, %v1336, %v1337
          %v1340 = vmul.f32 %v1311, %v1338
          %v1341 = vadd.f32 %v1334, %v1340
          %1342 = vrot.lane.b32.xlu0 %v391, 95
          %v1343 = vpop.permute.xlu0 %1342
          %v1344 = vrot.slane %v1343, 1
          %vm1345 = vcmask 777216
          %v1346 = vsel %vm1345, %v1343, %v1344
          %v1348 = vmul.f32 %v1313, %v1346
          %v1349 = vadd.f32 %v1341, %v1348
          %v1350 = vmul.f32 %v1305, %v1349
          %v1351 = vadd.f32 %v1327, %v1350
          %v1352 = vstv %s1314
          %v1353 = vmul.f32 %v1352, %v1351
          %v1354 = vadd.f32 %v1196, %v1353
          %s1355 = sld [smem:[#allocation7 + $0xc]]
          %v1356 = vmul.f32 %v1308, %v840
          %v1357 = vmul.f32 %v1311, %v514
          %v1358 = vadd.f32 %v1356, %v1357
          %v1359 = vmul.f32 %v1313, %v848
          %v1360 = vadd.f32 %v1358, %v1359
          %v1361 = vmul.f32 %v1302, %v1360
          %v1362 = vmul.f32 %v1308, %v857
          %v1363 = vmul.f32 %v1311, %v863
          %v1364 = vadd.f32 %v1362, %v1363
          %v1365 = vmul.f32 %v1313, %v870
          %v1366 = vadd.f32 %v1364, %v1365
          %v1367 = vmul.f32 %v1304, %v1366
          %v1368 = vadd.f32 %v1361, %v1367
          %1369 = vrot.lane.b32.xlu0 %v514, 97
          %v1370 = vpop.permute.xlu0 %1369
          %v1371 = vrot.slane %v1370, 1
          %v1372 = vsel %vm1331, %v1370, %v1371
          %v1374 = vmul.f32 %v1308, %v1372
          %1375 = vrot.lane.b32.xlu0 %v514, 96
          %v1376 = vpop.permute.xlu0 %1375
          %v1377 = vrot.slane %v1376, 1
          %v1378 = vsel %vm412, %v1376, %v1377
          %v1380 = vmul.f32 %v1311, %v1378
          %v1381 = vadd.f32 %v1374, %v1380
          %1382 = vrot.lane.b32.xlu0 %v514, 95
          %v1383 = vpop.permute.xlu0 %1382
          %v1384 = vrot.slane %v1383, 1
          %v1385 = vsel %vm1345, %v1383, %v1384
          %v1387 = vmul.f32 %v1313, %v1385
          %v1388 = vadd.f32 %v1381, %v1387
          %v1389 = vmul.f32 %v1305, %v1388
          %v1390 = vadd.f32 %v1368, %v1389
          %v1391 = vstv %s1355
          %v1392 = vmul.f32 %v1391, %v1390
          %v1393 = vadd.f32 %v1235, %v1392
          %s1394 = sld [smem:[#allocation7 + $0x15]]
          %v1395 = vmul.f32 %v1308, %v906
          %v1396 = vmul.f32 %v1311, %v602
          %v1397 = vadd.f32 %v1395, %v1396
          %v1398 = vmul.f32 %v1313, %v914
          %v1399 = vadd.f32 %v1397, %v1398
          %v1400 = vmul.f32 %v1302, %v1399
          %v1401 = vmul.f32 %v1308, %v923
          %v1402 = vmul.f32 %v1311, %v929
          %v1403 = vadd.f32 %v1401, %v1402
          %v1404 = vmul.f32 %v1313, %v936
          %v1405 = vadd.f32 %v1403, %v1404
          %v1406 = vmul.f32 %v1304, %v1405
          %v1407 = vadd.f32 %v1400, %v1406
          %1408 = vrot.lane.b32.xlu0 %v602, 97
          %v1409 = vpop.permute.xlu0 %1408
          %v1410 = vrot.slane %v1409, 1
          %v1411 = vsel %vm1331, %v1409, %v1410
          %v1413 = vmul.f32 %v1308, %v1411
          %1414 = vrot.lane.b32.xlu0 %v602, 96
          %v1415 = vpop.permute.xlu0 %1414
          %v1416 = vrot.slane %v1415, 1
          %v1417 = vsel %vm412, %v1415, %v1416
          %v1419 = vmul.f32 %v1311, %v1417
          %v1420 = vadd.f32 %v1413, %v1419
          %1421 = vrot.lane.b32.xlu0 %v602, 95
          %v1422 = vpop.permute.xlu0 %1421
          %v1423 = vrot.slane %v1422, 1
          %v1424 = vsel %vm1345, %v1422, %v1423
          %v1426 = vmul.f32 %v1313, %v1424
          %v1427 = vadd.f32 %v1420, %v1426
          %v1428 = vmul.f32 %v1305, %v1427
          %v1429 = vadd.f32 %v1407, %v1428
          %v1430 = vstv %s1394
          %v1431 = vmul.f32 %v1430, %v1429
          %v1432 = vadd.f32 %v1274, %v1431
          %s1433 = sld [smem:[#allocation5 + $0x18]]
          %v1434 = vstv %s1433
          %v1435 = vmul.f32 %v1434, %v511
          %s1436 = sld [smem:[#allocation5 + $0x1b]]
          %v1437 = vstv %s1436
          %v1438 = vmul.f32 %v1437, %v511
          %s1439 = sld [smem:[#allocation5 + $0x19]]
          %v1440 = vstv %s1439
          %v1441 = vmul.f32 %v1440, %v599
          %v1442 = vadd.f32 %v1435, %v1441
          %s1443 = sld [smem:[#allocation5 + $0x1c]]
          %v1444 = vstv %s1443
          %v1445 = vmul.f32 %v1444, %v599
          %v1446 = vadd.f32 %v1438, %v1445
          %s1447 = sld [smem:[#allocation5 + $0x1a]]
          %v1448 = vstv %s1447
          %v1449 = vmul.f32 %v1448, %v687
          %v1450 = vadd.f32 %v1442, %v1449
          %s1451 = sld [smem:[#allocation5 + $0x1d]]
          %v1452 = vstv %s1451
          %v1453 = vmul.f32 %v1452, %v687
          %v1454 = vadd.f32 %v1446, %v1453
          %v1455 = vmax.f32 %v1450, -1.0
          %v1456 = vmin.f32 %v1455, 1.0
          %v1457 = vmax.f32 %v1454, -1.0
          %v1458 = vmin.f32 %v1457, 1.0
          %v1459 = vsub.f32 0.0, %v1456
          %v1460 = vmax.f32 %v1459, 0.0
          %v1461 = vand.u32 2147483647, %v1456
          %v1462 = vsub.f32 1.0, %v1461
          %v1463 = vmax.f32 %v1456, 0.0
          %v1464 = vsub.f32 0.0, %v1458
          %v1465 = vmax.f32 %v1464, 0.0
          %v1466 = vmul.f32 %v1465, %v425
          %v1467 = vand.u32 2147483647, %v1458
          %v1468 = vsub.f32 1.0, %v1467
          %v1469 = vmul.f32 %v1468, %v738
          %v1470 = vmax.f32 %v1458, 0.0
          %v1471 = vmul.f32 %v1470, %v985
          %s1472 = sld [smem:[#allocation7 + $0x4]]
          %v1473 = vmul.f32 %v1466, %v391
          %v1474 = vmul.f32 %v1469, %v780
          %v1475 = vadd.f32 %v1473, %v1474
          %v1476 = vmul.f32 %v1471, %v1007
          %v1477 = vadd.f32 %v1475, %v1476
          %v1478 = vmul.f32 %v1460, %v1477
          %v1479 = vmul.f32 %v1466, %v796
          %v1480 = vmul.f32 %v1469, %v804
          %v1481 = vadd.f32 %v1479, %v1480
          %v1482 = vmul.f32 %v1471, %v1020
          %v1483 = vadd.f32 %v1481, %v1482
          %v1484 = vmul.f32 %v1462, %v1483
          %v1485 = vadd.f32 %v1478, %v1484
          %v1486 = vmul.f32 %v1466, %v1338
          %v1487 = vmul.f32 %v1469, %v1346
          %v1488 = vadd.f32 %v1486, %v1487
          %1489 = vrot.lane.b32.xlu0 %v391, 94
          %v1490 = vpop.permute.xlu0 %1489
          %v1491 = vrot.slane %v1490, 1
          %vm1492 = vcmask 769024
          %v1493 = vsel %vm1492, %v1490, %v1491
          %v1495 = vmul.f32 %v1471, %v1493
          %v1496 = vadd.f32 %v1488, %v1495
          %v1497 = vmul.f32 %v1463, %v1496
          %v1498 = vadd.f32 %v1485, %v1497
          %v1499 = vstv %s1472
          %v1500 = vmul.f32 %v1499, %v1498
          %v1501 = vadd.f32 %v1354, %v1500
          %s1502 = sld [smem:[#allocation7 + $0xd]]
          %v1503 = vmul.f32 %v1466, %v514
          %v1504 = vmul.f32 %v1469, %v848
          %v1505 = vadd.f32 %v1503, %v1504
          %v1506 = vmul.f32 %v1471, %v1047
          %v1507 = vadd.f32 %v1505, %v1506
          %v1508 = vmul.f32 %v1460, %v1507
          %v1509 = vmul.f32 %v1466, %v863
          %v1510 = vmul.f32 %v1469, %v870
          %v1511 = vadd.f32 %v1509, %v1510
          %v1512 = vmul.f32 %v1471, %v1059
          %v1513 = vadd.f32 %v1511, %v1512
          %v1514 = vmul.f32 %v1462, %v1513
          %v1515 = vadd.f32 %v1508, %v1514
          %v1516 = vmul.f32 %v1466, %v1378
          %v1517 = vmul.f32 %v1469, %v1385
          %v1518 = vadd.f32 %v1516, %v1517
          %1519 = vrot.lane.b32.xlu0 %v514, 94
          %v1520 = vpop.permute.xlu0 %1519
          %v1521 = vrot.slane %v1520, 1
          %v1522 = vsel %vm1492, %v1520, %v1521
          %v1524 = vmul.f32 %v1471, %v1522
          %v1525 = vadd.f32 %v1518, %v1524
          %v1526 = vmul.f32 %v1463, %v1525
          %v1527 = vadd.f32 %v1515, %v1526
          %v1528 = vstv %s1502
          %v1529 = vmul.f32 %v1528, %v1527
          %v1530 = vadd.f32 %v1393, %v1529
          %s1531 = sld [smem:[#allocation7 + $0x16]]
          %v1532 = vmul.f32 %v1466, %v602
          %v1533 = vmul.f32 %v1469, %v914
          %v1534 = vadd.f32 %v1532, %v1533
          %v1535 = vmul.f32 %v1471, %v1086
          %v1536 = vadd.f32 %v1534, %v1535
          %v1537 = vmul.f32 %v1460, %v1536
          %v1538 = vmul.f32 %v1466, %v929
          %v1539 = vmul.f32 %v1469, %v936
          %v1540 = vadd.f32 %v1538, %v1539
          %v1541 = vmul.f32 %v1471, %v1098
          %v1542 = vadd.f32 %v1540, %v1541
          %v1543 = vmul.f32 %v1462, %v1542
          %v1544 = vadd.f32 %v1537, %v1543
          %v1545 = vmul.f32 %v1466, %v1417
          %v1546 = vmul.f32 %v1469, %v1424
          %v1547 = vadd.f32 %v1545, %v1546
          %1548 = vrot.lane.b32.xlu0 %v602, 94
          %v1549 = vpop.permute.xlu0 %1548
          %v1550 = vrot.slane %v1549, 1
          %v1551 = vsel %vm1492, %v1549, %v1550
          %v1553 = vmul.f32 %v1471, %v1551
          %v1554 = vadd.f32 %v1547, %v1553
          %v1555 = vmul.f32 %v1463, %v1554
          %v1556 = vadd.f32 %v1544, %v1555
          %v1557 = vstv %s1531
          %v1558 = vmul.f32 %v1557, %v1556
          %v1559 = vadd.f32 %v1432, %v1558
          %s1560 = sld [smem:[#allocation5 + $0x1e]]
          %v1561 = vstv %s1560
          %v1562 = vmul.f32 %v1561, %v511
          %s1563 = sld [smem:[#allocation5 + $0x21]]
          %v1564 = vstv %s1563
          %v1565 = vmul.f32 %v1564, %v511
          %s1566 = sld [smem:[#allocation5 + $0x1f]]
          %v1567 = vstv %s1566
          %v1568 = vmul.f32 %v1567, %v599
          %v1569 = vadd.f32 %v1562, %v1568
          %s1570 = sld [smem:[#allocation5 + $0x22]]
          %v1571 = vstv %s1570
          %v1572 = vmul.f32 %v1571, %v599
          %v1573 = vadd.f32 %v1565, %v1572
          %s1574 = sld [smem:[#allocation5 + $0x20]]
          %v1575 = vstv %s1574
          %v1576 = vmul.f32 %v1575, %v687
          %v1577 = vadd.f32 %v1569, %v1576
          %s1578 = sld [smem:[#allocation5 + $0x23]]
          %v1579 = vstv %s1578
          %v1580 = vmul.f32 %v1579, %v687
          %v1581 = vadd.f32 %v1573, %v1580
          %v1582 = vmax.f32 %v1577, -1.0
          %v1583 = vmin.f32 %v1582, 1.0
          %v1584 = vmax.f32 %v1581, -1.0
          %v1585 = vmin.f32 %v1584, 1.0
          %v1586 = vsub.f32 0.0, %v1583
          %v1587 = vmax.f32 %v1586, 0.0
          %v1588 = vand.u32 2147483647, %v1583
          %v1589 = vsub.f32 1.0, %v1588
          %v1590 = vmax.f32 %v1583, 0.0
          %v1591 = vsub.f32 0.0, %v1585
          %v1592 = vmax.f32 %v1591, 0.0
          %v1593 = vmul.f32 %v1592, %v738
          %v1594 = vand.u32 2147483647, %v1585
          %v1595 = vsub.f32 1.0, %v1594
          %v1596 = vmul.f32 %v1595, %v985
          %v1597 = vmax.f32 %v1585, 0.0
          %v1598 = vmul.f32 %v1597, %v1152
          %s1599 = sld [smem:[#allocation7 + $0x5]]
          %v1600 = vmul.f32 %v1593, %v780
          %v1601 = vmul.f32 %v1596, %v1007
          %v1602 = vadd.f32 %v1600, %v1601
          %v1603 = vmul.f32 %v1598, %v1175
          %v1604 = vadd.f32 %v1602, %v1603
          %v1605 = vmul.f32 %v1587, %v1604
          %v1606 = vmul.f32 %v1593, %v804
          %v1607 = vmul.f32 %v1596, %v1020
          %v1608 = vadd.f32 %v1606, %v1607
          %v1609 = vmul.f32 %v1598, %v1188
          %v1610 = vadd.f32 %v1608, %v1609
          %v1611 = vmul.f32 %v1589, %v1610
          %v1612 = vadd.f32 %v1605, %v1611
          %v1613 = vmul.f32 %v1593, %v1346
          %v1614 = vmul.f32 %v1596, %v1493
          %v1615 = vadd.f32 %v1613, %v1614
          %1616 = vrot.lane.b32.xlu0 %v391, 93
          %v1617 = vpop.permute.xlu0 %1616
          %v1618 = vrot.slane %v1617, 1
          %vm1619 = vcmask 760832
          %v1620 = vsel %vm1619, %v1617, %v1618
          %v1622 = vmul.f32 %v1598, %v1620
          %v1623 = vadd.f32 %v1615, %v1622
          %v1624 = vmul.f32 %v1590, %v1623
          %v1625 = vadd.f32 %v1612, %v1624
          %v1626 = vstv %s1599
          %v1627 = vmul.f32 %v1626, %v1625
          %v1628 = vadd.f32 %v1501, %v1627
          %s1629 = sld [smem:[#allocation7 + $0xe]]
          %v1630 = vmul.f32 %v1593, %v848
          %v1631 = vmul.f32 %v1596, %v1047
          %v1632 = vadd.f32 %v1630, %v1631
          %v1633 = vmul.f32 %v1598, %v1215
          %v1634 = vadd.f32 %v1632, %v1633
          %v1635 = vmul.f32 %v1587, %v1634
          %v1636 = vmul.f32 %v1593, %v870
          %v1637 = vmul.f32 %v1596, %v1059
          %v1638 = vadd.f32 %v1636, %v1637
          %v1639 = vmul.f32 %v1598, %v1227
          %v1640 = vadd.f32 %v1638, %v1639
          %v1641 = vmul.f32 %v1589, %v1640
          %v1642 = vadd.f32 %v1635, %v1641
          %v1643 = vmul.f32 %v1593, %v1385
          %v1644 = vmul.f32 %v1596, %v1522
          %v1645 = vadd.f32 %v1643, %v1644
          %1646 = vrot.lane.b32.xlu0 %v514, 93
          %v1647 = vpop.permute.xlu0 %1646
          %v1648 = vrot.slane %v1647, 1
          %v1649 = vsel %vm1619, %v1647, %v1648
          %v1651 = vmul.f32 %v1598, %v1649
          %v1652 = vadd.f32 %v1645, %v1651
          %v1653 = vmul.f32 %v1590, %v1652
          %v1654 = vadd.f32 %v1642, %v1653
          %v1655 = vstv %s1629
          %v1656 = vmul.f32 %v1655, %v1654
          %v1657 = vadd.f32 %v1530, %v1656
          %s1658 = sld [smem:[#allocation7 + $0x17]]
          %v1659 = vmul.f32 %v1593, %v914
          %v1660 = vmul.f32 %v1596, %v1086
          %v1661 = vadd.f32 %v1659, %v1660
          %v1662 = vmul.f32 %v1598, %v1254
          %v1663 = vadd.f32 %v1661, %v1662
          %v1664 = vmul.f32 %v1587, %v1663
          %v1665 = vmul.f32 %v1593, %v936
          %v1666 = vmul.f32 %v1596, %v1098
          %v1667 = vadd.f32 %v1665, %v1666
          %v1668 = vmul.f32 %v1598, %v1266
          %v1669 = vadd.f32 %v1667, %v1668
          %v1670 = vmul.f32 %v1589, %v1669
          %v1671 = vadd.f32 %v1664, %v1670
          %v1672 = vmul.f32 %v1593, %v1424
          %v1673 = vmul.f32 %v1596, %v1551
          %v1674 = vadd.f32 %v1672, %v1673
          %1675 = vrot.lane.b32.xlu0 %v602, 93
          %v1676 = vpop.permute.xlu0 %1675
          %v1677 = vrot.slane %v1676, 1
          %v1678 = vsel %vm1619, %v1676, %v1677
          %v1680 = vmul.f32 %v1598, %v1678
          %v1681 = vadd.f32 %v1674, %v1680
          %v1682 = vmul.f32 %v1590, %v1681
          %v1683 = vadd.f32 %v1671, %v1682
          %v1684 = vstv %s1658
          %v1685 = vmul.f32 %v1684, %v1683
          %v1686 = vadd.f32 %v1559, %v1685
          %s1687 = sld [smem:[#allocation5 + $0x24]]
          %v1688 = vstv %s1687
          %v1689 = vmul.f32 %v1688, %v511
          %s1690 = sld [smem:[#allocation5 + $0x27]]
          %v1691 = vstv %s1690
          %v1692 = vmul.f32 %v1691, %v511
          %s1693 = sld [smem:[#allocation5 + $0x25]]
          %v1694 = vstv %s1693
          %v1695 = vmul.f32 %v1694, %v599
          %v1696 = vadd.f32 %v1689, %v1695
          %s1697 = sld [smem:[#allocation5 + $0x28]]
          %v1698 = vstv %s1697
          %v1699 = vmul.f32 %v1698, %v599
          %v1700 = vadd.f32 %v1692, %v1699
          %s1701 = sld [smem:[#allocation5 + $0x26]]
          %v1702 = vstv %s1701
          %v1703 = vmul.f32 %v1702, %v687
          %v1704 = vadd.f32 %v1696, %v1703
          %s1705 = sld [smem:[#allocation5 + $0x29]]
          %v1706 = vstv %s1705
          %v1707 = vmul.f32 %v1706, %v687
          %v1708 = vadd.f32 %v1700, %v1707
          %v1709 = vmax.f32 %v1704, -1.0
          %v1710 = vmin.f32 %v1709, 1.0
          %v1711 = vmax.f32 %v1708, -1.0
          %v1712 = vmin.f32 %v1711, 1.0
          %v1713 = vsub.f32 0.0, %v1710
          %v1714 = vmax.f32 %v1713, 0.0
          %v1715 = vand.u32 2147483647, %v1710
          %v1716 = vsub.f32 1.0, %v1715
          %v1717 = vmax.f32 %v1710, 0.0
          %v1718 = vsub.f32 0.0, %v1712
          %v1719 = vmax.f32 %v1718, 0.0
          %v1720 = vmul.f32 %v1719, %v728
          %v1721 = vand.u32 2147483647, %v1712
          %v1722 = vsub.f32 1.0, %v1721
          %v1723 = vmul.f32 %v1722, %v425
          %v1724 = vmax.f32 %v1712, 0.0
          %v1725 = vmul.f32 %v1724, %v738
          %s1726 = sld [smem:[#allocation7 + $0x6]]
          %v1727 = vmul.f32 %v1720, %v790
          %v1728 = vmul.f32 %v1723, %v796
          %v1729 = vadd.f32 %v1727, %v1728
          %v1730 = vmul.f32 %v1725, %v804
          %v1731 = vadd.f32 %v1729, %v1730
          %v1732 = vmul.f32 %v1714, %v1731
          %v1733 = vmul.f32 %v1720, %v1332
          %v1734 = vmul.f32 %v1723, %v1338
          %v1735 = vadd.f32 %v1733, %v1734
          %v1736 = vmul.f32 %v1725, %v1346
          %v1737 = vadd.f32 %v1735, %v1736
          %v1738 = vmul.f32 %v1716, %v1737
          %v1739 = vadd.f32 %v1732, %v1738
          %1740 = vrot.lane.b32.xlu0 %v391, 81
          %v1741 = vpop.permute.xlu0 %1740
          %v1742 = vrot.slane %v1741, 1
          %vm1743 = vcmask 662528
          %v1744 = vsel %vm1743, %v1741, %v1742
          %v1746 = vmul.f32 %v1720, %v1744
          %1747 = vrot.lane.b32.xlu0 %v391, 80
          %v1748 = vpop.permute.xlu0 %1747
          %v1749 = vrot.slane %v1748, 1
          %vm1750 = vcmask 654336
          %v1751 = vsel %vm1750, %v1748, %v1749
          %v1753 = vmul.f32 %v1723, %v1751
          %v1754 = vadd.f32 %v1746, %v1753
          %1755 = vrot.lane.b32.xlu0 %v391, 79
          %v1756 = vpop.permute.xlu0 %1755
          %v1757 = vrot.slane %v1756, 1
          %vm1758 = vcmask 646144
          %v1759 = vsel %vm1758, %v1756, %v1757
          %v1761 = vmul.f32 %v1725, %v1759
          %v1762 = vadd.f32 %v1754, %v1761
          %v1763 = vmul.f32 %v1717, %v1762
          %v1764 = vadd.f32 %v1739, %v1763
          %v1765 = vstv %s1726
          %v1766 = vmul.f32 %v1765, %v1764
          %v1767 = vadd.f32 %v1628, %v1766
          %s1768 = sld [smem:[#allocation7 + $0xf]]
          %v1769 = vmul.f32 %v1720, %v857
          %v1770 = vmul.f32 %v1723, %v863
          %v1771 = vadd.f32 %v1769, %v1770
          %v1772 = vmul.f32 %v1725, %v870
          %v1773 = vadd.f32 %v1771, %v1772
          %v1774 = vmul.f32 %v1714, %v1773
          %v1775 = vmul.f32 %v1720, %v1372
          %v1776 = vmul.f32 %v1723, %v1378
          %v1777 = vadd.f32 %v1775, %v1776
          %v1778 = vmul.f32 %v1725, %v1385
          %v1779 = vadd.f32 %v1777, %v1778
          %v1780 = vmul.f32 %v1716, %v1779
          %v1781 = vadd.f32 %v1774, %v1780
          %1782 = vrot.lane.b32.xlu0 %v514, 81
          %v1783 = vpop.permute.xlu0 %1782
          %v1784 = vrot.slane %v1783, 1
          %v1785 = vsel %vm1743, %v1783, %v1784
          %v1787 = vmul.f32 %v1720, %v1785
          %1788 = vrot.lane.b32.xlu0 %v514, 80
          %v1789 = vpop.permute.xlu0 %1788
          %v1790 = vrot.slane %v1789, 1
          %v1791 = vsel %vm1750, %v1789, %v1790
          %v1793 = vmul.f32 %v1723, %v1791
          %v1794 = vadd.f32 %v1787, %v1793
          %1795 = vrot.lane.b32.xlu0 %v514, 79
          %v1796 = vpop.permute.xlu0 %1795
          %v1797 = vrot.slane %v1796, 1
          %v1798 = vsel %vm1758, %v1796, %v1797
          %v1800 = vmul.f32 %v1725, %v1798
          %v1801 = vadd.f32 %v1794, %v1800
          %v1802 = vmul.f32 %v1717, %v1801
          %v1803 = vadd.f32 %v1781, %v1802
          %v1804 = vstv %s1768
          %v1805 = vmul.f32 %v1804, %v1803
          %v1806 = vadd.f32 %v1657, %v1805
          %s1807 = sld [smem:[#allocation7 + $0x18]]
          %v1808 = vmul.f32 %v1720, %v923
          %v1809 = vmul.f32 %v1723, %v929
          %v1810 = vadd.f32 %v1808, %v1809
          %v1811 = vmul.f32 %v1725, %v936
          %v1812 = vadd.f32 %v1810, %v1811
          %v1813 = vmul.f32 %v1714, %v1812
          %v1814 = vmul.f32 %v1720, %v1411
          %v1815 = vmul.f32 %v1723, %v1417
          %v1816 = vadd.f32 %v1814, %v1815
          %v1817 = vmul.f32 %v1725, %v1424
          %v1818 = vadd.f32 %v1816, %v1817
          %v1819 = vmul.f32 %v1716, %v1818
          %v1820 = vadd.f32 %v1813, %v1819
          %1821 = vrot.lane.b32.xlu0 %v602, 81
          %v1822 = vpop.permute.xlu0 %1821
          %v1823 = vrot.slane %v1822, 1
          %v1824 = vsel %vm1743, %v1822, %v1823
          %v1826 = vmul.f32 %v1720, %v1824
          %1827 = vrot.lane.b32.xlu0 %v602, 80
          %v1828 = vpop.permute.xlu0 %1827
          %v1829 = vrot.slane %v1828, 1
          %v1830 = vsel %vm1750, %v1828, %v1829
          %v1832 = vmul.f32 %v1723, %v1830
          %v1833 = vadd.f32 %v1826, %v1832
          %1834 = vrot.lane.b32.xlu0 %v602, 79
          %v1835 = vpop.permute.xlu0 %1834
          %v1836 = vrot.slane %v1835, 1
          %v1837 = vsel %vm1758, %v1835, %v1836
          %v1839 = vmul.f32 %v1725, %v1837
          %v1840 = vadd.f32 %v1833, %v1839
          %v1841 = vmul.f32 %v1717, %v1840
          %v1842 = vadd.f32 %v1820, %v1841
          %v1843 = vstv %s1807
          %v1844 = vmul.f32 %v1843, %v1842
          %v1845 = vadd.f32 %v1686, %v1844
          %s1846 = sld [smem:[#allocation5 + $0x2a]]
          %v1847 = vstv %s1846
          %v1848 = vmul.f32 %v1847, %v511
          %s1849 = sld [smem:[#allocation5 + $0x2d]]
          %v1850 = vstv %s1849
          %v1851 = vmul.f32 %v1850, %v511
          %s1852 = sld [smem:[#allocation5 + $0x2b]]
          %v1853 = vstv %s1852
          %v1854 = vmul.f32 %v1853, %v599
          %v1855 = vadd.f32 %v1848, %v1854
          %s1856 = sld [smem:[#allocation5 + $0x2e]]
          %v1857 = vstv %s1856
          %v1858 = vmul.f32 %v1857, %v599
          %v1859 = vadd.f32 %v1851, %v1858
          %s1860 = sld [smem:[#allocation5 + $0x2c]]
          %v1861 = vstv %s1860
          %v1862 = vmul.f32 %v1861, %v687
          %v1863 = vadd.f32 %v1855, %v1862
          %s1864 = sld [smem:[#allocation5 + $0x2f]]
          %v1865 = vstv %s1864
          %v1866 = vmul.f32 %v1865, %v687
          %v1867 = vadd.f32 %v1859, %v1866
          %v1868 = vmax.f32 %v1863, -1.0
          %v1869 = vmin.f32 %v1868, 1.0
          %v1870 = vmax.f32 %v1867, -1.0
          %v1871 = vmin.f32 %v1870, 1.0
          %v1872 = vsub.f32 0.0, %v1869
          %v1873 = vmax.f32 %v1872, 0.0
          %v1874 = vand.u32 2147483647, %v1869
          %v1875 = vsub.f32 1.0, %v1874
          %v1876 = vmax.f32 %v1869, 0.0
          %v1877 = vsub.f32 0.0, %v1871
          %v1878 = vmax.f32 %v1877, 0.0
          %v1879 = vmul.f32 %v1878, %v425
          %v1880 = vand.u32 2147483647, %v1871
          %v1881 = vsub.f32 1.0, %v1880
          %v1882 = vmul.f32 %v1881, %v738
          %v1883 = vmax.f32 %v1871, 0.0
          %v1884 = vmul.f32 %v1883, %v985
          %s1885 = sld [smem:[#allocation7 + $0x7]]
          %v1886 = vmul.f32 %v1879, %v796
          %v1887 = vmul.f32 %v1882, %v804
          %v1888 = vadd.f32 %v1886, %v1887
          %v1889 = vmul.f32 %v1884, %v1020
          %v1890 = vadd.f32 %v1888, %v1889
          %v1891 = vmul.f32 %v1873, %v1890
          %v1892 = vmul.f32 %v1879, %v1338
          %v1893 = vmul.f32 %v1882, %v1346
          %v1894 = vadd.f32 %v1892, %v1893
          %v1895 = vmul.f32 %v1884, %v1493
          %v1896 = vadd.f32 %v1894, %v1895
          %v1897 = vmul.f32 %v1875, %v1896
          %v1898 = vadd.f32 %v1891, %v1897
          %v1899 = vmul.f32 %v1879, %v1751
          %v1900 = vmul.f32 %v1882, %v1759
          %v1901 = vadd.f32 %v1899, %v1900
          %1902 = vrot.lane.b32.xlu0 %v391, 78
          %v1903 = vpop.permute.xlu0 %1902
          %v1904 = vrot.slane %v1903, 1
          %vm1905 = vcmask 637952
          %v1906 = vsel %vm1905, %v1903, %v1904
          %v1908 = vmul.f32 %v1884, %v1906
          %v1909 = vadd.f32 %v1901, %v1908
          %v1910 = vmul.f32 %v1876, %v1909
          %v1911 = vadd.f32 %v1898, %v1910
          %v1912 = vstv %s1885
          %v1913 = vmul.f32 %v1912, %v1911
          %v1914 = vadd.f32 %v1767, %v1913
          %s1915 = sld [smem:[#allocation7 + $0x10]]
          %v1916 = vmul.f32 %v1879, %v863
          %v1917 = vmul.f32 %v1882, %v870
          %v1918 = vadd.f32 %v1916, %v1917
          %v1919 = vmul.f32 %v1884, %v1059
          %v1920 = vadd.f32 %v1918, %v1919
          %v1921 = vmul.f32 %v1873, %v1920
          %v1922 = vmul.f32 %v1879, %v1378
          %v1923 = vmul.f32 %v1882, %v1385
          %v1924 = vadd.f32 %v1922, %v1923
          %v1925 = vmul.f32 %v1884, %v1522
          %v1926 = vadd.f32 %v1924, %v1925
          %v1927 = vmul.f32 %v1875, %v1926
          %v1928 = vadd.f32 %v1921, %v1927
          %v1929 = vmul.f32 %v1879, %v1791
          %v1930 = vmul.f32 %v1882, %v1798
          %v1931 = vadd.f32 %v1929, %v1930
          %1932 = vrot.lane.b32.xlu0 %v514, 78
          %v1933 = vpop.permute.xlu0 %1932
          %v1934 = vrot.slane %v1933, 1
          %v1935 = vsel %vm1905, %v1933, %v1934
          %v1937 = vmul.f32 %v1884, %v1935
          %v1938 = vadd.f32 %v1931, %v1937
          %v1939 = vmul.f32 %v1876, %v1938
          %v1940 = vadd.f32 %v1928, %v1939
          %v1941 = vstv %s1915
          %v1942 = vmul.f32 %v1941, %v1940
          %v1943 = vadd.f32 %v1806, %v1942
          %s1944 = sld [smem:[#allocation7 + $0x19]]
          %v1945 = vmul.f32 %v1879, %v929
          %v1946 = vmul.f32 %v1882, %v936
          %v1947 = vadd.f32 %v1945, %v1946
          %v1948 = vmul.f32 %v1884, %v1098
          %v1949 = vadd.f32 %v1947, %v1948
          %v1950 = vmul.f32 %v1873, %v1949
          %v1951 = vmul.f32 %v1879, %v1417
          %v1952 = vmul.f32 %v1882, %v1424
          %v1953 = vadd.f32 %v1951, %v1952
          %v1954 = vmul.f32 %v1884, %v1551
          %v1955 = vadd.f32 %v1953, %v1954
          %v1956 = vmul.f32 %v1875, %v1955
          %v1957 = vadd.f32 %v1950, %v1956
          %v1958 = vmul.f32 %v1879, %v1830
          %v1959 = vmul.f32 %v1882, %v1837
          %v1960 = vadd.f32 %v1958, %v1959
          %1961 = vrot.lane.b32.xlu0 %v602, 78
          %v1962 = vpop.permute.xlu0 %1961
          %v1963 = vrot.slane %v1962, 1
          %v1964 = vsel %vm1905, %v1962, %v1963
          %v1966 = vmul.f32 %v1884, %v1964
          %v1967 = vadd.f32 %v1960, %v1966
          %v1968 = vmul.f32 %v1876, %v1967
          %v1969 = vadd.f32 %v1957, %v1968
          %v1970 = vstv %s1944
          %v1971 = vmul.f32 %v1970, %v1969
          %v1972 = vadd.f32 %v1845, %v1971
          %s1973 = sld [smem:[#allocation5 + $0x30]]
          %v1974 = vstv %s1973
          %v1975 = vmul.f32 %v1974, %v511
          %s1976 = sld [smem:[#allocation5 + $0x33]]
          %v1977 = vstv %s1976
          %v1978 = vmul.f32 %v1977, %v511
          %s1979 = sld [smem:[#allocation5 + $0x31]]
          %v1980 = vstv %s1979
          %v1981 = vmul.f32 %v1980, %v599
          %v1982 = vadd.f32 %v1975, %v1981
          %s1983 = sld [smem:[#allocation5 + $0x34]]
          %v1984 = vstv %s1983
          %v1985 = vmul.f32 %v1984, %v599
          %v1986 = vadd.f32 %v1978, %v1985
          %s1987 = sld [smem:[#allocation5 + $0x32]]
          %v1988 = vstv %s1987
          %v1989 = vmul.f32 %v1988, %v687
          %v1990 = vadd.f32 %v1982, %v1989
          %s1991 = sld [smem:[#allocation5 + $0x35]]
          %v1992 = vstv %s1991
          %v1993 = vmul.f32 %v1992, %v687
          %v1994 = vadd.f32 %v1986, %v1993
          %v1995 = vmax.f32 %v1990, -1.0
          %v1996 = vmin.f32 %v1995, 1.0
          %v1997 = vmax.f32 %v1994, -1.0
          %v1998 = vmin.f32 %v1997, 1.0
          %v1999 = vsub.f32 0.0, %v1996
          %v2000 = vmax.f32 %v1999, 0.0
          %v2001 = vand.u32 2147483647, %v1996
          %v2002 = vsub.f32 1.0, %v2001
          %v2003 = vmax.f32 %v1996, 0.0
          %v2004 = vsub.f32 0.0, %v1998
          %v2005 = vmax.f32 %v2004, 0.0
          %v2006 = vmul.f32 %v2005, %v738
          %v2007 = vand.u32 2147483647, %v1998
          %v2008 = vsub.f32 1.0, %v2007
          %v2009 = vmul.f32 %v2008, %v985
          %v2010 = vmax.f32 %v1998, 0.0
          %v2011 = vmul.f32 %v2010, %v1152
          %s2012 = sld [smem:[#allocation7 + $0x8]]
          %v2013 = vmul.f32 %v2006, %v804
          %v2014 = vmul.f32 %v2009, %v1020
          %v2015 = vadd.f32 %v2013, %v2014
          %v2016 = vmul.f32 %v2011, %v1188
          %v2017 = vadd.f32 %v2015, %v2016
          %v2018 = vmul.f32 %v2000, %v2017
          %v2019 = vmul.f32 %v2006, %v1346
          %v2020 = vmul.f32 %v2009, %v1493
          %v2021 = vadd.f32 %v2019, %v2020
          %v2022 = vmul.f32 %v2011, %v1620
          %v2023 = vadd.f32 %v2021, %v2022
          %v2024 = vmul.f32 %v2002, %v2023
          %v2025 = vadd.f32 %v2018, %v2024
          %v2026 = vmul.f32 %v2006, %v1759
          %v2027 = vmul.f32 %v2009, %v1906
          %v2028 = vadd.f32 %v2026, %v2027
          %2029 = vrot.lane.b32.xlu0 %v391, 77
          %v2030 = vpop.permute.xlu0 %2029
          %v2031 = vrot.slane %v2030, 1
          %vm2032 = vcmask 629760
          %v2033 = vsel %vm2032, %v2030, %v2031
          %v2035 = vmul.f32 %v2011, %v2033
          %v2036 = vadd.f32 %v2028, %v2035
          %v2037 = vmul.f32 %v2003, %v2036
          %v2038 = vadd.f32 %v2025, %v2037
          %v2039 = vstv %s2012
          %v2040 = vmul.f32 %v2039, %v2038
          %v2041 = vadd.f32 %v1914, %v2040
          %s2042 = sld [smem:[#allocation7 + $0x11]]
          %v2043 = vmul.f32 %v2006, %v870
          %v2044 = vmul.f32 %v2009, %v1059
          %v2045 = vadd.f32 %v2043, %v2044
          %v2046 = vmul.f32 %v2011, %v1227
          %v2047 = vadd.f32 %v2045, %v2046
          %v2048 = vmul.f32 %v2000, %v2047
          %v2049 = vmul.f32 %v2006, %v1385
          %v2050 = vmul.f32 %v2009, %v1522
          %v2051 = vadd.f32 %v2049, %v2050
          %v2052 = vmul.f32 %v2011, %v1649
          %v2053 = vadd.f32 %v2051, %v2052
          %v2054 = vmul.f32 %v2002, %v2053
          %v2055 = vadd.f32 %v2048, %v2054
          %v2056 = vmul.f32 %v2006, %v1798
          %v2057 = vmul.f32 %v2009, %v1935
          %v2058 = vadd.f32 %v2056, %v2057
          %2059 = vrot.lane.b32.xlu0 %v514, 77
          %v2060 = vpop.permute.xlu0 %2059
          %v2061 = vrot.slane %v2060, 1
          %v2062 = vsel %vm2032, %v2060, %v2061
          %v2064 = vmul.f32 %v2011, %v2062
          %v2065 = vadd.f32 %v2058, %v2064
          %v2066 = vmul.f32 %v2003, %v2065
          %v2067 = vadd.f32 %v2055, %v2066
          %v2068 = vstv %s2042
          %v2069 = vmul.f32 %v2068, %v2067
          %v2070 = vadd.f32 %v1943, %v2069
          %s2071 = sld [smem:[#allocation7 + $0x1a]]
          %v2072 = vmul.f32 %v2006, %v936
          %v2073 = vmul.f32 %v2009, %v1098
          %v2074 = vadd.f32 %v2072, %v2073
          %v2075 = vmul.f32 %v2011, %v1266
          %v2076 = vadd.f32 %v2074, %v2075
          %v2077 = vmul.f32 %v2000, %v2076
          %v2078 = vmul.f32 %v2006, %v1424
          %v2079 = vmul.f32 %v2009, %v1551
          %v2080 = vadd.f32 %v2078, %v2079
          %v2081 = vmul.f32 %v2011, %v1678
          %v2082 = vadd.f32 %v2080, %v2081
          %v2083 = vmul.f32 %v2002, %v2082
          %v2084 = vadd.f32 %v2077, %v2083
          %v2085 = vmul.f32 %v2006, %v1837
          %v2086 = vmul.f32 %v2009, %v1964
          %v2087 = vadd.f32 %v2085, %v2086
          %2088 = vrot.lane.b32.xlu0 %v602, 77
          %v2089 = vpop.permute.xlu0 %2088
          %v2090 = vrot.slane %v2089, 1
          %v2091 = vsel %vm2032, %v2089, %v2090
          %v2093 = vmul.f32 %v2011, %v2091
          %v2094 = vadd.f32 %v2087, %v2093
          %v2095 = vmul.f32 %v2003, %v2094
          %v2096 = vadd.f32 %v2084, %v2095
          %v2097 = vstv %s2071
          %v2098 = vmul.f32 %v2097, %v2096
          %v2099 = vadd.f32 %v1972, %v2098
          %2101 = vrot.lane.b32.xlu0 %v2041, 111
          %v2102 = vpop.permute.xlu0 %2101
          %v2103 = vrot.slane %v2102, 1
          %v2104 = vsel %vm803, %v2102, %v2103
          %v2106 = vlaneseq
          %vm2107 = vcmp.ge.s32.totalorder %v2106, 0
          %vm2108 = vcmp.lt.s32.totalorder %v2106, 256
          %vm2109 = vmand %vm2107, %vm2108
          %2110 = vst.msk [vmem:[#allocation2] ss:$4 sm:$0x3] %vm2109, %v2104
          %2112 = vrot.lane.b32.xlu0 %v2070, 111
          %v2113 = vpop.permute.xlu0 %2112
          %v2114 = vrot.slane %v2113, 1
          %v2115 = vsel %vm803, %v2113, %v2114
          %s2117 = scalar_lea.vmem [#allocation2], 1
          %2118 = vst.msk [vmem:[%s2117] ss:$4 sm:$0x3] %vm2109, %v2115
          %2120 = vrot.lane.b32.xlu0 %v2099, 111
          %v2121 = vpop.permute.xlu0 %2120
          %v2122 = vrot.slane %v2121, 1
          %v2123 = vsel %vm803, %v2121, %v2122
          %s2125 = scalar_lea.vmem [#allocation2], 2
          %2126 = vst.msk [vmem:[%s2125] ss:$4 sm:$0x3] %vm2109, %v2123
        $region56: #{dwc_patch_embed_forward.1} parent=39 // pred_fallthru
          _
        %v2127 = vld [vmem:[%s298] sm:$0xff]
        %v2128 = vld [vmem:[%s298 + $0x8] sm:$0xff]
        %v2129 = vld [vmem:[%s298 + $0x10] sm:$0xff]
        %v2130 = vld [vmem:[%s298 + $0x18] sm:$0xff]
        %v2131 = vld [vmem:[%s298 + $0x20] sm:$0xff]
        %v2132 = vld [vmem:[%s298 + $0x28] sm:$0xff]
        %v2133 = vld [vmem:[%s298 + $0x30] sm:$0xff]
        %v2134 = vld [vmem:[%s298 + $0x38] sm:$0xff]
        %v2135 = vld [vmem:[#allocation2] ss:$4 sm:$0x3]
        %2137 = vset.pattern.permute.xlu0 0
        %2138 = vperm.xlu0 %2137, %v2127
        %v2139 = vpop.permute.xlu0 %2138
        %2142 = vset.pattern.permute.xlu0 0
        %2143 = vperm.xlu0 %2142, %v2128
        %v2144 = vpop.permute.xlu0 %2143
        %2147 = vset.pattern.permute.xlu0 0
        %2148 = vperm.xlu0 %2147, %v2129
        %v2149 = vpop.permute.xlu0 %2148
        %2152 = vset.pattern.permute.xlu0 0
        %2153 = vperm.xlu0 %2152, %v2130
        %v2154 = vpop.permute.xlu0 %2153
        %2157 = vset.pattern.permute.xlu0 0
        %2158 = vperm.xlu0 %2157, %v2131
        %v2159 = vpop.permute.xlu0 %2158
        %2162 = vset.pattern.permute.xlu0 0
        %2163 = vperm.xlu0 %2162, %v2132
        %v2164 = vpop.permute.xlu0 %2163
        %2167 = vset.pattern.permute.xlu0 0
        %2168 = vperm.xlu0 %2167, %v2133
        %v2169 = vpop.permute.xlu0 %2168
        %2172 = vset.pattern.permute.xlu0 0
        %2173 = vperm.xlu0 %2172, %v2134
        %v2174 = vpop.permute.xlu0 %2173
        %v2177 = vperm.slane %v2135, 0
        %v2178 = vperm.slane %v2135, 1
        %v2181 = vmul.f32 %v2139, %v2177
        %v2182 = vmul.f32 %v2139, %v2178
        %v2183 = vmul.f32 %v2144, %v2177
        %v2184 = vmul.f32 %v2144, %v2178
        %v2185 = vmul.f32 %v2149, %v2177
        %v2186 = vmul.f32 %v2149, %v2178
        %v2187 = vmul.f32 %v2154, %v2177
        %v2188 = vmul.f32 %v2154, %v2178
        %v2189 = vmul.f32 %v2159, %v2177
        %v2190 = vmul.f32 %v2159, %v2178
        %v2191 = vmul.f32 %v2164, %v2177
        %v2192 = vmul.f32 %v2164, %v2178
        %v2193 = vmul.f32 %v2169, %v2177
        %v2194 = vmul.f32 %v2169, %v2178
        %v2195 = vmul.f32 %v2174, %v2177
        %v2196 = vmul.f32 %v2174, %v2178
        %s2197 = scalar_lea.vmem [#allocation2], 1
        %v2198 = vld [vmem:[%s2197] ss:$4 sm:$0x3]
        %2199 = vset.pattern.permute.xlu0 1
        %2200 = vperm.xlu0 %2199, %v2127
        %v2201 = vpop.permute.xlu0 %2200
        %2203 = vset.pattern.permute.xlu0 1
        %2204 = vperm.xlu0 %2203, %v2128
        %v2205 = vpop.permute.xlu0 %2204
        %2207 = vset.pattern.permute.xlu0 1
        %2208 = vperm.xlu0 %2207, %v2129
        %v2209 = vpop.permute.xlu0 %2208
        %2211 = vset.pattern.permute.xlu0 1
        %2212 = vperm.xlu0 %2211, %v2130
        %v2213 = vpop.permute.xlu0 %2212
        %2215 = vset.pattern.permute.xlu0 1
        %2216 = vperm.xlu0 %2215, %v2131
        %v2217 = vpop.permute.xlu0 %2216
        %2219 = vset.pattern.permute.xlu0 1
        %2220 = vperm.xlu0 %2219, %v2132
        %v2221 = vpop.permute.xlu0 %2220
        %2223 = vset.pattern.permute.xlu0 1
        %2224 = vperm.xlu0 %2223, %v2133
        %v2225 = vpop.permute.xlu0 %2224
        %2227 = vset.pattern.permute.xlu0 1
        %2228 = vperm.xlu0 %2227, %v2134
        %v2229 = vpop.permute.xlu0 %2228
        %v2232 = vperm.slane %v2198, 0
        %v2233 = vperm.slane %v2198, 1
        %v2236 = vmul.f32 %v2201, %v2232
        %v2237 = vmul.f32 %v2201, %v2233
        %v2238 = vmul.f32 %v2205, %v2232
        %v2239 = vmul.f32 %v2205, %v2233
        %v2240 = vmul.f32 %v2209, %v2232
        %v2241 = vmul.f32 %v2209, %v2233
        %v2242 = vmul.f32 %v2213, %v2232
        %v2243 = vmul.f32 %v2213, %v2233
        %v2244 = vmul.f32 %v2217, %v2232
        %v2245 = vmul.f32 %v2217, %v2233
        %v2246 = vmul.f32 %v2221, %v2232
        %v2247 = vmul.f32 %v2221, %v2233
        %v2248 = vmul.f32 %v2225, %v2232
        %v2249 = vmul.f32 %v2225, %v2233
        %v2250 = vmul.f32 %v2229, %v2232
        %v2251 = vmul.f32 %v2229, %v2233
        %v2252 = vadd.f32 %v2181, %v2236
        %v2253 = vadd.f32 %v2182, %v2237
        %v2254 = vadd.f32 %v2183, %v2238
        %v2255 = vadd.f32 %v2184, %v2239
        %v2256 = vadd.f32 %v2185, %v2240
        %v2257 = vadd.f32 %v2186, %v2241
        %v2258 = vadd.f32 %v2187, %v2242
        %v2259 = vadd.f32 %v2188, %v2243
        %v2260 = vadd.f32 %v2189, %v2244
        %v2261 = vadd.f32 %v2190, %v2245
        %v2262 = vadd.f32 %v2191, %v2246
        %v2263 = vadd.f32 %v2192, %v2247
        %v2264 = vadd.f32 %v2193, %v2248
        %v2265 = vadd.f32 %v2194, %v2249
        %v2266 = vadd.f32 %v2195, %v2250
        %v2267 = vadd.f32 %v2196, %v2251
        %s2268 = scalar_lea.vmem [#allocation2], 2
        %v2269 = vld [vmem:[%s2268] ss:$4 sm:$0x3]
        %2270 = vset.pattern.permute.xlu0 2
        %2271 = vperm.xlu0 %2270, %v2127
        %v2272 = vpop.permute.xlu0 %2271
        %2274 = vset.pattern.permute.xlu0 2
        %2275 = vperm.xlu0 %2274, %v2128
        %v2276 = vpop.permute.xlu0 %2275
        %2278 = vset.pattern.permute.xlu0 2
        %2279 = vperm.xlu0 %2278, %v2129
        %v2280 = vpop.permute.xlu0 %2279
        %2282 = vset.pattern.permute.xlu0 2
        %2283 = vperm.xlu0 %2282, %v2130
        %v2284 = vpop.permute.xlu0 %2283
        %2286 = vset.pattern.permute.xlu0 2
        %2287 = vperm.xlu0 %2286, %v2131
        %v2288 = vpop.permute.xlu0 %2287
        %2290 = vset.pattern.permute.xlu0 2
        %2291 = vperm.xlu0 %2290, %v2132
        %v2292 = vpop.permute.xlu0 %2291
        %2294 = vset.pattern.permute.xlu0 2
        %2295 = vperm.xlu0 %2294, %v2133
        %v2296 = vpop.permute.xlu0 %2295
        %2298 = vset.pattern.permute.xlu0 2
        %2299 = vperm.xlu0 %2298, %v2134
        %v2300 = vpop.permute.xlu0 %2299
        %v2303 = vperm.slane %v2269, 0
        %v2304 = vperm.slane %v2269, 1
        %v2307 = vmul.f32 %v2272, %v2303
        %v2308 = vmul.f32 %v2272, %v2304
        %v2309 = vmul.f32 %v2276, %v2303
        %v2310 = vmul.f32 %v2276, %v2304
        %v2311 = vmul.f32 %v2280, %v2303
        %v2312 = vmul.f32 %v2280, %v2304
        %v2313 = vmul.f32 %v2284, %v2303
        %v2314 = vmul.f32 %v2284, %v2304
        %v2315 = vmul.f32 %v2288, %v2303
        %v2316 = vmul.f32 %v2288, %v2304
        %v2317 = vmul.f32 %v2292, %v2303
        %v2318 = vmul.f32 %v2292, %v2304
        %v2319 = vmul.f32 %v2296, %v2303
        %v2320 = vmul.f32 %v2296, %v2304
        %v2321 = vmul.f32 %v2300, %v2303
        %v2322 = vmul.f32 %v2300, %v2304
        %v2323 = vadd.f32 %v2252, %v2307
        %v2324 = vadd.f32 %v2253, %v2308
        %v2325 = vadd.f32 %v2254, %v2309
        %v2326 = vadd.f32 %v2255, %v2310
        %v2327 = vadd.f32 %v2256, %v2311
        %v2328 = vadd.f32 %v2257, %v2312
        %v2329 = vadd.f32 %v2258, %v2313
        %v2330 = vadd.f32 %v2259, %v2314
        %v2331 = vadd.f32 %v2260, %v2315
        %v2332 = vadd.f32 %v2261, %v2316
        %v2333 = vadd.f32 %v2262, %v2317
        %v2334 = vadd.f32 %v2263, %v2318
        %v2335 = vadd.f32 %v2264, %v2319
        %v2336 = vadd.f32 %v2265, %v2320
        %v2337 = vadd.f32 %v2266, %v2321
        %v2338 = vadd.f32 %v2267, %v2322
        %v2339 = vadd.f32 %v2323, 3.0
        %v2340 = vadd.f32 %v2324, 3.0
        %v2341 = vadd.f32 %v2325, 3.0
        %v2342 = vadd.f32 %v2326, 3.0
        %v2343 = vadd.f32 %v2327, 3.0
        %v2344 = vadd.f32 %v2328, 3.0
        %v2345 = vadd.f32 %v2329, 3.0
        %v2346 = vadd.f32 %v2330, 3.0
        %v2347 = vadd.f32 %v2331, 3.0
        %v2348 = vadd.f32 %v2332, 3.0
        %v2349 = vadd.f32 %v2333, 3.0
        %v2350 = vadd.f32 %v2334, 3.0
        %v2351 = vadd.f32 %v2335, 3.0
        %v2352 = vadd.f32 %v2336, 3.0
        %v2353 = vadd.f32 %v2337, 3.0
        %v2354 = vadd.f32 %v2338, 3.0
        %v2355 = vmax.f32 %v2339, 0.0
        %v2356 = vmax.f32 %v2340, 0.0
        %v2357 = vmax.f32 %v2341, 0.0
        %v2358 = vmax.f32 %v2342, 0.0
        %v2359 = vmax.f32 %v2343, 0.0
        %v2360 = vmax.f32 %v2344, 0.0
        %v2361 = vmax.f32 %v2345, 0.0
        %v2362 = vmax.f32 %v2346, 0.0
        %v2363 = vmax.f32 %v2347, 0.0
        %v2364 = vmax.f32 %v2348, 0.0
        %v2365 = vmax.f32 %v2349, 0.0
        %v2366 = vmax.f32 %v2350, 0.0
        %v2367 = vmax.f32 %v2351, 0.0
        %v2368 = vmax.f32 %v2352, 0.0
        %v2369 = vmax.f32 %v2353, 0.0
        %v2370 = vmax.f32 %v2354, 0.0
        %v2371 = vmin.f32 %v2355, 6.0
        %v2372 = vmin.f32 %v2356, 6.0
        %v2373 = vmin.f32 %v2357, 6.0
        %v2374 = vmin.f32 %v2358, 6.0
        %v2375 = vmin.f32 %v2359, 6.0
        %v2376 = vmin.f32 %v2360, 6.0
        %v2377 = vmin.f32 %v2361, 6.0
        %v2378 = vmin.f32 %v2362, 6.0
        %v2379 = vmin.f32 %v2363, 6.0
        %v2380 = vmin.f32 %v2364, 6.0
        %v2381 = vmin.f32 %v2365, 6.0
        %v2382 = vmin.f32 %v2366, 6.0
        %v2383 = vmin.f32 %v2367, 6.0
        %v2384 = vmin.f32 %v2368, 6.0
        %v2385 = vmin.f32 %v2369, 6.0
        %v2386 = vmin.f32 %v2370, 6.0
        %v2387 = vmul.f32 %v2323, %v2371
        %v2388 = vmul.f32 %v2324, %v2372
        %v2389 = vmul.f32 %v2325, %v2373
        %v2390 = vmul.f32 %v2326, %v2374
        %v2391 = vmul.f32 %v2327, %v2375
        %v2392 = vmul.f32 %v2328, %v2376
        %v2393 = vmul.f32 %v2329, %v2377
        %v2394 = vmul.f32 %v2330, %v2378
        %v2395 = vmul.f32 %v2331, %v2379
        %v2396 = vmul.f32 %v2332, %v2380
        %v2397 = vmul.f32 %v2333, %v2381
        %v2398 = vmul.f32 %v2334, %v2382
        %v2399 = vmul.f32 %v2335, %v2383
        %v2400 = vmul.f32 %v2336, %v2384
        %v2401 = vmul.f32 %v2337, %v2385
        %v2402 = vmul.f32 %v2338, %v2386
        %v2403 = vmul.f32 %v2387, 0.16666667
        %v2404 = vmul.f32 %v2388, 0.16666667
        %v2405 = vmul.f32 %v2389, 0.16666667
        %v2406 = vmul.f32 %v2390, 0.16666667
        %v2407 = vmul.f32 %v2391, 0.16666667
        %v2408 = vmul.f32 %v2392, 0.16666667
        %v2409 = vmul.f32 %v2393, 0.16666667
        %v2410 = vmul.f32 %v2394, 0.16666667
        %v2411 = vmul.f32 %v2395, 0.16666667
        %v2412 = vmul.f32 %v2396, 0.16666667
        %v2413 = vmul.f32 %v2397, 0.16666667
        %v2414 = vmul.f32 %v2398, 0.16666667
        %v2415 = vmul.f32 %v2399, 0.16666667
        %v2416 = vmul.f32 %v2400, 0.16666667
        %v2417 = vmul.f32 %v2401, 0.16666667
        %v2418 = vmul.f32 %v2402, 0.16666667
        %2419 = vst [vmem:[%s309] sm:$0xff] %v2403
        %2420 = vst [vmem:[%s309 + $0x8] sm:$0xff] %v2404
        %2421 = vst [vmem:[%s309 + $0x10] sm:$0xff] %v2405
        %2422 = vst [vmem:[%s309 + $0x18] sm:$0xff] %v2406
        %2423 = vst [vmem:[%s309 + $0x20] sm:$0xff] %v2407
        %2424 = vst [vmem:[%s309 + $0x28] sm:$0xff] %v2408
        %2425 = vst [vmem:[%s309 + $0x30] sm:$0xff] %v2409
        %2426 = vst [vmem:[%s309 + $0x38] sm:$0xff] %v2410
        %2427 = vst [vmem:[%s309 + $0x40] sm:$0xff] %v2411
        %2428 = vst [vmem:[%s309 + $0x48] sm:$0xff] %v2412
        %2429 = vst [vmem:[%s309 + $0x50] sm:$0xff] %v2413
        %2430 = vst [vmem:[%s309 + $0x58] sm:$0xff] %v2414
        %2431 = vst [vmem:[%s309 + $0x60] sm:$0xff] %v2415
        %2432 = vst [vmem:[%s309 + $0x68] sm:$0xff] %v2416
        %2433 = vst [vmem:[%s309 + $0x70] sm:$0xff] %v2417
        %2434 = vst [vmem:[%s309 + $0x78] sm:$0xff] %v2418
        %s2435 = smul.u32 8, %s23
        %p2436 = scmp.lt.s32.totalorder %s22, 1
        %s2437 = scalar_select %p2436, %s22, 1
        %p2438 = scmp.lt.s32.totalorder %s2435, 7
        %s2439 = scalar_select %p2438, %s2435, 7
        %s2440 = smul.addr %s2439, 2
        %s2441 = smul.addr %s2437, 16
        %s2442 = sadd.s32 %s2440, %s2441
        %s2443 = smul.addr %s2442, 8
        %s2444 = scalar_lea.vmem %s5, %s2443
        // Predicated region
        $region57: #{dwc_patch_embed_forward.1} parent=39 // pred_check
          %p2445 = pneg %p165
        $region58: #{dwc_patch_embed_forward.1} parent=39 // pred_check_branch
          %2447 = sbr.rel (%p2445) target = $region60
        $region59: #{dwc_patch_embed_forward.1} parent=39 // pred_region
          %s2448 = smul.u32 8, %s23
        $region60: #{dwc_patch_embed_forward.1} parent=39 // pred_fallthru
          _
      $region40: #{dwc_patch_embed_forward.1} parent=5 // pred_fallthru
        _
      %p2449 = scmp.le.s32.totalorder 2, %s13
      // Predicated region
      $region61: #{dwc_patch_embed_forward.1} parent=5 // pred_check
        %p2450 = pneg %p2449
      $region62: #{dwc_patch_embed_forward.1} parent=5 // pred_check_branch
        %2452 = sbr.rel (%p2450) target = $region64
      $region63: #{dwc_patch_embed_forward.1} parent=5 // pred_region
        %s2453 = ssub.s32 %s13, 2
        // Predicated region
        $region65: #{dwc_patch_embed_forward.1} parent=63 // pred_check
          %p2454 = pneg %p171
        $region66: #{dwc_patch_embed_forward.1} parent=63 // pred_check_branch
          %2456 = sbr.rel (%p2454) target = $region68
        $region67: #{dwc_patch_embed_forward.1} parent=63 // pred_region
          %s2457 = smul.u32 8, %s25
          %p2458 = scmp.lt.s32.totalorder %s24, 1
          %s2459 = scalar_select %p2458, %s24, 1
          %p2460 = scmp.lt.s32.totalorder %s2457, 7
          %s2461 = scalar_select %p2460, %s2457, 7
          %s2462 = smul.addr %s2461, 2
          %s2463 = smul.addr %s2459, 16
          %s2464 = sadd.s32 %s2462, %s2463
          %s2465 = smul.addr %s2464, 8
          %s2466 = scalar_lea.vmem %s5, %s2465
        $region68: #{dwc_patch_embed_forward.1} parent=63 // pred_fallthru
          _
      $region64: #{dwc_patch_embed_forward.1} parent=5 // pred_fallthru
        _
    $region6: #{dwc_patch_embed_forward.1} parent=1 // loop_footer
      %s17 = sadd.s32 1, %s13
    $region7: #{dwc_patch_embed_forward.1} parent=1 // loop_footer_branch
      %12 = sbr.rel target = $region3
    $region8: #{dwc_patch_embed_forward.1} parent=1 // loop_exit
      _
    %2467 = vsyncpa [#allocation4], 1
    %s2468 = scalar_lea.sflag [#allocation4], 1
    %2469 = vsyncpa %s2468, 1
    %2470 = vsyncpa [#allocation6], 1

</llo_original>
